<compile_context>
chip_gen: v5e
topology: v5e:2x2
jax: 0.10.0
libtpu: 0.0.40
codegen_flags: <defaults>
</compile_context>

<pallas_src>
import jax
import jax.numpy as jnp
from jax.experimental import pallas as pl
from jax.experimental.pallas import tpu as pltpu

LN_EPS = 1e-5

# ---------------- model hyper-parameters (small, forward-consistent) ----------
NUM_NODES = 64
NUM_EDGES = 128
PVF_DIM = 3
POS_DIM = 2
NUM_NODE_TYPES = 3
NODE_FEATURE_SIZE = PVF_DIM + 1 + 1 + NUM_NODE_TYPES           # pvf + D + X + onehot = 8
MESH_EDGE_FEATURE_SIZE = POS_DIM + 1 + POS_DIM + 1 + PVF_DIM    # = 9
LATENT_SIZE = 32
OUTPUT_SIZE = 5                                                 # 2 world-pos + 3 pvf
TIME_WINDOW = 2
MESSAGE_PASSING_STEPS = 2
DECODER_HIDDEN = 8

FEAT_PAD = 16                                   # node/edge features zero-padded to 16 lanes
OUT_TOTAL = OUTPUT_SIZE * TIME_WINDOW           # 10
TOPO_LANES = max(2 * NUM_NODES, NUM_EDGES)      # 128
# bf16 MXU operands (perf feedback for v6e/v7x; accumulation stays f32).
MXU_DTYPE = jnp.bfloat16

assert NODE_FEATURE_SIZE <= FEAT_PAD and MESH_EDGE_FEATURE_SIZE <= FEAT_PAD
assert 2 * FEAT_PAD == LATENT_SIZE
assert DECODER_HIDDEN <= LATENT_SIZE and OUT_TOTAL <= LATENT_SIZE


# ---------------- in-kernel helpers -------------------------------------------
def _mm(a, b):
    """MXU matmul with bf16 operands and f32 accumulation."""
    return jnp.dot(a.astype(MXU_DTYPE), b.astype(MXU_DTYPE),
                   preferred_element_type=jnp.float32)


def _layer_norm(h, gamma, beta):
    """LayerNorm, centered biased variance, eps=1e-5 (PyTorch semantics)."""
    mean = jnp.mean(h, axis=-1, keepdims=True)
    c = h - mean
    var = jnp.mean(c * c, axis=-1, keepdims=True)
    return c * jax.lax.rsqrt(var + LN_EPS) * gamma + beta


def _mlp_tail(h1, w2, vec):
    """Given pre-activation of layer 1: ReLU -> Linear -> ReLU -> LayerNorm.
       vec rows: [b1, b2, gamma, beta]."""
    h = jnp.maximum(h1, 0.0)
    h = _mm(h, w2) + vec[1:2]
    h = jnp.maximum(h, 0.0)
    return _layer_norm(h, vec[2:3], vec[3:4])


# ---------------- the single fused Pallas kernel -------------------------------
# slab layouts (see prepare_fused_params / build_graph_slabs):
#   feat_ref : (N+E, 16)  rows [0,N) node feats (padded), [N,N+E) edge feats (padded)
#   topo_ref : (E+N, 128) rows [0,E): [send_oh | recv_oh]; rows [E,E+N): recv_oh^T
#   wsq_ref  : (3+5S, L, L)  0: packed encoder W1s, 1: enc-node W2, 2: enc-edge W2,
#                            per step s: [W_edge, edgeW2, W_node, W_aggr, nodeW2]
#   wsr_ref  : (S, 2, L, L)  per step: [W_send, W_recv]
#   vec_ref  : (2+2S, 4, L)  per MLP: [b1, b2, gamma, beta]
#   dec_ref  : (2L+2, L)     [W1p; W2p(dt folded); b1p; b2p(dt folded)], zero-padded
def _fused_epd_kernel(feat_ref, topo_ref, wsq_ref, wsr_ref, vec_ref, dec_ref, out_ref):
    N, E, L = NUM_NODES, NUM_EDGES, LATENT_SIZE

    # ---------------- encode (nodes, then mesh edges) ----------------
    nvec = vec_ref[0]
    h1 = _mm(feat_ref[0:N, :], wsq_ref[0, 0:FEAT_PAD, :]) + nvec[0:1]
    node_lat = _mlp_tail(h1, wsq_ref[1], nvec)                              # (N, L)

    evec = vec_ref[1]
    h1 = _mm(feat_ref[N:N + E, :], wsq_ref[0, FEAT_PAD:2 * FEAT_PAD, :]) + evec[0:1]
    edge_lat = _mlp_tail(h1, wsq_ref[2], evec)                              # (E, L)

    # -------------- process: unrolled message-passing steps --------------
    # All weights / topology operands are loaded from VMEM at their use sites
    # (short live ranges; no big hoisted values across the loop).
    for s in range(MESSAGE_PASSING_STEPS):
        wq = 3 + 5 * s
        vb = 2 + 2 * s

        # Reassociated gather + projection:
        #   (send_oh @ node_lat) @ W_s + (recv_oh @ node_lat) @ W_r
        #     == [send_oh | recv_oh] @ [[node_lat @ W_s], [node_lat @ W_r]]
        p_send = _mm(node_lat, wsr_ref[s, 0])                               # (N, L)
        p_recv = _mm(node_lat, wsr_ref[s, 1])                               # (N, L)
        p_stack = jnp.concatenate([p_send, p_recv], axis=0)                 # (2N, L)
        gat_proj = _mm(topo_ref[0:E, 0:2 * N], p_stack)                     # (E, L), K=2N

        ev = vec_ref[vb]
        h1 = gat_proj + _mm(edge_lat, wsq_ref[wq + 0]) + ev[0:1]
        new_edge = _mlp_tail(h1, wsq_ref[wq + 1], ev)                       # (E, L)

        # scatter_add over receivers == recv_oh^T @ new_edge
        aggr = _mm(topo_ref[E:E + N, 0:E], new_edge)                        # (N, L)

        nv = vec_ref[vb + 1]
        h1n = _mm(node_lat, wsq_ref[wq + 2]) + _mm(aggr, wsq_ref[wq + 3]) + nv[0:1]
        new_node = _mlp_tail(h1n, wsq_ref[wq + 4], nv)                      # (N, L)

        # residual connections
        node_lat = node_lat + new_node
        edge_lat = edge_lat + new_edge

    # ---------------- decode: Linear -> Swish -> Linear (dt folded) ----------------
    h = _mm(node_lat, dec_ref[0:L, :]) + dec_ref[2 * L:2 * L + 1, :]
    h = h * jax.nn.sigmoid(h)                                               # Swish(beta=1)
    out = _mm(h, dec_ref[L:2 * L, :]) + dec_ref[2 * L + 1:2 * L + 2, :]
    out_ref[...] = out[:, 0:OUT_TOTAL]


# ---------------- pallas_call wrapper (batched over a "parallel" grid axis) -----
def fused_forward_call(feat, topo, fp):
    batch = feat.shape[0]
    wsq, wsr, vec, dec = fp["wsq"], fp["wsr"], fp["vec"], fp["dec"]
    return pl.pallas_call(
        _fused_epd_kernel,
        out_shape=jax.ShapeDtypeStruct((batch, NUM_NODES, OUT_TOTAL), jnp.float32),
        grid=(batch,),
        in_specs=[
            pl.BlockSpec((None,) + feat.shape[1:], lambda b: (b, 0, 0)),
            pl.BlockSpec((None,) + topo.shape[1:], lambda b: (b, 0, 0)),
            pl.BlockSpec(wsq.shape, lambda b: (0, 0, 0)),
            pl.BlockSpec(wsr.shape, lambda b: (0, 0, 0, 0)),
            pl.BlockSpec(vec.shape, lambda b: (0, 0, 0)),
            pl.BlockSpec(dec.shape, lambda b: (0, 0)),
        ],
        out_specs=pl.BlockSpec((None, NUM_NODES, OUT_TOTAL), lambda b: (b, 0, 0)),
        compiler_params=pltpu.CompilerParams(
            dimension_semantics=("parallel",)),   # batch axis -> 2nd TC on v7x
    )(feat, topo, wsq, wsr, vec, dec)


# ---------------- parameter init (deterministic, PyTorch-like uniform) ---------
def _linear_params(key, fan_in, fan_out):
    k1, k2 = jax.random.split(key)
    bound = 1.0 / jnp.sqrt(jnp.float32(fan_in))
    w = jax.random.uniform(k1, (fan_in, fan_out), jnp.float32, -bound, bound)
    b = jax.random.uniform(k2, (fan_out,), jnp.float32, -bound, bound)
    return w, b


def _mlp_ln_params(key, in_size, latent):
    k1, k2 = jax.random.split(key)
    w1, b1 = _linear_params(k1, in_size, latent)
    w2, b2 = _linear_params(k2, latent, latent)
    gamma = jnp.ones((latent,), jnp.float32)
    beta = jnp.zeros((latent,), jnp.float32)
    return (w1, b1, w2, b2, gamma, beta)


def init_params(key):
    keys = jax.random.split(key, 4 + MESSAGE_PASSING_STEPS)
    node_enc = _mlp_ln_params(keys[0], NODE_FEATURE_SIZE, LATENT_SIZE)
    edge_enc = _mlp_ln_params(keys[1], MESH_EDGE_FEATURE_SIZE, LATENT_SIZE)
    blocks = []
    for i in range(MESSAGE_PASSING_STEPS):
        ke, kn = jax.random.split(keys[2 + i])
        edge_mlp = _mlp_ln_params(ke, 3 * LATENT_SIZE, LATENT_SIZE)
        node_mlp = _mlp_ln_params(kn, 2 * LATENT_SIZE, LATENT_SIZE)
        blocks.append((edge_mlp, node_mlp))
    kd1, kd2 = jax.random.split(keys[-2])
    # Conv1d(latent, 8, 1) and Conv1d(8, output*time_window, 1) == per-node Linear
    dw1, db1 = _linear_params(kd1, LATENT_SIZE, DECODER_HIDDEN)
    dw2, db2 = _linear_params(kd2, DECODER_HIDDEN, OUTPUT_SIZE * TIME_WINDOW)
    dt = jnp.repeat(jnp.arange(1, TIME_WINDOW + 1, dtype=jnp.float32), OUTPUT_SIZE)
    return {"node_enc": node_enc, "edge_enc": edge_enc, "blocks": blocks,
            "dec": (dw1, db1, dw2, db2), "dt": dt}


def prepare_fused_params(params):
    """Repack PyTorch-layout params into 4 contiguous slabs for the fused kernel."""
    L = LATENT_SIZE
    f32 = jnp.float32

    def pad_rows(w, rows):
        return jnp.zeros((rows, w.shape[1]), f32).at[:w.shape[0], :].set(w)

    nw1, nb1, nw2, nb2, ng, nbt = params["node_enc"]
    ew1, eb1, ew2, eb2, eg, ebt = params["edge_enc"]
    enc_w1_packed = jnp.concatenate(
        [pad_rows(nw1, FEAT_PAD), pad_rows(ew1, FEAT_PAD)], axis=0)       # (L, L)

    wsq = [enc_w1_packed, nw2, ew2]
    vec = [jnp.stack([nb1, nb2, ng, nbt]), jnp.stack([eb1, eb2, eg, ebt])]
    wsr = []
    for edge_mlp, node_mlp in params["blocks"]:
        bew1, beb1, bew2, beb2, beg, bebt = edge_mlp
        bnw1, bnb1, bnw2, bnb2, bng, bnbt = node_mlp
        wsr.append(jnp.stack([bew1[0:L], bew1[L:2 * L]]))                  # [W_send, W_recv]
        wsq += [bew1[2 * L:3 * L], bew2, bnw1[0:L], bnw1[L:2 * L], bnw2]
        vec += [jnp.stack([beb1, beb2, beg, bebt]),
                jnp.stack([bnb1, bnb2, bng, bnbt])]

    dw1, db1, dw2, db2 = params["dec"]
    dt = params["dt"]
    # decoder zero-padded to L lanes; dt folded into the second Linear
    w1p = jnp.zeros((L, L), f32).at[:, :DECODER_HIDDEN].set(dw1)
    w2p = jnp.zeros((L, L), f32).at[:DECODER_HIDDEN, :OUT_TOTAL].set(dw2 * dt[None, :])
    b1p = jnp.zeros((1, L), f32).at[0, :DECODER_HIDDEN].set(db1)
    b2p = jnp.zeros((1, L), f32).at[0, :OUT_TOTAL].set(db2 * dt)
    dec_slab = jnp.concatenate([w1p, w2p, b1p, b2p], axis=0)               # (2L+2, L)

    return {
        "wsq": jnp.stack(wsq).astype(MXU_DTYPE),   # (3+5S, L, L)
        "wsr": jnp.stack(wsr).astype(MXU_DTYPE),   # (S, 2, L, L)
        "vec": jnp.stack(vec),                     # (2+2S, 4, L)  f32
        "dec": dec_slab,                           # (2L+2, L)     f32
    }


# ---------------- per-graph slab building (JAX glue) ---------------------------
def build_graph_slabs(graph):
    senders, receivers = graph["senders"], graph["receivers"]
    n, e = graph["pvf"].shape[0], senders.shape[0]

    # _build_node_latent_features
    node_type_oh = jax.nn.one_hot(graph["node_type"], NUM_NODE_TYPES, dtype=jnp.float32)
    node_feats = jnp.concatenate(
        [graph["pvf"], graph["mat_param_D"], graph["mat_param_X"], node_type_oh], axis=-1)

    # _build_mesh_edge_features (replicates the reference exactly, including that
    # norm_rel_world_pos is computed from relative_mesh_pos in the source)
    rel_mesh = graph["mesh_pos"][senders] - graph["mesh_pos"][receivers]
    norm_mesh = jnp.linalg.norm(rel_mesh, axis=-1, keepdims=True)
    rel_world = graph["world_pos"][senders] - graph["world_pos"][receivers]
    norm_world = jnp.linalg.norm(rel_mesh, axis=-1, keepdims=True)
    pvf_grad = graph["pvf"][senders] - graph["pvf"][receivers]
    edge_feats = jnp.concatenate(
        [rel_mesh, norm_mesh, rel_world, norm_world, pvf_grad], axis=-1)

    # TODO(synk): stateful Normalizer running-statistics accumulation has no Pallas
    # equivalent here; zero-initialized stats act as identity.

    feat = jnp.zeros((n + e, FEAT_PAD), jnp.float32)
    feat = feat.at[:n, :NODE_FEATURE_SIZE].set(node_feats)
    feat = feat.at[n:, :MESH_EDGE_FEATURE_SIZE].set(edge_feats)

    send_oh = jax.nn.one_hot(senders, n, dtype=jnp.float32)                # (E, N)
    recv_oh = jax.nn.one_hot(receivers, n, dtype=jnp.float32)              # (E, N)
    topo = jnp.zeros((e + n, TOPO_LANES), jnp.float32)
    topo = topo.at[:e, :n].set(send_oh)
    topo = topo.at[:e, n:2 * n].set(recv_oh)
    topo = topo.at[e:, :e].set(recv_oh.T)
    return feat, topo.astype(MXU_DTYPE)


# ---------------- forward passes ------------------------------------------------
def encode_process_decode_forward_batched(fused_params, graphs):
    slabs = [build_graph_slabs(g) for g in graphs]
    feat = jnp.stack([s[0] for s in slabs])
    topo = jnp.stack([s[1] for s in slabs])
    decoded = fused_forward_call(feat, topo, fused_params)                 # (B, N, TW*out)
    b, n = decoded.shape[0], decoded.shape[1]
    return decoded.reshape(b, n, TIME_WINDOW, OUTPUT_SIZE).transpose(0, 2, 1, 3)


def encode_process_decode_forward(fused_params, graph):
    return encode_process_decode_forward_batched(fused_params, [graph])[0]  # (TW, N, out)


# ---------------- pure-JAX reference (original formulation, same MXU dtype) -----
def reference_forward(params, graph):
    def mlp(p, x):
        w1, b1, w2, b2, g, bt = p
        h = jnp.maximum(_mm(x, w1) + b1, 0.0)
        h = jnp.maximum(_mm(h, w2) + b2, 0.0)
        return _layer_norm(h, g, bt)

    senders, receivers = graph["senders"], graph["receivers"]
    n = graph["pvf"].shape[0]
    node_type_oh = jax.nn.one_hot(graph["node_type"], NUM_NODE_TYPES, dtype=jnp.float32)
    node_feats = jnp.concatenate(
        [graph["pvf"], graph["mat_param_D"], graph["mat_param_X"], node_type_oh], axis=-1)
    rel_mesh = graph["mesh_pos"][senders] - graph["mesh_pos"][receivers]
    norm_mesh = jnp.linalg.norm(rel_mesh, axis=-1, keepdims=True)
    rel_world = graph["world_pos"][senders] - graph["world_pos"][receivers]
    norm_world = jnp.linalg.norm(rel_mesh, axis=-1, keepdims=True)
    pvf_grad = graph["pvf"][senders] - graph["pvf"][receivers]
    edge_feats = jnp.concatenate(
        [rel_mesh, norm_mesh, rel_world, norm_world, pvf_grad], axis=-1)

    node_lat = mlp(params["node_enc"], node_feats)
    edge_lat = mlp(params["edge_enc"], edge_feats)
    for edge_mlp, node_mlp in params["blocks"]:
        new_edge = mlp(edge_mlp, jnp.concatenate(
            [node_lat[senders], node_lat[receivers], edge_lat], axis=-1))
        aggr = jax.ops.segment_sum(new_edge, receivers, num_segments=n)
        new_node = mlp(node_mlp, jnp.concatenate([node_lat, aggr], axis=-1))
        node_lat = node_lat + new_node
        edge_lat = edge_lat + new_edge

    dw1, db1, dw2, db2 = params["dec"]
    h = _mm(node_lat, dw1) + db1
    h = h * jax.nn.sigmoid(h)
    decoded = (_mm(h, dw2) + db2) * params["dt"]
    return decoded.reshape(n, TIME_WINDOW, OUTPUT_SIZE).transpose(1, 0, 2)


def make_graph(key):
    kg = jax.random.split(key, 8)
    return {
        "pvf": jax.random.normal(kg[0], (NUM_NODES, PVF_DIM), jnp.float32),
        "mat_param_D": jax.random.normal(kg[1], (NUM_NODES, 1), jnp.float32),
        "mat_param_X": jax.random.normal(kg[2], (NUM_NODES, 1), jnp.float32),
        "node_type": jax.random.randint(kg[3], (NUM_NODES,), 0, NUM_NODE_TYPES),
        "mesh_pos": jax.random.normal(kg[4], (NUM_NODES, POS_DIM), jnp.float32),
        "world_pos": jax.random.normal(kg[5], (NUM_NODES, POS_DIM), jnp.float32),
        "senders": jax.random.randint(kg[6], (NUM_EDGES,), 0, NUM_NODES),
        "receivers": jax.random.randint(kg[7], (NUM_EDGES,), 0, NUM_NODES),
    }


# ---------------- main -----------------------------------------------------------
if __name__ == "__main__":
    key = jax.random.PRNGKey(0)
    k_params, k_graph = jax.random.split(key)
    params = init_params(k_params)
    fused_params = prepare_fused_params(params)

    graphs = [make_graph(jax.random.fold_in(k_graph, i)) for i in range(2)]

    # single-graph forward (matches the PyTorch module's output shape)
    out = encode_process_decode_forward(fused_params, graphs[0])
    out = jax.block_until_ready(out)
    assert out.shape == (TIME_WINDOW, NUM_NODES, OUTPUT_SIZE), out.shape
    assert out.dtype == jnp.float32

    # structural correctness check vs. the un-reassociated / unpacked reference
    # (same bf16 MXU-operand policy; residual difference is rounding-order only)
    ref = reference_forward(params, graphs[0])
    err = float(jnp.max(jnp.abs(out - ref)))
    assert err < 0.15, f"max |kernel - reference| = {err}"

    # batched path: 2 graphs in one pallas_call over a "parallel" grid axis
    out_b = encode_process_decode_forward_batched(fused_params, graphs)
    out_b = jax.block_until_ready(out_b)
    assert out_b.shape == (2, TIME_WINDOW, NUM_NODES, OUTPUT_SIZE), out_b.shape
    assert bool(jnp.all(jnp.isfinite(out_b)))

    print("KERNEL_OK")
</pallas_src>

<mosaic_0001>
module attributes {stable_mosaic.version = 11 : i64} {
  func.func @_fused_epd_kernel(%arg0: i32, %arg1: memref<1x192x16xf32, #tpu.memory_space<vmem>>, %arg2: memref<1x192x128xbf16, #tpu.memory_space<vmem>>, %arg3: memref<13x32x32xbf16, #tpu.memory_space<vmem>>, %arg4: memref<2x2x32x32xbf16, #tpu.memory_space<vmem>>, %arg5: memref<6x4x32xf32, #tpu.memory_space<vmem>>, %arg6: memref<66x32xf32, #tpu.memory_space<vmem>>, %arg7: memref<1x64x10xf32, #tpu.memory_space<vmem>>) attributes {dimension_semantics = [#tpu.dimension_semantics<parallel>], iteration_bounds = array<i64: 1>, scalar_prefetch = 0 : i64, scratch_operands = 0 : i64, tpu.core_type = #tpu.core_type<tc>, window_params = [{transform_indices = @transform_0, window_bounds = array<i64: 1, 192, 16>}, {transform_indices = @transform_1, window_bounds = array<i64: 1, 192, 128>}, {pipeline_mode = #tpu.pipeline_mode<synchronous>, transform_indices = @transform_2, window_bounds = array<i64: 13, 32, 32>}, {pipeline_mode = #tpu.pipeline_mode<synchronous>, transform_indices = @transform_3, window_bounds = array<i64: 2, 2, 32, 32>}, {pipeline_mode = #tpu.pipeline_mode<synchronous>, transform_indices = @transform_4, window_bounds = array<i64: 6, 4, 32>}, {pipeline_mode = #tpu.pipeline_mode<synchronous>, transform_indices = @transform_5, window_bounds = array<i64: 66, 32>}, {transform_indices = @transform_6, window_bounds = array<i64: 1, 64, 10>}]} {
    %c0 = arith.constant 0 : index
    %c0_0 = arith.constant 0 : index
    %c0_1 = arith.constant 0 : index
    %0 = vector.load %arg5[%c0, %c0_0, %c0_1] : memref<6x4x32xf32, #tpu.memory_space<vmem>>, vector<1x4x32xf32>
    %1 = vector.shape_cast %0 : vector<1x4x32xf32> to vector<4x32xf32>
    %c0_2 = arith.constant 0 : index
    %c0_3 = arith.constant 0 : index
    %c0_4 = arith.constant 0 : index
    %2 = vector.load %arg1[%c0_2, %c0_3, %c0_4] : memref<1x192x16xf32, #tpu.memory_space<vmem>>, vector<1x64x16xf32>
    %3 = vector.shape_cast %2 : vector<1x64x16xf32> to vector<64x16xf32>
    %c0_5 = arith.constant 0 : index
    %c0_6 = arith.constant 0 : index
    %c0_7 = arith.constant 0 : index
    %4 = vector.load %arg3[%c0_5, %c0_6, %c0_7] : memref<13x32x32xbf16, #tpu.memory_space<vmem>>, vector<1x16x32xbf16>
    %5 = vector.shape_cast %4 : vector<1x16x32xbf16> to vector<16x32xbf16>
    %6 = arith.truncf %3 : vector<64x16xf32> to vector<64x16xbf16>
    %cst = arith.constant dense<0.000000e+00> : vector<64x32xf32>
    %7 = tpu.matmul %6, %5, %cst {dimension_numbers = #tpu.dot_dimension_numbers<[1], [0], [0], [1], [0, 0, 1, 1], [], []>} : vector<64x16xbf16>, vector<16x32xbf16>, vector<64x32xf32> -> vector<64x32xf32>
    %8 = vector.extract_strided_slice %1 {offsets = [0, 0], sizes = [1, 32], strides = [1, 1]} : vector<4x32xf32> to vector<1x32xf32>
    %9 = vector.broadcast %8 : vector<1x32xf32> to vector<64x32xf32>
    %10 = arith.addf %7, %9 : vector<64x32xf32>
    %c1 = arith.constant 1 : index
    %c0_8 = arith.constant 0 : index
    %c0_9 = arith.constant 0 : index
    %11 = vector.load %arg3[%c1, %c0_8, %c0_9] : memref<13x32x32xbf16, #tpu.memory_space<vmem>>, vector<1x32x32xbf16>
    %12 = vector.shape_cast %11 : vector<1x32x32xbf16> to vector<32x32xbf16>
    %cst_10 = arith.constant 0.000000e+00 : f32
    %13 = vector.broadcast %cst_10 : f32 to vector<64x32xf32>
    %14 = arith.maximumf %10, %13 : vector<64x32xf32>
    %15 = arith.truncf %14 : vector<64x32xf32> to vector<64x32xbf16>
    %cst_11 = arith.constant dense<0.000000e+00> : vector<64x32xf32>
    %16 = tpu.matmul %15, %12, %cst_11 {dimension_numbers = #tpu.dot_dimension_numbers<[1], [0], [0], [1], [0, 0, 1, 1], [], []>} : vector<64x32xbf16>, vector<32x32xbf16>, vector<64x32xf32> -> vector<64x32xf32>
    %17 = vector.extract_strided_slice %1 {offsets = [1, 0], sizes = [1, 32], strides = [1, 1]} : vector<4x32xf32> to vector<1x32xf32>
    %18 = vector.broadcast %17 : vector<1x32xf32> to vector<64x32xf32>
    %19 = arith.addf %16, %18 : vector<64x32xf32>
    %cst_12 = arith.constant 0.000000e+00 : f32
    %20 = vector.broadcast %cst_12 : f32 to vector<64x32xf32>
    %21 = arith.maximumf %19, %20 : vector<64x32xf32>
    %22 = vector.extract_strided_slice %1 {offsets = [2, 0], sizes = [1, 32], strides = [1, 1]} : vector<4x32xf32> to vector<1x32xf32>
    %23 = vector.extract_strided_slice %1 {offsets = [3, 0], sizes = [1, 32], strides = [1, 1]} : vector<4x32xf32> to vector<1x32xf32>
    %cst_13 = arith.constant dense<0.000000e+00> : vector<64xf32>
    %24 = vector.multi_reduction <add>, %21, %cst_13 [1] : vector<64x32xf32> to vector<64xf32>
    %25 = vector.shape_cast %24 : vector<64xf32> to vector<64x1xf32>
    %cst_14 = arith.constant 3.200000e+01 : f32
    %26 = vector.broadcast %cst_14 : f32 to vector<64x1xf32>
    %27 = arith.divf %25, %26 : vector<64x1xf32>
    %28 = vector.broadcast %27 : vector<64x1xf32> to vector<64x32xf32>
    %29 = arith.subf %21, %28 : vector<64x32xf32>
    %30 = arith.mulf %29, %29 : vector<64x32xf32>
    %cst_15 = arith.constant dense<0.000000e+00> : vector<64xf32>
    %31 = vector.multi_reduction <add>, %30, %cst_15 [1] : vector<64x32xf32> to vector<64xf32>
    %32 = vector.shape_cast %31 : vector<64xf32> to vector<64x1xf32>
    %cst_16 = arith.constant 3.200000e+01 : f32
    %33 = vector.broadcast %cst_16 : f32 to vector<64x1xf32>
    %34 = arith.divf %32, %33 : vector<64x1xf32>
    %cst_17 = arith.constant 9.99999974E-6 : f32
    %35 = vector.broadcast %cst_17 : f32 to vector<64x1xf32>
    %36 = arith.addf %34, %35 : vector<64x1xf32>
    %37 = math.rsqrt %36 : vector<64x1xf32>
    %38 = vector.broadcast %37 : vector<64x1xf32> to vector<64x32xf32>
    %39 = arith.mulf %29, %38 : vector<64x32xf32>
    %40 = vector.broadcast %22 : vector<1x32xf32> to vector<64x32xf32>
    %41 = arith.mulf %39, %40 : vector<64x32xf32>
    %42 = vector.broadcast %23 : vector<1x32xf32> to vector<64x32xf32>
    %43 = arith.addf %41, %42 : vector<64x32xf32>
    %c1_18 = arith.constant 1 : index
    %c0_19 = arith.constant 0 : index
    %c0_20 = arith.constant 0 : index
    %44 = vector.load %arg5[%c1_18, %c0_19, %c0_20] : memref<6x4x32xf32, #tpu.memory_space<vmem>>, vector<1x4x32xf32>
    %45 = vector.shape_cast %44 : vector<1x4x32xf32> to vector<4x32xf32>
    %c0_21 = arith.constant 0 : index
    %c64 = arith.constant 64 : index
    %c0_22 = arith.constant 0 : index
    %46 = vector.load %arg1[%c0_21, %c64, %c0_22] : memref<1x192x16xf32, #tpu.memory_space<vmem>>, vector<1x128x16xf32>
    %47 = vector.shape_cast %46 : vector<1x128x16xf32> to vector<128x16xf32>
    %c0_23 = arith.constant 0 : index
    %c16 = arith.constant 16 : index
    %c0_24 = arith.constant 0 : index
    %48 = vector.load %arg3[%c0_23, %c16, %c0_24] : memref<13x32x32xbf16, #tpu.memory_space<vmem>>, vector<1x16x32xbf16>
    %49 = vector.shape_cast %48 : vector<1x16x32xbf16> to vector<16x32xbf16>
    %50 = arith.truncf %47 : vector<128x16xf32> to vector<128x16xbf16>
    %cst_25 = arith.constant dense<0.000000e+00> : vector<128x32xf32>
    %51 = tpu.matmul %50, %49, %cst_25 {dimension_numbers = #tpu.dot_dimension_numbers<[1], [0], [0], [1], [0, 0, 1, 1], [], []>} : vector<128x16xbf16>, vector<16x32xbf16>, vector<128x32xf32> -> vector<128x32xf32>
    %52 = vector.extract_strided_slice %45 {offsets = [0, 0], sizes = [1, 32], strides = [1, 1]} : vector<4x32xf32> to vector<1x32xf32>
    %53 = vector.broadcast %52 : vector<1x32xf32> to vector<128x32xf32>
    %54 = arith.addf %51, %53 : vector<128x32xf32>
    %c2 = arith.constant 2 : index
    %c0_26 = arith.constant 0 : index
    %c0_27 = arith.constant 0 : index
    %55 = vector.load %arg3[%c2, %c0_26, %c0_27] : memref<13x32x32xbf16, #tpu.memory_space<vmem>>, vector<1x32x32xbf16>
    %56 = vector.shape_cast %55 : vector<1x32x32xbf16> to vector<32x32xbf16>
    %cst_28 = arith.constant 0.000000e+00 : f32
    %57 = vector.broadcast %cst_28 : f32 to vector<128x32xf32>
    %58 = arith.maximumf %54, %57 : vector<128x32xf32>
    %59 = arith.truncf %58 : vector<128x32xf32> to vector<128x32xbf16>
    %cst_29 = arith.constant dense<0.000000e+00> : vector<128x32xf32>
    %60 = tpu.matmul %59, %56, %cst_29 {dimension_numbers = #tpu.dot_dimension_numbers<[1], [0], [0], [1], [0, 0, 1, 1], [], []>} : vector<128x32xbf16>, vector<32x32xbf16>, vector<128x32xf32> -> vector<128x32xf32>
    %61 = vector.extract_strided_slice %45 {offsets = [1, 0], sizes = [1, 32], strides = [1, 1]} : vector<4x32xf32> to vector<1x32xf32>
    %62 = vector.broadcast %61 : vector<1x32xf32> to vector<128x32xf32>
    %63 = arith.addf %60, %62 : vector<128x32xf32>
    %cst_30 = arith.constant 0.000000e+00 : f32
    %64 = vector.broadcast %cst_30 : f32 to vector<128x32xf32>
    %65 = arith.maximumf %63, %64 : vector<128x32xf32>
    %66 = vector.extract_strided_slice %45 {offsets = [2, 0], sizes = [1, 32], strides = [1, 1]} : vector<4x32xf32> to vector<1x32xf32>
    %67 = vector.extract_strided_slice %45 {offsets = [3, 0], sizes = [1, 32], strides = [1, 1]} : vector<4x32xf32> to vector<1x32xf32>
    %cst_31 = arith.constant dense<0.000000e+00> : vector<128xf32>
    %68 = vector.multi_reduction <add>, %65, %cst_31 [1] : vector<128x32xf32> to vector<128xf32>
    %69 = vector.shape_cast %68 : vector<128xf32> to vector<128x1xf32>
    %cst_32 = arith.constant 3.200000e+01 : f32
    %70 = vector.broadcast %cst_32 : f32 to vector<128x1xf32>
    %71 = arith.divf %69, %70 : vector<128x1xf32>
    %72 = vector.broadcast %71 : vector<128x1xf32> to vector<128x32xf32>
    %73 = arith.subf %65, %72 : vector<128x32xf32>
    %74 = arith.mulf %73, %73 : vector<128x32xf32>
    %cst_33 = arith.constant dense<0.000000e+00> : vector<128xf32>
    %75 = vector.multi_reduction <add>, %74, %cst_33 [1] : vector<128x32xf32> to vector<128xf32>
    %76 = vector.shape_cast %75 : vector<128xf32> to vector<128x1xf32>
    %cst_34 = arith.constant 3.200000e+01 : f32
    %77 = vector.broadcast %cst_34 : f32 to vector<128x1xf32>
    %78 = arith.divf %76, %77 : vector<128x1xf32>
    %cst_35 = arith.constant 9.99999974E-6 : f32
    %79 = vector.broadcast %cst_35 : f32 to vector<128x1xf32>
    %80 = arith.addf %78, %79 : vector<128x1xf32>
    %81 = math.rsqrt %80 : vector<128x1xf32>
    %82 = vector.broadcast %81 : vector<128x1xf32> to vector<128x32xf32>
    %83 = arith.mulf %73, %82 : vector<128x32xf32>
    %84 = vector.broadcast %66 : vector<1x32xf32> to vector<128x32xf32>
    %85 = arith.mulf %83, %84 : vector<128x32xf32>
    %86 = vector.broadcast %67 : vector<1x32xf32> to vector<128x32xf32>
    %87 = arith.addf %85, %86 : vector<128x32xf32>
    %c0_36 = arith.constant 0 : index
    %c0_37 = arith.constant 0 : index
    %c0_38 = arith.constant 0 : index
    %c0_39 = arith.constant 0 : index
    %88 = vector.load %arg4[%c0_36, %c0_37, %c0_38, %c0_39] : memref<2x2x32x32xbf16, #tpu.memory_space<vmem>>, vector<1x1x32x32xbf16>
    %89 = vector.shape_cast %88 : vector<1x1x32x32xbf16> to vector<32x32xbf16>
    %90 = arith.truncf %43 : vector<64x32xf32> to vector<64x32xbf16>
    %cst_40 = arith.constant dense<0.000000e+00> : vector<64x32xf32>
    %91 = tpu.matmul %90, %89, %cst_40 {dimension_numbers = #tpu.dot_dimension_numbers<[1], [0], [0], [1], [0, 0, 1, 1], [], []>} : vector<64x32xbf16>, vector<32x32xbf16>, vector<64x32xf32> -> vector<64x32xf32>
    %c0_41 = arith.constant 0 : index
    %c1_42 = arith.constant 1 : index
    %c0_43 = arith.constant 0 : index
    %c0_44 = arith.constant 0 : index
    %92 = vector.load %arg4[%c0_41, %c1_42, %c0_43, %c0_44] : memref<2x2x32x32xbf16, #tpu.memory_space<vmem>>, vector<1x1x32x32xbf16>
    %93 = vector.shape_cast %92 : vector<1x1x32x32xbf16> to vector<32x32xbf16>
    %94 = arith.truncf %43 : vector<64x32xf32> to vector<64x32xbf16>
    %cst_45 = arith.constant dense<0.000000e+00> : vector<64x32xf32>
    %95 = tpu.matmul %94, %93, %cst_45 {dimension_numbers = #tpu.dot_dimension_numbers<[1], [0], [0], [1], [0, 0, 1, 1], [], []>} : vector<64x32xbf16>, vector<32x32xbf16>, vector<64x32xf32> -> vector<64x32xf32>
    %96 = tpu.concatenate %91, %95 in 0 : vector<64x32xf32>, vector<64x32xf32> -> vector<128x32xf32>
    %c0_46 = arith.constant 0 : index
    %c0_47 = arith.constant 0 : index
    %c0_48 = arith.constant 0 : index
    %97 = vector.load %arg2[%c0_46, %c0_47, %c0_48] : memref<1x192x128xbf16, #tpu.memory_space<vmem>>, vector<1x128x128xbf16>
    %98 = vector.shape_cast %97 : vector<1x128x128xbf16> to vector<128x128xbf16>
    %99 = arith.truncf %96 : vector<128x32xf32> to vector<128x32xbf16>
    %cst_49 = arith.constant dense<0.000000e+00> : vector<128x32xf32>
    %100 = tpu.matmul %98, %99, %cst_49 {dimension_numbers = #tpu.dot_dimension_numbers<[1], [0], [0], [1], [0, 0, 1, 1], [], []>} : vector<128x128xbf16>, vector<128x32xbf16>, vector<128x32xf32> -> vector<128x32xf32>
    %c2_50 = arith.constant 2 : index
    %c0_51 = arith.constant 0 : index
    %c0_52 = arith.constant 0 : index
    %101 = vector.load %arg5[%c2_50, %c0_51, %c0_52] : memref<6x4x32xf32, #tpu.memory_space<vmem>>, vector<1x4x32xf32>
    %102 = vector.shape_cast %101 : vector<1x4x32xf32> to vector<4x32xf32>
    %c3 = arith.constant 3 : index
    %c0_53 = arith.constant 0 : index
    %c0_54 = arith.constant 0 : index
    %103 = vector.load %arg3[%c3, %c0_53, %c0_54] : memref<13x32x32xbf16, #tpu.memory_space<vmem>>, vector<1x32x32xbf16>
    %104 = vector.shape_cast %103 : vector<1x32x32xbf16> to vector<32x32xbf16>
    %105 = arith.truncf %87 : vector<128x32xf32> to vector<128x32xbf16>
    %cst_55 = arith.constant dense<0.000000e+00> : vector<128x32xf32>
    %106 = tpu.matmul %105, %104, %cst_55 {dimension_numbers = #tpu.dot_dimension_numbers<[1], [0], [0], [1], [0, 0, 1, 1], [], []>} : vector<128x32xbf16>, vector<32x32xbf16>, vector<128x32xf32> -> vector<128x32xf32>
    %107 = arith.addf %100, %106 : vector<128x32xf32>
    %108 = vector.extract_strided_slice %102 {offsets = [0, 0], sizes = [1, 32], strides = [1, 1]} : vector<4x32xf32> to vector<1x32xf32>
    %109 = vector.broadcast %108 : vector<1x32xf32> to vector<128x32xf32>
    %110 = arith.addf %107, %109 : vector<128x32xf32>
    %c4 = arith.constant 4 : index
    %c0_56 = arith.constant 0 : index
    %c0_57 = arith.constant 0 : index
    %111 = vector.load %arg3[%c4, %c0_56, %c0_57] : memref<13x32x32xbf16, #tpu.memory_space<vmem>>, vector<1x32x32xbf16>
    %112 = vector.shape_cast %111 : vector<1x32x32xbf16> to vector<32x32xbf16>
    %cst_58 = arith.constant 0.000000e+00 : f32
    %113 = vector.broadcast %cst_58 : f32 to vector<128x32xf32>
    %114 = arith.maximumf %110, %113 : vector<128x32xf32>
    %115 = arith.truncf %114 : vector<128x32xf32> to vector<128x32xbf16>
    %cst_59 = arith.constant dense<0.000000e+00> : vector<128x32xf32>
    %116 = tpu.matmul %115, %112, %cst_59 {dimension_numbers = #tpu.dot_dimension_numbers<[1], [0], [0], [1], [0, 0, 1, 1], [], []>} : vector<128x32xbf16>, vector<32x32xbf16>, vector<128x32xf32> -> vector<128x32xf32>
    %117 = vector.extract_strided_slice %102 {offsets = [1, 0], sizes = [1, 32], strides = [1, 1]} : vector<4x32xf32> to vector<1x32xf32>
    %118 = vector.broadcast %117 : vector<1x32xf32> to vector<128x32xf32>
    %119 = arith.addf %116, %118 : vector<128x32xf32>
    %cst_60 = arith.constant 0.000000e+00 : f32
    %120 = vector.broadcast %cst_60 : f32 to vector<128x32xf32>
    %121 = arith.maximumf %119, %120 : vector<128x32xf32>
    %122 = vector.extract_strided_slice %102 {offsets = [2, 0], sizes = [1, 32], strides = [1, 1]} : vector<4x32xf32> to vector<1x32xf32>
    %123 = vector.extract_strided_slice %102 {offsets = [3, 0], sizes = [1, 32], strides = [1, 1]} : vector<4x32xf32> to vector<1x32xf32>
    %cst_61 = arith.constant dense<0.000000e+00> : vector<128xf32>
    %124 = vector.multi_reduction <add>, %121, %cst_61 [1] : vector<128x32xf32> to vector<128xf32>
    %125 = vector.shape_cast %124 : vector<128xf32> to vector<128x1xf32>
    %cst_62 = arith.constant 3.200000e+01 : f32
    %126 = vector.broadcast %cst_62 : f32 to vector<128x1xf32>
    %127 = arith.divf %125, %126 : vector<128x1xf32>
    %128 = vector.broadcast %127 : vector<128x1xf32> to vector<128x32xf32>
    %129 = arith.subf %121, %128 : vector<128x32xf32>
    %130 = arith.mulf %129, %129 : vector<128x32xf32>
    %cst_63 = arith.constant dense<0.000000e+00> : vector<128xf32>
    %131 = vector.multi_reduction <add>, %130, %cst_63 [1] : vector<128x32xf32> to vector<128xf32>
    %132 = vector.shape_cast %131 : vector<128xf32> to vector<128x1xf32>
    %cst_64 = arith.constant 3.200000e+01 : f32
    %133 = vector.broadcast %cst_64 : f32 to vector<128x1xf32>
    %134 = arith.divf %132, %133 : vector<128x1xf32>
    %cst_65 = arith.constant 9.99999974E-6 : f32
    %135 = vector.broadcast %cst_65 : f32 to vector<128x1xf32>
    %136 = arith.addf %134, %135 : vector<128x1xf32>
    %137 = math.rsqrt %136 : vector<128x1xf32>
    %138 = vector.broadcast %137 : vector<128x1xf32> to vector<128x32xf32>
    %139 = arith.mulf %129, %138 : vector<128x32xf32>
    %140 = vector.broadcast %122 : vector<1x32xf32> to vector<128x32xf32>
    %141 = arith.mulf %139, %140 : vector<128x32xf32>
    %142 = vector.broadcast %123 : vector<1x32xf32> to vector<128x32xf32>
    %143 = arith.addf %141, %142 : vector<128x32xf32>
    %c0_66 = arith.constant 0 : index
    %c128 = arith.constant 128 : index
    %c0_67 = arith.constant 0 : index
    %144 = vector.load %arg2[%c0_66, %c128, %c0_67] : memref<1x192x128xbf16, #tpu.memory_space<vmem>>, vector<1x64x128xbf16>
    %145 = vector.shape_cast %144 : vector<1x64x128xbf16> to vector<64x128xbf16>
    %146 = arith.truncf %143 : vector<128x32xf32> to vector<128x32xbf16>
    %cst_68 = arith.constant dense<0.000000e+00> : vector<64x32xf32>
    %147 = tpu.matmul %145, %146, %cst_68 {dimension_numbers = #tpu.dot_dimension_numbers<[1], [0], [0], [1], [0, 0, 1, 1], [], []>} : vector<64x128xbf16>, vector<128x32xbf16>, vector<64x32xf32> -> vector<64x32xf32>
    %c3_69 = arith.constant 3 : index
    %c0_70 = arith.constant 0 : index
    %c0_71 = arith.constant 0 : index
    %148 = vector.load %arg5[%c3_69, %c0_70, %c0_71] : memref<6x4x32xf32, #tpu.memory_space<vmem>>, vector<1x4x32xf32>
    %149 = vector.shape_cast %148 : vector<1x4x32xf32> to vector<4x32xf32>
    %c5 = arith.constant 5 : index
    %c0_72 = arith.constant 0 : index
    %c0_73 = arith.constant 0 : index
    %150 = vector.load %arg3[%c5, %c0_72, %c0_73] : memref<13x32x32xbf16, #tpu.memory_space<vmem>>, vector<1x32x32xbf16>
    %151 = vector.shape_cast %150 : vector<1x32x32xbf16> to vector<32x32xbf16>
    %152 = arith.truncf %43 : vector<64x32xf32> to vector<64x32xbf16>
    %cst_74 = arith.constant dense<0.000000e+00> : vector<64x32xf32>
    %153 = tpu.matmul %152, %151, %cst_74 {dimension_numbers = #tpu.dot_dimension_numbers<[1], [0], [0], [1], [0, 0, 1, 1], [], []>} : vector<64x32xbf16>, vector<32x32xbf16>, vector<64x32xf32> -> vector<64x32xf32>
    %c6 = arith.constant 6 : index
    %c0_75 = arith.constant 0 : index
    %c0_76 = arith.constant 0 : index
    %154 = vector.load %arg3[%c6, %c0_75, %c0_76] : memref<13x32x32xbf16, #tpu.memory_space<vmem>>, vector<1x32x32xbf16>
    %155 = vector.shape_cast %154 : vector<1x32x32xbf16> to vector<32x32xbf16>
    %156 = arith.truncf %147 : vector<64x32xf32> to vector<64x32xbf16>
    %cst_77 = arith.constant dense<0.000000e+00> : vector<64x32xf32>
    %157 = tpu.matmul %156, %155, %cst_77 {dimension_numbers = #tpu.dot_dimension_numbers<[1], [0], [0], [1], [0, 0, 1, 1], [], []>} : vector<64x32xbf16>, vector<32x32xbf16>, vector<64x32xf32> -> vector<64x32xf32>
    %158 = arith.addf %153, %157 : vector<64x32xf32>
    %159 = vector.extract_strided_slice %149 {offsets = [0, 0], sizes = [1, 32], strides = [1, 1]} : vector<4x32xf32> to vector<1x32xf32>
    %160 = vector.broadcast %159 : vector<1x32xf32> to vector<64x32xf32>
    %161 = arith.addf %158, %160 : vector<64x32xf32>
    %c7 = arith.constant 7 : index
    %c0_78 = arith.constant 0 : index
    %c0_79 = arith.constant 0 : index
    %162 = vector.load %arg3[%c7, %c0_78, %c0_79] : memref<13x32x32xbf16, #tpu.memory_space<vmem>>, vector<1x32x32xbf16>
    %163 = vector.shape_cast %162 : vector<1x32x32xbf16> to vector<32x32xbf16>
    %cst_80 = arith.constant 0.000000e+00 : f32
    %164 = vector.broadcast %cst_80 : f32 to vector<64x32xf32>
    %165 = arith.maximumf %161, %164 : vector<64x32xf32>
    %166 = arith.truncf %165 : vector<64x32xf32> to vector<64x32xbf16>
    %cst_81 = arith.constant dense<0.000000e+00> : vector<64x32xf32>
    %167 = tpu.matmul %166, %163, %cst_81 {dimension_numbers = #tpu.dot_dimension_numbers<[1], [0], [0], [1], [0, 0, 1, 1], [], []>} : vector<64x32xbf16>, vector<32x32xbf16>, vector<64x32xf32> -> vector<64x32xf32>
    %168 = vector.extract_strided_slice %149 {offsets = [1, 0], sizes = [1, 32], strides = [1, 1]} : vector<4x32xf32> to vector<1x32xf32>
    %169 = vector.broadcast %168 : vector<1x32xf32> to vector<64x32xf32>
    %170 = arith.addf %167, %169 : vector<64x32xf32>
    %cst_82 = arith.constant 0.000000e+00 : f32
    %171 = vector.broadcast %cst_82 : f32 to vector<64x32xf32>
    %172 = arith.maximumf %170, %171 : vector<64x32xf32>
    %173 = vector.extract_strided_slice %149 {offsets = [2, 0], sizes = [1, 32], strides = [1, 1]} : vector<4x32xf32> to vector<1x32xf32>
    %174 = vector.extract_strided_slice %149 {offsets = [3, 0], sizes = [1, 32], strides = [1, 1]} : vector<4x32xf32> to vector<1x32xf32>
    %cst_83 = arith.constant dense<0.000000e+00> : vector<64xf32>
    %175 = vector.multi_reduction <add>, %172, %cst_83 [1] : vector<64x32xf32> to vector<64xf32>
    %176 = vector.shape_cast %175 : vector<64xf32> to vector<64x1xf32>
    %cst_84 = arith.constant 3.200000e+01 : f32
    %177 = vector.broadcast %cst_84 : f32 to vector<64x1xf32>
    %178 = arith.divf %176, %177 : vector<64x1xf32>
    %179 = vector.broadcast %178 : vector<64x1xf32> to vector<64x32xf32>
    %180 = arith.subf %172, %179 : vector<64x32xf32>
    %181 = arith.mulf %180, %180 : vector<64x32xf32>
    %cst_85 = arith.constant dense<0.000000e+00> : vector<64xf32>
    %182 = vector.multi_reduction <add>, %181, %cst_85 [1] : vector<64x32xf32> to vector<64xf32>
    %183 = vector.shape_cast %182 : vector<64xf32> to vector<64x1xf32>
    %cst_86 = arith.constant 3.200000e+01 : f32
    %184 = vector.broadcast %cst_86 : f32 to vector<64x1xf32>
    %185 = arith.divf %183, %184 : vector<64x1xf32>
    %cst_87 = arith.constant 9.99999974E-6 : f32
    %186 = vector.broadcast %cst_87 : f32 to vector<64x1xf32>
    %187 = arith.addf %185, %186 : vector<64x1xf32>
    %188 = math.rsqrt %187 : vector<64x1xf32>
    %189 = vector.broadcast %188 : vector<64x1xf32> to vector<64x32xf32>
    %190 = arith.mulf %180, %189 : vector<64x32xf32>
    %191 = vector.broadcast %173 : vector<1x32xf32> to vector<64x32xf32>
    %192 = arith.mulf %190, %191 : vector<64x32xf32>
    %193 = vector.broadcast %174 : vector<1x32xf32> to vector<64x32xf32>
    %194 = arith.addf %192, %193 : vector<64x32xf32>
    %195 = arith.addf %43, %194 : vector<64x32xf32>
    %196 = arith.addf %87, %143 : vector<128x32xf32>
    %c1_88 = arith.constant 1 : index
    %c0_89 = arith.constant 0 : index
    %c0_90 = arith.constant 0 : index
    %c0_91 = arith.constant 0 : index
    %197 = vector.load %arg4[%c1_88, %c0_89, %c0_90, %c0_91] : memref<2x2x32x32xbf16, #tpu.memory_space<vmem>>, vector<1x1x32x32xbf16>
    %198 = vector.shape_cast %197 : vector<1x1x32x32xbf16> to vector<32x32xbf16>
    %199 = arith.truncf %195 : vector<64x32xf32> to vector<64x32xbf16>
    %cst_92 = arith.constant dense<0.000000e+00> : vector<64x32xf32>
    %200 = tpu.matmul %199, %198, %cst_92 {dimension_numbers = #tpu.dot_dimension_numbers<[1], [0], [0], [1], [0, 0, 1, 1], [], []>} : vector<64x32xbf16>, vector<32x32xbf16>, vector<64x32xf32> -> vector<64x32xf32>
    %c1_93 = arith.constant 1 : index
    %c1_94 = arith.constant 1 : index
    %c0_95 = arith.constant 0 : index
    %c0_96 = arith.constant 0 : index
    %201 = vector.load %arg4[%c1_93, %c1_94, %c0_95, %c0_96] : memref<2x2x32x32xbf16, #tpu.memory_space<vmem>>, vector<1x1x32x32xbf16>
    %202 = vector.shape_cast %201 : vector<1x1x32x32xbf16> to vector<32x32xbf16>
    %203 = arith.truncf %195 : vector<64x32xf32> to vector<64x32xbf16>
    %cst_97 = arith.constant dense<0.000000e+00> : vector<64x32xf32>
    %204 = tpu.matmul %203, %202, %cst_97 {dimension_numbers = #tpu.dot_dimension_numbers<[1], [0], [0], [1], [0, 0, 1, 1], [], []>} : vector<64x32xbf16>, vector<32x32xbf16>, vector<64x32xf32> -> vector<64x32xf32>
    %205 = tpu.concatenate %200, %204 in 0 : vector<64x32xf32>, vector<64x32xf32> -> vector<128x32xf32>
    %c0_98 = arith.constant 0 : index
    %c0_99 = arith.constant 0 : index
    %c0_100 = arith.constant 0 : index
    %206 = vector.load %arg2[%c0_98, %c0_99, %c0_100] : memref<1x192x128xbf16, #tpu.memory_space<vmem>>, vector<1x128x128xbf16>
    %207 = vector.shape_cast %206 : vector<1x128x128xbf16> to vector<128x128xbf16>
    %208 = arith.truncf %205 : vector<128x32xf32> to vector<128x32xbf16>
    %cst_101 = arith.constant dense<0.000000e+00> : vector<128x32xf32>
    %209 = tpu.matmul %207, %208, %cst_101 {dimension_numbers = #tpu.dot_dimension_numbers<[1], [0], [0], [1], [0, 0, 1, 1], [], []>} : vector<128x128xbf16>, vector<128x32xbf16>, vector<128x32xf32> -> vector<128x32xf32>
    %c4_102 = arith.constant 4 : index
    %c0_103 = arith.constant 0 : index
    %c0_104 = arith.constant 0 : index
    %210 = vector.load %arg5[%c4_102, %c0_103, %c0_104] : memref<6x4x32xf32, #tpu.memory_space<vmem>>, vector<1x4x32xf32>
    %211 = vector.shape_cast %210 : vector<1x4x32xf32> to vector<4x32xf32>
    %c8 = arith.constant 8 : index
    %c0_105 = arith.constant 0 : index
    %c0_106 = arith.constant 0 : index
    %212 = vector.load %arg3[%c8, %c0_105, %c0_106] : memref<13x32x32xbf16, #tpu.memory_space<vmem>>, vector<1x32x32xbf16>
    %213 = vector.shape_cast %212 : vector<1x32x32xbf16> to vector<32x32xbf16>
    %214 = arith.truncf %196 : vector<128x32xf32> to vector<128x32xbf16>
    %cst_107 = arith.constant dense<0.000000e+00> : vector<128x32xf32>
    %215 = tpu.matmul %214, %213, %cst_107 {dimension_numbers = #tpu.dot_dimension_numbers<[1], [0], [0], [1], [0, 0, 1, 1], [], []>} : vector<128x32xbf16>, vector<32x32xbf16>, vector<128x32xf32> -> vector<128x32xf32>
    %216 = arith.addf %209, %215 : vector<128x32xf32>
    %217 = vector.extract_strided_slice %211 {offsets = [0, 0], sizes = [1, 32], strides = [1, 1]} : vector<4x32xf32> to vector<1x32xf32>
    %218 = vector.broadcast %217 : vector<1x32xf32> to vector<128x32xf32>
    %219 = arith.addf %216, %218 : vector<128x32xf32>
    %c9 = arith.constant 9 : index
    %c0_108 = arith.constant 0 : index
    %c0_109 = arith.constant 0 : index
    %220 = vector.load %arg3[%c9, %c0_108, %c0_109] : memref<13x32x32xbf16, #tpu.memory_space<vmem>>, vector<1x32x32xbf16>
    %221 = vector.shape_cast %220 : vector<1x32x32xbf16> to vector<32x32xbf16>
    %cst_110 = arith.constant 0.000000e+00 : f32
    %222 = vector.broadcast %cst_110 : f32 to vector<128x32xf32>
    %223 = arith.maximumf %219, %222 : vector<128x32xf32>
    %224 = arith.truncf %223 : vector<128x32xf32> to vector<128x32xbf16>
    %cst_111 = arith.constant dense<0.000000e+00> : vector<128x32xf32>
    %225 = tpu.matmul %224, %221, %cst_111 {dimension_numbers = #tpu.dot_dimension_numbers<[1], [0], [0], [1], [0, 0, 1, 1], [], []>} : vector<128x32xbf16>, vector<32x32xbf16>, vector<128x32xf32> -> vector<128x32xf32>
    %226 = vector.extract_strided_slice %211 {offsets = [1, 0], sizes = [1, 32], strides = [1, 1]} : vector<4x32xf32> to vector<1x32xf32>
    %227 = vector.broadcast %226 : vector<1x32xf32> to vector<128x32xf32>
    %228 = arith.addf %225, %227 : vector<128x32xf32>
    %cst_112 = arith.constant 0.000000e+00 : f32
    %229 = vector.broadcast %cst_112 : f32 to vector<128x32xf32>
    %230 = arith.maximumf %228, %229 : vector<128x32xf32>
    %231 = vector.extract_strided_slice %211 {offsets = [2, 0], sizes = [1, 32], strides = [1, 1]} : vector<4x32xf32> to vector<1x32xf32>
    %232 = vector.extract_strided_slice %211 {offsets = [3, 0], sizes = [1, 32], strides = [1, 1]} : vector<4x32xf32> to vector<1x32xf32>
    %cst_113 = arith.constant dense<0.000000e+00> : vector<128xf32>
    %233 = vector.multi_reduction <add>, %230, %cst_113 [1] : vector<128x32xf32> to vector<128xf32>
    %234 = vector.shape_cast %233 : vector<128xf32> to vector<128x1xf32>
    %cst_114 = arith.constant 3.200000e+01 : f32
    %235 = vector.broadcast %cst_114 : f32 to vector<128x1xf32>
    %236 = arith.divf %234, %235 : vector<128x1xf32>
    %237 = vector.broadcast %236 : vector<128x1xf32> to vector<128x32xf32>
    %238 = arith.subf %230, %237 : vector<128x32xf32>
    %239 = arith.mulf %238, %238 : vector<128x32xf32>
    %cst_115 = arith.constant dense<0.000000e+00> : vector<128xf32>
    %240 = vector.multi_reduction <add>, %239, %cst_115 [1] : vector<128x32xf32> to vector<128xf32>
    %241 = vector.shape_cast %240 : vector<128xf32> to vector<128x1xf32>
    %cst_116 = arith.constant 3.200000e+01 : f32
    %242 = vector.broadcast %cst_116 : f32 to vector<128x1xf32>
    %243 = arith.divf %241, %242 : vector<128x1xf32>
    %cst_117 = arith.constant 9.99999974E-6 : f32
    %244 = vector.broadcast %cst_117 : f32 to vector<128x1xf32>
    %245 = arith.addf %243, %244 : vector<128x1xf32>
    %246 = math.rsqrt %245 : vector<128x1xf32>
    %247 = vector.broadcast %246 : vector<128x1xf32> to vector<128x32xf32>
    %248 = arith.mulf %238, %247 : vector<128x32xf32>
    %249 = vector.broadcast %231 : vector<1x32xf32> to vector<128x32xf32>
    %250 = arith.mulf %248, %249 : vector<128x32xf32>
    %251 = vector.broadcast %232 : vector<1x32xf32> to vector<128x32xf32>
    %252 = arith.addf %250, %251 : vector<128x32xf32>
    %c0_118 = arith.constant 0 : index
    %c128_119 = arith.constant 128 : index
    %c0_120 = arith.constant 0 : index
    %253 = vector.load %arg2[%c0_118, %c128_119, %c0_120] : memref<1x192x128xbf16, #tpu.memory_space<vmem>>, vector<1x64x128xbf16>
    %254 = vector.shape_cast %253 : vector<1x64x128xbf16> to vector<64x128xbf16>
    %255 = arith.truncf %252 : vector<128x32xf32> to vector<128x32xbf16>
    %cst_121 = arith.constant dense<0.000000e+00> : vector<64x32xf32>
    %256 = tpu.matmul %254, %255, %cst_121 {dimension_numbers = #tpu.dot_dimension_numbers<[1], [0], [0], [1], [0, 0, 1, 1], [], []>} : vector<64x128xbf16>, vector<128x32xbf16>, vector<64x32xf32> -> vector<64x32xf32>
    %c5_122 = arith.constant 5 : index
    %c0_123 = arith.constant 0 : index
    %c0_124 = arith.constant 0 : index
    %257 = vector.load %arg5[%c5_122, %c0_123, %c0_124] : memref<6x4x32xf32, #tpu.memory_space<vmem>>, vector<1x4x32xf32>
    %258 = vector.shape_cast %257 : vector<1x4x32xf32> to vector<4x32xf32>
    %c10 = arith.constant 10 : index
    %c0_125 = arith.constant 0 : index
    %c0_126 = arith.constant 0 : index
    %259 = vector.load %arg3[%c10, %c0_125, %c0_126] : memref<13x32x32xbf16, #tpu.memory_space<vmem>>, vector<1x32x32xbf16>
    %260 = vector.shape_cast %259 : vector<1x32x32xbf16> to vector<32x32xbf16>
    %261 = arith.truncf %195 : vector<64x32xf32> to vector<64x32xbf16>
    %cst_127 = arith.constant dense<0.000000e+00> : vector<64x32xf32>
    %262 = tpu.matmul %261, %260, %cst_127 {dimension_numbers = #tpu.dot_dimension_numbers<[1], [0], [0], [1], [0, 0, 1, 1], [], []>} : vector<64x32xbf16>, vector<32x32xbf16>, vector<64x32xf32> -> vector<64x32xf32>
    %c11 = arith.constant 11 : index
    %c0_128 = arith.constant 0 : index
    %c0_129 = arith.constant 0 : index
    %263 = vector.load %arg3[%c11, %c0_128, %c0_129] : memref<13x32x32xbf16, #tpu.memory_space<vmem>>, vector<1x32x32xbf16>
    %264 = vector.shape_cast %263 : vector<1x32x32xbf16> to vector<32x32xbf16>
    %265 = arith.truncf %256 : vector<64x32xf32> to vector<64x32xbf16>
    %cst_130 = arith.constant dense<0.000000e+00> : vector<64x32xf32>
    %266 = tpu.matmul %265, %264, %cst_130 {dimension_numbers = #tpu.dot_dimension_numbers<[1], [0], [0], [1], [0, 0, 1, 1], [], []>} : vector<64x32xbf16>, vector<32x32xbf16>, vector<64x32xf32> -> vector<64x32xf32>
    %267 = arith.addf %262, %266 : vector<64x32xf32>
    %268 = vector.extract_strided_slice %258 {offsets = [0, 0], sizes = [1, 32], strides = [1, 1]} : vector<4x32xf32> to vector<1x32xf32>
    %269 = vector.broadcast %268 : vector<1x32xf32> to vector<64x32xf32>
    %270 = arith.addf %267, %269 : vector<64x32xf32>
    %c12 = arith.constant 12 : index
    %c0_131 = arith.constant 0 : index
    %c0_132 = arith.constant 0 : index
    %271 = vector.load %arg3[%c12, %c0_131, %c0_132] : memref<13x32x32xbf16, #tpu.memory_space<vmem>>, vector<1x32x32xbf16>
    %272 = vector.shape_cast %271 : vector<1x32x32xbf16> to vector<32x32xbf16>
    %cst_133 = arith.constant 0.000000e+00 : f32
    %273 = vector.broadcast %cst_133 : f32 to vector<64x32xf32>
    %274 = arith.maximumf %270, %273 : vector<64x32xf32>
    %275 = arith.truncf %274 : vector<64x32xf32> to vector<64x32xbf16>
    %cst_134 = arith.constant dense<0.000000e+00> : vector<64x32xf32>
    %276 = tpu.matmul %275, %272, %cst_134 {dimension_numbers = #tpu.dot_dimension_numbers<[1], [0], [0], [1], [0, 0, 1, 1], [], []>} : vector<64x32xbf16>, vector<32x32xbf16>, vector<64x32xf32> -> vector<64x32xf32>
    %277 = vector.extract_strided_slice %258 {offsets = [1, 0], sizes = [1, 32], strides = [1, 1]} : vector<4x32xf32> to vector<1x32xf32>
    %278 = vector.broadcast %277 : vector<1x32xf32> to vector<64x32xf32>
    %279 = arith.addf %276, %278 : vector<64x32xf32>
    %cst_135 = arith.constant 0.000000e+00 : f32
    %280 = vector.broadcast %cst_135 : f32 to vector<64x32xf32>
    %281 = arith.maximumf %279, %280 : vector<64x32xf32>
    %282 = vector.extract_strided_slice %258 {offsets = [2, 0], sizes = [1, 32], strides = [1, 1]} : vector<4x32xf32> to vector<1x32xf32>
    %283 = vector.extract_strided_slice %258 {offsets = [3, 0], sizes = [1, 32], strides = [1, 1]} : vector<4x32xf32> to vector<1x32xf32>
    %cst_136 = arith.constant dense<0.000000e+00> : vector<64xf32>
    %284 = vector.multi_reduction <add>, %281, %cst_136 [1] : vector<64x32xf32> to vector<64xf32>
    %285 = vector.shape_cast %284 : vector<64xf32> to vector<64x1xf32>
    %cst_137 = arith.constant 3.200000e+01 : f32
    %286 = vector.broadcast %cst_137 : f32 to vector<64x1xf32>
    %287 = arith.divf %285, %286 : vector<64x1xf32>
    %288 = vector.broadcast %287 : vector<64x1xf32> to vector<64x32xf32>
    %289 = arith.subf %281, %288 : vector<64x32xf32>
    %290 = arith.mulf %289, %289 : vector<64x32xf32>
    %cst_138 = arith.constant dense<0.000000e+00> : vector<64xf32>
    %291 = vector.multi_reduction <add>, %290, %cst_138 [1] : vector<64x32xf32> to vector<64xf32>
    %292 = vector.shape_cast %291 : vector<64xf32> to vector<64x1xf32>
    %cst_139 = arith.constant 3.200000e+01 : f32
    %293 = vector.broadcast %cst_139 : f32 to vector<64x1xf32>
    %294 = arith.divf %292, %293 : vector<64x1xf32>
    %cst_140 = arith.constant 9.99999974E-6 : f32
    %295 = vector.broadcast %cst_140 : f32 to vector<64x1xf32>
    %296 = arith.addf %294, %295 : vector<64x1xf32>
    %297 = math.rsqrt %296 : vector<64x1xf32>
    %298 = vector.broadcast %297 : vector<64x1xf32> to vector<64x32xf32>
    %299 = arith.mulf %289, %298 : vector<64x32xf32>
    %300 = vector.broadcast %282 : vector<1x32xf32> to vector<64x32xf32>
    %301 = arith.mulf %299, %300 : vector<64x32xf32>
    %302 = vector.broadcast %283 : vector<1x32xf32> to vector<64x32xf32>
    %303 = arith.addf %301, %302 : vector<64x32xf32>
    %304 = arith.addf %195, %303 : vector<64x32xf32>
    %c0_141 = arith.constant 0 : index
    %c0_142 = arith.constant 0 : index
    %305 = vector.load %arg6[%c0_141, %c0_142] : memref<66x32xf32, #tpu.memory_space<vmem>>, vector<32x32xf32>
    %306 = arith.truncf %304 : vector<64x32xf32> to vector<64x32xbf16>
    %307 = arith.truncf %305 : vector<32x32xf32> to vector<32x32xbf16>
    %cst_143 = arith.constant dense<0.000000e+00> : vector<64x32xf32>
    %308 = tpu.matmul %306, %307, %cst_143 {dimension_numbers = #tpu.dot_dimension_numbers<[1], [0], [0], [1], [0, 0, 1, 1], [], []>} : vector<64x32xbf16>, vector<32x32xbf16>, vector<64x32xf32> -> vector<64x32xf32>
    %c64_144 = arith.constant 64 : index
    %c0_145 = arith.constant 0 : index
    %309 = vector.load %arg6[%c64_144, %c0_145] : memref<66x32xf32, #tpu.memory_space<vmem>>, vector<1x32xf32>
    %310 = vector.broadcast %309 : vector<1x32xf32> to vector<64x32xf32>
    %311 = arith.addf %308, %310 : vector<64x32xf32>
    %312 = arith.negf %311 : vector<64x32xf32>
    %313 = math.exp %312 : vector<64x32xf32>
    %cst_146 = arith.constant 1.000000e+00 : f32
    %314 = vector.broadcast %cst_146 : f32 to vector<64x32xf32>
    %315 = arith.addf %314, %313 : vector<64x32xf32>
    %316 = arith.divf %314, %315 : vector<64x32xf32>
    %317 = arith.mulf %311, %316 : vector<64x32xf32>
    %c32 = arith.constant 32 : index
    %c0_147 = arith.constant 0 : index
    %318 = vector.load %arg6[%c32, %c0_147] : memref<66x32xf32, #tpu.memory_space<vmem>>, vector<32x32xf32>
    %319 = arith.truncf %317 : vector<64x32xf32> to vector<64x32xbf16>
    %320 = arith.truncf %318 : vector<32x32xf32> to vector<32x32xbf16>
    %cst_148 = arith.constant dense<0.000000e+00> : vector<64x32xf32>
    %321 = tpu.matmul %319, %320, %cst_148 {dimension_numbers = #tpu.dot_dimension_numbers<[1], [0], [0], [1], [0, 0, 1, 1], [], []>} : vector<64x32xbf16>, vector<32x32xbf16>, vector<64x32xf32> -> vector<64x32xf32>
    %c65 = arith.constant 65 : index
    %c0_149 = arith.constant 0 : index
    %322 = vector.load %arg6[%c65, %c0_149] : memref<66x32xf32, #tpu.memory_space<vmem>>, vector<1x32xf32>
    %323 = vector.broadcast %322 : vector<1x32xf32> to vector<64x32xf32>
    %324 = arith.addf %321, %323 : vector<64x32xf32>
    %325 = vector.extract_strided_slice %324 {offsets = [0, 0], sizes = [64, 10], strides = [1, 1]} : vector<64x32xf32> to vector<64x10xf32>
    %c0_150 = arith.constant 0 : index
    %c0_151 = arith.constant 0 : index
    %c0_152 = arith.constant 0 : index
    %326 = vector.load %arg7[%c0_150, %c0_151, %c0_152] : memref<1x64x10xf32, #tpu.memory_space<vmem>>, vector<1x64x10xf32>
    %327 = vector.shape_cast %326 : vector<1x64x10xf32> to vector<64x10xf32>
    %328 = vector.shape_cast %325 : vector<64x10xf32> to vector<1x64x10xf32>
    tpu.vector_store %arg7[%c0_150, %c0_151, %c0_152], %328 {strides = array<i32>} : memref<1x64x10xf32, #tpu.memory_space<vmem>>, vector<1x64x10xf32>,
    return
  }
  func.func @transform_0(%arg0: i32) -> (i32, i32, i32) {
    %c0_i32 = arith.constant 0 : i32
    %c0_i32_0 = arith.constant 0 : i32
    %c0_i32_1 = arith.constant 0 : i32
    return %arg0, %c0_i32, %c0_i32_0 : i32, i32, i32
  }
  func.func @transform_1(%arg0: i32) -> (i32, i32, i32) {
    %c0_i32 = arith.constant 0 : i32
    %c0_i32_0 = arith.constant 0 : i32
    %c0_i32_1 = arith.constant 0 : i32
    return %arg0, %c0_i32, %c0_i32_0 : i32, i32, i32
  }
  func.func @transform_2(%arg0: i32) -> (i32, i32, i32) {
    %c0_i32 = arith.constant 0 : i32
    %c0_i32_0 = arith.constant 0 : i32
    %c0_i32_1 = arith.constant 0 : i32
    %c0_i32_2 = arith.constant 0 : i32
    return %c0_i32, %c0_i32_0, %c0_i32_1 : i32, i32, i32
  }
  func.func @transform_3(%arg0: i32) -> (i32, i32, i32, i32) {
    %c0_i32 = arith.constant 0 : i32
    %c0_i32_0 = arith.constant 0 : i32
    %c0_i32_1 = arith.constant 0 : i32
    %c0_i32_2 = arith.constant 0 : i32
    %c0_i32_3 = arith.constant 0 : i32
    return %c0_i32, %c0_i32_0, %c0_i32_1, %c0_i32_2 : i32, i32, i32, i32
  }
  func.func @transform_4(%arg0: i32) -> (i32, i32, i32) {
    %c0_i32 = arith.constant 0 : i32
    %c0_i32_0 = arith.constant 0 : i32
    %c0_i32_1 = arith.constant 0 : i32
    %c0_i32_2 = arith.constant 0 : i32
    return %c0_i32, %c0_i32_0, %c0_i32_1 : i32, i32, i32
  }
  func.func @transform_5(%arg0: i32) -> (i32, i32) {
    %c0_i32 = arith.constant 0 : i32
    %c0_i32_0 = arith.constant 0 : i32
    %c0_i32_1 = arith.constant 0 : i32
    return %c0_i32, %c0_i32_0 : i32, i32
  }
  func.func @transform_6(%arg0: i32) -> (i32, i32, i32) {
    %c0_i32 = arith.constant 0 : i32
    %c0_i32_0 = arith.constant 0 : i32
    %c0_i32_1 = arith.constant 0 : i32
    return %arg0, %c0_i32, %c0_i32_0 : i32, i32, i32
  }
}

</mosaic_0001>

<llo_original>
// kernel: tpu_custom_call.1
$region0: #{tpu_custom_call.1}
  #allocation0 [shape = 'u32[]', space=smem, size = 0x4, offset = 0x4, fixed_abs, tag = 'smem constant byte address 0x4 - core index']
  #allocation1 [shape = 'u32[72,128]{1,0:T(1,128)}', space=vmem, size = 0x9000, scoped, tag = 'internal scratch']
  %s0 = inlined_call_operand.vmem [shape: f32[1,192,16], index: 0, kind: input, shape index: {}]
  %s1 = inlined_call_operand.hbm [shape: bf16[1,192,128], index: 1, kind: input, shape index: {}]
  %s2 = inlined_call_operand.vmem [shape: bf16[13,32,32], index: 2, kind: input, shape index: {}]
  %s3 = inlined_call_operand.vmem [shape: bf16[2,2,32,32], index: 3, kind: input, shape index: {}]
  %s4 = inlined_call_operand.vmem [shape: f32[6,4,32], index: 4, kind: input, shape index: {}]
  %s5 = inlined_call_operand.vmem [shape: f32[66,32], index: 5, kind: input, shape index: {}]
  %s6 = inlined_call_operand.vmem [shape: f32[1,64,10], index: 6, kind: output, shape index: {}]
  %s7 = sld [smem:[#allocation0]]
  $region38: #{tpu_custom_call.1} parent=0
    _
  %s9 = ssub.s32 1, %s7
  %s10 = scalar_select 0, %s9, %s7
  $region1: #{tpu_custom_call.1} parent=0
    #allocation2 [shape = 'u8[49152]{0}', space=vmem, size = 0xc000, scoped, tag = 'input window, operand 1, single buffered']
    #allocation3 [shape = 's32[1]{0}', space=sflag, size = 0x4, scoped, tag = 'scoped memory for tpu_custom_call.1']
    %11 = vsyncpa [#allocation3], 0
    // Predicated region
    $region2: #{tpu_custom_call.1} parent=1 // pred_check
      _
    $region3: #{tpu_custom_call.1} parent=1 // pred_check_branch
      %13 = sbr.rel (0) target = $region5
    $region4: #{tpu_custom_call.1} parent=1 // pred_region
      _
    $region5: #{tpu_custom_call.1} parent=1 // pred_fallthru
      _
    // Predicated region
    $region6: #{tpu_custom_call.1} parent=1 // pred_check
      _
    $region7: #{tpu_custom_call.1} parent=1 // pred_check_branch
      %15 = sbr.rel (0) target = $region9
    $region8: #{tpu_custom_call.1} parent=1 // pred_region
      %17 = vsyncadd [#allocation3], 0
      %s18 = sshll.u32 %s1, 4
      %s19 = int_to_ptr.hbm [resolvable:$true] %s18
      %s20 = sshll.u32 [#allocation2], 4
      %s21 = int_to_ptr.vmem [resolvable:$true] %s20
      %26 = dma.hbm_to_vmem [thread:$0]  %s19, 1536, %s21, [#allocation3], 64, 64, 4
    $region9: #{tpu_custom_call.1} parent=1 // pred_fallthru
      _
    // Predicated region
    $region10: #{tpu_custom_call.1} parent=1 // pred_check
      _
    $region11: #{tpu_custom_call.1} parent=1 // pred_check_branch
      %28 = sbr.rel (0) target = $region13
    $region12: #{tpu_custom_call.1} parent=1 // pred_region
      _
    $region13: #{tpu_custom_call.1} parent=1 // pred_fallthru
      _
    // Predicated region
    $region14: #{tpu_custom_call.1} parent=1 // pred_check
      _
    $region15: #{tpu_custom_call.1} parent=1 // pred_check_branch
      %30 = sbr.rel (0) target = $region17
    $region16: #{tpu_custom_call.1} parent=1 // pred_region
      _
    $region17: #{tpu_custom_call.1} parent=1 // pred_fallthru
      _
    // Predicated region
    $region18: #{tpu_custom_call.1} parent=1 // pred_check
      _
    $region19: #{tpu_custom_call.1} parent=1 // pred_check_branch
      %32 = sbr.rel (0) target = $region21
    $region20: #{tpu_custom_call.1} parent=1 // pred_region
      _
    $region21: #{tpu_custom_call.1} parent=1 // pred_fallthru
      _
    // Predicated region
    $region22: #{tpu_custom_call.1} parent=1 // pred_check
      _
    $region23: #{tpu_custom_call.1} parent=1 // pred_check_branch
      %34 = sbr.rel (0) target = $region25
    $region24: #{tpu_custom_call.1} parent=1 // pred_region
      _
    $region25: #{tpu_custom_call.1} parent=1 // pred_fallthru
      _
    // Predicated region
    $region26: #{tpu_custom_call.1} parent=1 // pred_check
      _
    $region27: #{tpu_custom_call.1} parent=1 // pred_check_branch
      %36 = sbr.rel (0) target = $region29
    $region28: #{tpu_custom_call.1} parent=1 // pred_region
      %38 = dma.done [#allocation3], 1536
    $region29: #{tpu_custom_call.1} parent=1 // pred_fallthru
      _
    %v40 = vld [vmem:[%s4] sm:$0xf]
    %v41 = vld [vmem:[%s0] sm:$0xff]
    %v42 = vld [vmem:[%s0 + $0x8] sm:$0xff]
    %v43 = vld [vmem:[%s0 + $0x10] sm:$0xff]
    %v44 = vld [vmem:[%s0 + $0x18] sm:$0xff]
    %v45 = vld [vmem:[%s0 + $0x20] sm:$0xff]
    %v46 = vld [vmem:[%s0 + $0x28] sm:$0xff]
    %v47 = vld [vmem:[%s0 + $0x30] sm:$0xff]
    %v48 = vld [vmem:[%s0 + $0x38] sm:$0xff]
    %v49 = vld [vmem:[%s2] sm:$0xf]
    %v50 = vld [vmem:[%s2 + $0x4] sm:$0xf]
    %v51 = vpack.c.bf16 %v42, %v41
    %v52 = vpack.c.bf16 %v44, %v43
    %v53 = vpack.c.bf16 %v46, %v45
    %v54 = vpack.c.bf16 %v48, %v47
    %v55 = vperm.slane %v40, 0
    %v58 = vunpack.c.l.b16 %v49
    %v59 = vunpack.c.l.b16 %v50
    %v60 = vpack.c.b16 %v59, %v58
    %vm62 = vcmask 130048
    %v64 = vsel %vm62, %v51, 0
    %v67 = vsel %vm62, %v52, 0
    %v70 = vsel %vm62, %v53, 0
    %v73 = vsel %vm62, %v54, 0
    %75 = vmatpush.bf16.msra.mxu0 0
    %76 = vmatpush.bf16.msra.mxu0 0
    %77 = vmatpush.bf16.msra.mxu0 0
    %78 = vmatpush.bf16.msra.mxu0 0
    %79 = vmatpush.bf16.msra.mxu0 0
    %80 = vmatpush.bf16.msra.mxu0 0
    %81 = vmatpush.bf16.msra.mxu0 0
    %82 = vmatpush.bf16.msra.mxu0 %v60
    %83 = vmatmul.bf16.gmra.mxu0 %v64
    %v84 = vpop.f32.mrf.mxu0
    %v85 = vadd.f32 %v55, %v84
    %v86 = vpop.f32.mrf.mxu0
    %v87 = vadd.f32 %v55, %v86
    %88 = vmatmul.bf16.gmra.mxu0 %v67
    %v89 = vpop.f32.mrf.mxu0
    %v90 = vadd.f32 %v55, %v89
    %v91 = vpop.f32.mrf.mxu0
    %v92 = vadd.f32 %v55, %v91
    %93 = vmatmul.bf16.gmra.mxu0 %v70
    %v94 = vpop.f32.mrf.mxu0
    %v95 = vadd.f32 %v55, %v94
    %v96 = vpop.f32.mrf.mxu0
    %v97 = vadd.f32 %v55, %v96
    %98 = vmatmul.bf16.gmra.mxu0 %v73
    %v99 = vpop.f32.mrf.mxu0
    %v100 = vadd.f32 %v55, %v99
    %v101 = vpop.f32.mrf.mxu0
    %v102 = vadd.f32 %v55, %v101
    %103 = vdwg.mxu0
    %s104 = scalar_lea.vmem %s2, 16
    %v105 = vld [vmem:[%s104] sm:$0xf]
    %v106 = vld [vmem:[%s104 + $0x4] sm:$0xf]
    %v107 = vld [vmem:[%s104 + $0x8] sm:$0xf]
    %v108 = vld [vmem:[%s104 + $0xc] sm:$0xf]
    %v109 = vmax.f32 %v85, 0.0
    %v110 = vmax.f32 %v87, 0.0
    %v111 = vmax.f32 %v90, 0.0
    %v112 = vmax.f32 %v92, 0.0
    %v113 = vmax.f32 %v95, 0.0
    %v114 = vmax.f32 %v97, 0.0
    %v115 = vmax.f32 %v100, 0.0
    %v116 = vmax.f32 %v102, 0.0
    %v117 = vpack.c.bf16 %v110, %v109
    %v118 = vpack.c.bf16 %v112, %v111
    %v119 = vpack.c.bf16 %v114, %v113
    %v120 = vpack.c.bf16 %v116, %v115
    %v121 = vperm.slane %v40, 1
    %v126 = vunpack.c.l.b16 %v105
    %v127 = vunpack.c.l.b16 %v106
    %v128 = vunpack.c.l.b16 %v107
    %v129 = vunpack.c.l.b16 %v108
    %v130 = vpack.c.b16 %v127, %v126
    %v131 = vpack.c.b16 %v129, %v128
    %vm134 = vcmask 261120
    %v136 = vsel %vm134, %v117, 0
    %v139 = vsel %vm134, %v118, 0
    %v142 = vsel %vm134, %v119, 0
    %v145 = vsel %vm134, %v120, 0
    %147 = vmatpush.bf16.msra.mxu0 0
    %148 = vmatpush.bf16.msra.mxu0 0
    %149 = vmatpush.bf16.msra.mxu0 0
    %150 = vmatpush.bf16.msra.mxu0 0
    %151 = vmatpush.bf16.msra.mxu0 0
    %152 = vmatpush.bf16.msra.mxu0 0
    %153 = vmatpush.bf16.msra.mxu0 %v131
    %154 = vmatpush.bf16.msra.mxu0 %v130
    %155 = vmatmul.bf16.gmra.mxu0 %v136
    %v156 = vpop.f32.mrf.mxu0
    %v157 = vadd.f32 %v121, %v156
    %v158 = vpop.f32.mrf.mxu0
    %v159 = vadd.f32 %v121, %v158
    %160 = vmatmul.bf16.gmra.mxu0 %v139
    %v161 = vpop.f32.mrf.mxu0
    %v162 = vadd.f32 %v121, %v161
    %v163 = vpop.f32.mrf.mxu0
    %v164 = vadd.f32 %v121, %v163
    %165 = vmatmul.bf16.gmra.mxu0 %v142
    %v166 = vpop.f32.mrf.mxu0
    %v167 = vadd.f32 %v121, %v166
    %v168 = vpop.f32.mrf.mxu0
    %v169 = vadd.f32 %v121, %v168
    %170 = vmatmul.bf16.gmra.mxu0 %v145
    %v171 = vpop.f32.mrf.mxu0
    %v172 = vadd.f32 %v121, %v171
    %v173 = vpop.f32.mrf.mxu0
    %v174 = vadd.f32 %v121, %v173
    %175 = vdwg.mxu0
    %v176 = vmax.f32 %v157, 0.0
    %v177 = vmax.f32 %v159, 0.0
    %v178 = vmax.f32 %v162, 0.0
    %v179 = vmax.f32 %v164, 0.0
    %v180 = vmax.f32 %v167, 0.0
    %v181 = vmax.f32 %v169, 0.0
    %v182 = vmax.f32 %v172, 0.0
    %v183 = vmax.f32 %v174, 0.0
    %v184 = vsel %vm134, %v176, 0.0
    %185 = vadd.xlane.f32.xlu0 %v184
    %v186 = vpop.xlane.xlu0 %185
    %v187 = vsel %vm134, %v177, 0.0
    %188 = vadd.xlane.f32.xlu0 %v187
    %v189 = vpop.xlane.xlu0 %188
    %v190 = vsel %vm134, %v178, 0.0
    %191 = vadd.xlane.f32.xlu0 %v190
    %v192 = vpop.xlane.xlu0 %191
    %v193 = vsel %vm134, %v179, 0.0
    %194 = vadd.xlane.f32.xlu0 %v193
    %v195 = vpop.xlane.xlu0 %194
    %v196 = vsel %vm134, %v180, 0.0
    %197 = vadd.xlane.f32.xlu0 %v196
    %v198 = vpop.xlane.xlu0 %197
    %v199 = vsel %vm134, %v181, 0.0
    %200 = vadd.xlane.f32.xlu0 %v199
    %v201 = vpop.xlane.xlu0 %200
    %v202 = vsel %vm134, %v182, 0.0
    %203 = vadd.xlane.f32.xlu0 %v202
    %v204 = vpop.xlane.xlu0 %203
    %v205 = vsel %vm134, %v183, 0.0
    %206 = vadd.xlane.f32.xlu0 %v205
    %v207 = vpop.xlane.xlu0 %206
    %v208 = vrcp.pop 32.0
    %v209 = vmul.f32 32.0, %v208
    %v210 = vsub.f32 1.0, %v209
    %v211 = vmul.f32 %v208, %v210
    %v212 = vadd.f32 %v208, %v211
    %vm213 = vweird.f32 %v208
    %v214 = vsel %vm213, %v208, %v212
    %v215 = vmul.f32 %v186, %v214
    %v216 = vmul.f32 %v189, %v214
    %v217 = vmul.f32 %v192, %v214
    %v218 = vmul.f32 %v195, %v214
    %v219 = vmul.f32 %v198, %v214
    %v220 = vmul.f32 %v201, %v214
    %v221 = vmul.f32 %v204, %v214
    %v222 = vmul.f32 %v207, %v214
    %v223 = vsub.f32 %v176, %v215
    %v224 = vsub.f32 %v177, %v216
    %v225 = vsub.f32 %v178, %v217
    %v226 = vsub.f32 %v179, %v218
    %v227 = vsub.f32 %v180, %v219
    %v228 = vsub.f32 %v181, %v220
    %v229 = vsub.f32 %v182, %v221
    %v230 = vsub.f32 %v183, %v222
    %v231 = vmul.f32 %v223, %v223
    %v232 = vmul.f32 %v224, %v224
    %v233 = vmul.f32 %v225, %v225
    %v234 = vmul.f32 %v226, %v226
    %v235 = vmul.f32 %v227, %v227
    %v236 = vmul.f32 %v228, %v228
    %v237 = vmul.f32 %v229, %v229
    %v238 = vmul.f32 %v230, %v230
    %v239 = vsel %vm134, %v231, 0.0
    %240 = vadd.xlane.f32.xlu0 %v239
    %v241 = vpop.xlane.xlu0 %240
    %v242 = vsel %vm134, %v232, 0.0
    %243 = vadd.xlane.f32.xlu0 %v242
    %v244 = vpop.xlane.xlu0 %243
    %v245 = vsel %vm134, %v233, 0.0
    %246 = vadd.xlane.f32.xlu0 %v245
    %v247 = vpop.xlane.xlu0 %246
    %v248 = vsel %vm134, %v234, 0.0
    %249 = vadd.xlane.f32.xlu0 %v248
    %v250 = vpop.xlane.xlu0 %249
    %v251 = vsel %vm134, %v235, 0.0
    %252 = vadd.xlane.f32.xlu0 %v251
    %v253 = vpop.xlane.xlu0 %252
    %v254 = vsel %vm134, %v236, 0.0
    %255 = vadd.xlane.f32.xlu0 %v254
    %v256 = vpop.xlane.xlu0 %255
    %v257 = vsel %vm134, %v237, 0.0
    %258 = vadd.xlane.f32.xlu0 %v257
    %v259 = vpop.xlane.xlu0 %258
    %v260 = vsel %vm134, %v238, 0.0
    %261 = vadd.xlane.f32.xlu0 %v260
    %v262 = vpop.xlane.xlu0 %261
    %v263 = vmul.f32 %v241, %v214
    %v264 = vmul.f32 %v244, %v214
    %v265 = vmul.f32 %v247, %v214
    %v266 = vmul.f32 %v250, %v214
    %v267 = vmul.f32 %v253, %v214
    %v268 = vmul.f32 %v256, %v214
    %v269 = vmul.f32 %v259, %v214
    %v270 = vmul.f32 %v262, %v214
    %v271 = vadd.f32 %v263, 1e-05
    %v272 = vadd.f32 %v264, 1e-05
    %v273 = vadd.f32 %v265, 1e-05
    %v274 = vadd.f32 %v266, 1e-05
    %v275 = vadd.f32 %v267, 1e-05
    %v276 = vadd.f32 %v268, 1e-05
    %v277 = vadd.f32 %v269, 1e-05
    %v278 = vadd.f32 %v270, 1e-05
    %v279 = vrsqrt.pop %v271
    %v280 = vmul.f32 %v279, %v271
    %v281 = vmul.f32 %v280, %v279
    %v282 = vmul.f32 0.5, %v281
    %v283 = vsub.f32 1.5, %v282
    %v284 = vmul.f32 %v279, %v283
    %vm285 = vweird.f32 %v271
    %vm286 = vweird.f32 %v279
    %vm287 = vmor %vm285, %vm286
    %v288 = vsel %vm287, %v279, %v284
    %v289 = vrsqrt.pop %v272
    %v290 = vmul.f32 %v289, %v272
    %v291 = vmul.f32 %v290, %v289
    %v292 = vmul.f32 0.5, %v291
    %v293 = vsub.f32 1.5, %v292
    %v294 = vmul.f32 %v289, %v293
    %vm295 = vweird.f32 %v272
    %vm296 = vweird.f32 %v289
    %vm297 = vmor %vm295, %vm296
    %v298 = vsel %vm297, %v289, %v294
    %v299 = vrsqrt.pop %v273
    %v300 = vmul.f32 %v299, %v273
    %v301 = vmul.f32 %v300, %v299
    %v302 = vmul.f32 0.5, %v301
    %v303 = vsub.f32 1.5, %v302
    %v304 = vmul.f32 %v299, %v303
    %vm305 = vweird.f32 %v273
    %vm306 = vweird.f32 %v299
    %vm307 = vmor %vm305, %vm306
    %v308 = vsel %vm307, %v299, %v304
    %v309 = vrsqrt.pop %v274
    %v310 = vmul.f32 %v309, %v274
    %v311 = vmul.f32 %v310, %v309
    %v312 = vmul.f32 0.5, %v311
    %v313 = vsub.f32 1.5, %v312
    %v314 = vmul.f32 %v309, %v313
    %vm315 = vweird.f32 %v274
    %vm316 = vweird.f32 %v309
    %vm317 = vmor %vm315, %vm316
    %v318 = vsel %vm317, %v309, %v314
    %v319 = vrsqrt.pop %v275
    %v320 = vmul.f32 %v319, %v275
    %v321 = vmul.f32 %v320, %v319
    %v322 = vmul.f32 0.5, %v321
    %v323 = vsub.f32 1.5, %v322
    %v324 = vmul.f32 %v319, %v323
    %vm325 = vweird.f32 %v275
    %vm326 = vweird.f32 %v319
    %vm327 = vmor %vm325, %vm326
    %v328 = vsel %vm327, %v319, %v324
    %v329 = vrsqrt.pop %v276
    %v330 = vmul.f32 %v329, %v276
    %v331 = vmul.f32 %v330, %v329
    %v332 = vmul.f32 0.5, %v331
    %v333 = vsub.f32 1.5, %v332
    %v334 = vmul.f32 %v329, %v333
    %vm335 = vweird.f32 %v276
    %vm336 = vweird.f32 %v329
    %vm337 = vmor %vm335, %vm336
    %v338 = vsel %vm337, %v329, %v334
    %v339 = vrsqrt.pop %v277
    %v340 = vmul.f32 %v339, %v277
    %v341 = vmul.f32 %v340, %v339
    %v342 = vmul.f32 0.5, %v341
    %v343 = vsub.f32 1.5, %v342
    %v344 = vmul.f32 %v339, %v343
    %vm345 = vweird.f32 %v277
    %vm346 = vweird.f32 %v339
    %vm347 = vmor %vm345, %vm346
    %v348 = vsel %vm347, %v339, %v344
    %v349 = vrsqrt.pop %v278
    %v350 = vmul.f32 %v349, %v278
    %v351 = vmul.f32 %v350, %v349
    %v352 = vmul.f32 0.5, %v351
    %v353 = vsub.f32 1.5, %v352
    %v354 = vmul.f32 %v349, %v353
    %vm355 = vweird.f32 %v278
    %vm356 = vweird.f32 %v349
    %vm357 = vmor %vm355, %vm356
    %v358 = vsel %vm357, %v349, %v354
    %v359 = vmul.f32 %v223, %v288
    %v360 = vmul.f32 %v224, %v298
    %v361 = vmul.f32 %v225, %v308
    %v362 = vmul.f32 %v226, %v318
    %v363 = vmul.f32 %v227, %v328
    %v364 = vmul.f32 %v228, %v338
    %v365 = vmul.f32 %v229, %v348
    %v366 = vmul.f32 %v230, %v358
    %v367 = vperm.slane %v40, 2
    %v368 = vmul.f32 %v359, %v367
    %v369 = vmul.f32 %v360, %v367
    %v370 = vmul.f32 %v361, %v367
    %v371 = vmul.f32 %v362, %v367
    %v372 = vmul.f32 %v363, %v367
    %v373 = vmul.f32 %v364, %v367
    %v374 = vmul.f32 %v365, %v367
    %v375 = vmul.f32 %v366, %v367
    %v376 = vperm.slane %v40, 3
    %v377 = vadd.f32 %v368, %v376
    %v378 = vadd.f32 %v369, %v376
    %v379 = vadd.f32 %v370, %v376
    %v380 = vadd.f32 %v371, %v376
    %v381 = vadd.f32 %v372, %v376
    %v382 = vadd.f32 %v373, %v376
    %v383 = vadd.f32 %v374, %v376
    %v384 = vadd.f32 %v375, %v376
    %s385 = scalar_lea.vmem %s4, 4
    %v386 = vld [vmem:[%s385] sm:$0xf]
    %v387 = vld [vmem:[%s0 + $0x40] sm:$0xff]
    %v388 = vld [vmem:[%s0 + $0x48] sm:$0xff]
    %v389 = vld [vmem:[%s0 + $0x50] sm:$0xff]
    %v390 = vld [vmem:[%s0 + $0x58] sm:$0xff]
    %v391 = vld [vmem:[%s0 + $0x60] sm:$0xff]
    %v392 = vld [vmem:[%s0 + $0x68] sm:$0xff]
    %v393 = vld [vmem:[%s0 + $0x70] sm:$0xff]
    %v394 = vld [vmem:[%s0 + $0x78] sm:$0xff]
    %v395 = vld [vmem:[%s0 + $0x80] sm:$0xff]
    %v396 = vld [vmem:[%s0 + $0x88] sm:$0xff]
    %v397 = vld [vmem:[%s0 + $0x90] sm:$0xff]
    %v398 = vld [vmem:[%s0 + $0x98] sm:$0xff]
    %v399 = vld [vmem:[%s0 + $0xa0] sm:$0xff]
    %v400 = vld [vmem:[%s0 + $0xa8] sm:$0xff]
    %v401 = vld [vmem:[%s0 + $0xb0] sm:$0xff]
    %v402 = vld [vmem:[%s0 + $0xb8] sm:$0xff]
    %v403 = vld [vmem:[%s2 + $0x8] sm:$0xf]
    %v404 = vld [vmem:[%s2 + $0xc] sm:$0xf]
    %v405 = vpack.c.bf16 %v388, %v387
    %v406 = vpack.c.bf16 %v390, %v389
    %v407 = vpack.c.bf16 %v392, %v391
    %v408 = vpack.c.bf16 %v394, %v393
    %v409 = vpack.c.bf16 %v396, %v395
    %v410 = vpack.c.bf16 %v398, %v397
    %v411 = vpack.c.bf16 %v400, %v399
    %v412 = vpack.c.bf16 %v402, %v401
    %v413 = vperm.slane %v386, 0
    %v416 = vunpack.c.l.b16 %v403
    %v417 = vunpack.c.l.b16 %v404
    %v418 = vpack.c.b16 %v417, %v416
    %v421 = vsel %vm62, %v405, 0
    %v424 = vsel %vm62, %v406, 0
    %v427 = vsel %vm62, %v407, 0
    %v430 = vsel %vm62, %v408, 0
    %v433 = vsel %vm62, %v409, 0
    %v436 = vsel %vm62, %v410, 0
    %v439 = vsel %vm62, %v411, 0
    %v442 = vsel %vm62, %v412, 0
    %444 = vmatpush.bf16.msra.mxu0 0
    %445 = vmatpush.bf16.msra.mxu0 0
    %446 = vmatpush.bf16.msra.mxu0 0
    %447 = vmatpush.bf16.msra.mxu0 0
    %448 = vmatpush.bf16.msra.mxu0 0
    %449 = vmatpush.bf16.msra.mxu0 0
    %450 = vmatpush.bf16.msra.mxu0 0
    %451 = vmatpush.bf16.msra.mxu0 %v418
    %452 = vmatmul.bf16.gmra.mxu0 %v421
    %v453 = vpop.f32.mrf.mxu0
    %v454 = vadd.f32 %v413, %v453
    %v455 = vpop.f32.mrf.mxu0
    %v456 = vadd.f32 %v413, %v455
    %457 = vmatmul.bf16.gmra.mxu0 %v424
    %v458 = vpop.f32.mrf.mxu0
    %v459 = vadd.f32 %v413, %v458
    %v460 = vpop.f32.mrf.mxu0
    %v461 = vadd.f32 %v413, %v460
    %462 = vmatmul.bf16.gmra.mxu0 %v427
    %v463 = vpop.f32.mrf.mxu0
    %v464 = vadd.f32 %v413, %v463
    %v465 = vpop.f32.mrf.mxu0
    %v466 = vadd.f32 %v413, %v465
    %467 = vmatmul.bf16.gmra.mxu0 %v430
    %v468 = vpop.f32.mrf.mxu0
    %v469 = vadd.f32 %v413, %v468
    %v470 = vpop.f32.mrf.mxu0
    %v471 = vadd.f32 %v413, %v470
    %472 = vmatmul.bf16.gmra.mxu0 %v433
    %v473 = vpop.f32.mrf.mxu0
    %v474 = vadd.f32 %v413, %v473
    %v475 = vpop.f32.mrf.mxu0
    %v476 = vadd.f32 %v413, %v475
    %477 = vmatmul.bf16.gmra.mxu0 %v436
    %v478 = vpop.f32.mrf.mxu0
    %v479 = vadd.f32 %v413, %v478
    %v480 = vpop.f32.mrf.mxu0
    %v481 = vadd.f32 %v413, %v480
    %482 = vmatmul.bf16.gmra.mxu0 %v439
    %v483 = vpop.f32.mrf.mxu0
    %v484 = vadd.f32 %v413, %v483
    %v485 = vpop.f32.mrf.mxu0
    %v486 = vadd.f32 %v413, %v485
    %487 = vmatmul.bf16.gmra.mxu0 %v442
    %v488 = vpop.f32.mrf.mxu0
    %v489 = vadd.f32 %v413, %v488
    %v490 = vpop.f32.mrf.mxu0
    %v491 = vadd.f32 %v413, %v490
    %492 = vdwg.mxu0
    %s493 = scalar_lea.vmem %s2, 32
    %v494 = vld [vmem:[%s493] sm:$0xf]
    %v495 = vld [vmem:[%s493 + $0x4] sm:$0xf]
    %v496 = vld [vmem:[%s493 + $0x8] sm:$0xf]
    %v497 = vld [vmem:[%s493 + $0xc] sm:$0xf]
    %v498 = vmax.f32 %v454, 0.0
    %v499 = vmax.f32 %v456, 0.0
    %v500 = vmax.f32 %v459, 0.0
    %v501 = vmax.f32 %v461, 0.0
    %v502 = vmax.f32 %v464, 0.0
    %v503 = vmax.f32 %v466, 0.0
    %v504 = vmax.f32 %v469, 0.0
    %v505 = vmax.f32 %v471, 0.0
    %v506 = vmax.f32 %v474, 0.0
    %v507 = vmax.f32 %v476, 0.0
    %v508 = vmax.f32 %v479, 0.0
    %v509 = vmax.f32 %v481, 0.0
    %v510 = vmax.f32 %v484, 0.0
    %v511 = vmax.f32 %v486, 0.0
    %v512 = vmax.f32 %v489, 0.0
    %v513 = vmax.f32 %v491, 0.0
    %v514 = vpack.c.bf16 %v499, %v498
    %v515 = vpack.c.bf16 %v501, %v500
    %v516 = vpack.c.bf16 %v503, %v502
    %v517 = vpack.c.bf16 %v505, %v504
    %v518 = vpack.c.bf16 %v507, %v506
    %v519 = vpack.c.bf16 %v509, %v508
    %v520 = vpack.c.bf16 %v511, %v510
    %v521 = vpack.c.bf16 %v513, %v512
    %v522 = vperm.slane %v386, 1
    %v527 = vunpack.c.l.b16 %v494
    %v528 = vunpack.c.l.b16 %v495
    %v529 = vunpack.c.l.b16 %v496
    %v530 = vunpack.c.l.b16 %v497
    %v531 = vpack.c.b16 %v528, %v527
    %v532 = vpack.c.b16 %v530, %v529
    %v536 = vsel %vm134, %v514, 0
    %v539 = vsel %vm134, %v515, 0
    %v542 = vsel %vm134, %v516, 0
    %v545 = vsel %vm134, %v517, 0
    %v548 = vsel %vm134, %v518, 0
    %v551 = vsel %vm134, %v519, 0
    %v554 = vsel %vm134, %v520, 0
    %v557 = vsel %vm134, %v521, 0
    %559 = vmatpush.bf16.msra.mxu0 0
    %560 = vmatpush.bf16.msra.mxu0 0
    %561 = vmatpush.bf16.msra.mxu0 0
    %562 = vmatpush.bf16.msra.mxu0 0
    %563 = vmatpush.bf16.msra.mxu0 0
    %564 = vmatpush.bf16.msra.mxu0 0
    %565 = vmatpush.bf16.msra.mxu0 %v532
    %566 = vmatpush.bf16.msra.mxu0 %v531
    %567 = vmatmul.bf16.gmra.mxu0 %v536
    %v568 = vpop.f32.mrf.mxu0
    %v569 = vadd.f32 %v522, %v568
    %v570 = vpop.f32.mrf.mxu0
    %v571 = vadd.f32 %v522, %v570
    %572 = vmatmul.bf16.gmra.mxu0 %v539
    %v573 = vpop.f32.mrf.mxu0
    %v574 = vadd.f32 %v522, %v573
    %v575 = vpop.f32.mrf.mxu0
    %v576 = vadd.f32 %v522, %v575
    %577 = vmatmul.bf16.gmra.mxu0 %v542
    %v578 = vpop.f32.mrf.mxu0
    %v579 = vadd.f32 %v522, %v578
    %v580 = vpop.f32.mrf.mxu0
    %v581 = vadd.f32 %v522, %v580
    %582 = vmatmul.bf16.gmra.mxu0 %v545
    %v583 = vpop.f32.mrf.mxu0
    %v584 = vadd.f32 %v522, %v583
    %v585 = vpop.f32.mrf.mxu0
    %v586 = vadd.f32 %v522, %v585
    %587 = vmatmul.bf16.gmra.mxu0 %v548
    %v588 = vpop.f32.mrf.mxu0
    %v589 = vadd.f32 %v522, %v588
    %v590 = vpop.f32.mrf.mxu0
    %v591 = vadd.f32 %v522, %v590
    %592 = vmatmul.bf16.gmra.mxu0 %v551
    %v593 = vpop.f32.mrf.mxu0
    %v594 = vadd.f32 %v522, %v593
    %v595 = vpop.f32.mrf.mxu0
    %v596 = vadd.f32 %v522, %v595
    %597 = vmatmul.bf16.gmra.mxu0 %v554
    %v598 = vpop.f32.mrf.mxu0
    %v599 = vadd.f32 %v522, %v598
    %v600 = vpop.f32.mrf.mxu0
    %v601 = vadd.f32 %v522, %v600
    %602 = vmatmul.bf16.gmra.mxu0 %v557
    %v603 = vpop.f32.mrf.mxu0
    %v604 = vadd.f32 %v522, %v603
    %v605 = vpop.f32.mrf.mxu0
    %v606 = vadd.f32 %v522, %v605
    %607 = vdwg.mxu0
    %v608 = vmax.f32 %v569, 0.0
    %v609 = vmax.f32 %v571, 0.0
    %v610 = vmax.f32 %v574, 0.0
    %v611 = vmax.f32 %v576, 0.0
    %v612 = vmax.f32 %v579, 0.0
    %v613 = vmax.f32 %v581, 0.0
    %v614 = vmax.f32 %v584, 0.0
    %v615 = vmax.f32 %v586, 0.0
    %v616 = vmax.f32 %v589, 0.0
    %v617 = vmax.f32 %v591, 0.0
    %v618 = vmax.f32 %v594, 0.0
    %v619 = vmax.f32 %v596, 0.0
    %v620 = vmax.f32 %v599, 0.0
    %v621 = vmax.f32 %v601, 0.0
    %v622 = vmax.f32 %v604, 0.0
    %v623 = vmax.f32 %v606, 0.0
    %v624 = vsel %vm134, %v608, 0.0
    %625 = vadd.xlane.f32.xlu0 %v624
    %v626 = vpop.xlane.xlu0 %625
    %v627 = vsel %vm134, %v609, 0.0
    %628 = vadd.xlane.f32.xlu0 %v627
    %v629 = vpop.xlane.xlu0 %628
    %v630 = vsel %vm134, %v610, 0.0
    %631 = vadd.xlane.f32.xlu0 %v630
    %v632 = vpop.xlane.xlu0 %631
    %v633 = vsel %vm134, %v611, 0.0
    %634 = vadd.xlane.f32.xlu0 %v633
    %v635 = vpop.xlane.xlu0 %634
    %v636 = vsel %vm134, %v612, 0.0
    %637 = vadd.xlane.f32.xlu0 %v636
    %v638 = vpop.xlane.xlu0 %637
    %v639 = vsel %vm134, %v613, 0.0
    %640 = vadd.xlane.f32.xlu0 %v639
    %v641 = vpop.xlane.xlu0 %640
    %v642 = vsel %vm134, %v614, 0.0
    %643 = vadd.xlane.f32.xlu0 %v642
    %v644 = vpop.xlane.xlu0 %643
    %v645 = vsel %vm134, %v615, 0.0
    %646 = vadd.xlane.f32.xlu0 %v645
    %v647 = vpop.xlane.xlu0 %646
    %v648 = vsel %vm134, %v616, 0.0
    %649 = vadd.xlane.f32.xlu0 %v648
    %v650 = vpop.xlane.xlu0 %649
    %v651 = vsel %vm134, %v617, 0.0
    %652 = vadd.xlane.f32.xlu0 %v651
    %v653 = vpop.xlane.xlu0 %652
    %v654 = vsel %vm134, %v618, 0.0
    %655 = vadd.xlane.f32.xlu0 %v654
    %v656 = vpop.xlane.xlu0 %655
    %v657 = vsel %vm134, %v619, 0.0
    %658 = vadd.xlane.f32.xlu0 %v657
    %v659 = vpop.xlane.xlu0 %658
    %v660 = vsel %vm134, %v620, 0.0
    %661 = vadd.xlane.f32.xlu0 %v660
    %v662 = vpop.xlane.xlu0 %661
    %v663 = vsel %vm134, %v621, 0.0
    %664 = vadd.xlane.f32.xlu0 %v663
    %v665 = vpop.xlane.xlu0 %664
    %v666 = vsel %vm134, %v622, 0.0
    %667 = vadd.xlane.f32.xlu0 %v666
    %v668 = vpop.xlane.xlu0 %667
    %v669 = vsel %vm134, %v623, 0.0
    %670 = vadd.xlane.f32.xlu0 %v669
    %v671 = vpop.xlane.xlu0 %670
    %v672 = vmul.f32 %v626, %v214
    %v673 = vmul.f32 %v629, %v214
    %v674 = vmul.f32 %v632, %v214
    %v675 = vmul.f32 %v635, %v214
    %v676 = vmul.f32 %v638, %v214
    %v677 = vmul.f32 %v641, %v214
    %v678 = vmul.f32 %v644, %v214
    %v679 = vmul.f32 %v647, %v214
    %v680 = vmul.f32 %v650, %v214
    %v681 = vmul.f32 %v653, %v214
    %v682 = vmul.f32 %v656, %v214
    %v683 = vmul.f32 %v659, %v214
    %v684 = vmul.f32 %v662, %v214
    %v685 = vmul.f32 %v665, %v214
    %v686 = vmul.f32 %v668, %v214
    %v687 = vmul.f32 %v671, %v214
    %v688 = vsub.f32 %v608, %v672
    %v689 = vsub.f32 %v609, %v673
    %v690 = vsub.f32 %v610, %v674
    %v691 = vsub.f32 %v611, %v675
    %v692 = vsub.f32 %v612, %v676
    %v693 = vsub.f32 %v613, %v677
    %v694 = vsub.f32 %v614, %v678
    %v695 = vsub.f32 %v615, %v679
    %v696 = vsub.f32 %v616, %v680
    %v697 = vsub.f32 %v617, %v681
    %v698 = vsub.f32 %v618, %v682
    %v699 = vsub.f32 %v619, %v683
    %v700 = vsub.f32 %v620, %v684
    %v701 = vsub.f32 %v621, %v685
    %v702 = vsub.f32 %v622, %v686
    %v703 = vsub.f32 %v623, %v687
    %v704 = vmul.f32 %v688, %v688
    %v705 = vmul.f32 %v689, %v689
    %v706 = vmul.f32 %v690, %v690
    %v707 = vmul.f32 %v691, %v691
    %v708 = vmul.f32 %v692, %v692
    %v709 = vmul.f32 %v693, %v693
    %v710 = vmul.f32 %v694, %v694
    %v711 = vmul.f32 %v695, %v695
    %v712 = vmul.f32 %v696, %v696
    %v713 = vmul.f32 %v697, %v697
    %v714 = vmul.f32 %v698, %v698
    %v715 = vmul.f32 %v699, %v699
    %v716 = vmul.f32 %v700, %v700
    %v717 = vmul.f32 %v701, %v701
    %v718 = vmul.f32 %v702, %v702
    %v719 = vmul.f32 %v703, %v703
    %v720 = vsel %vm134, %v704, 0.0
    %721 = vadd.xlane.f32.xlu0 %v720
    %v722 = vpop.xlane.xlu0 %721
    %v723 = vsel %vm134, %v705, 0.0
    %724 = vadd.xlane.f32.xlu0 %v723
    %v725 = vpop.xlane.xlu0 %724
    %v726 = vsel %vm134, %v706, 0.0
    %727 = vadd.xlane.f32.xlu0 %v726
    %v728 = vpop.xlane.xlu0 %727
    %v729 = vsel %vm134, %v707, 0.0
    %730 = vadd.xlane.f32.xlu0 %v729
    %v731 = vpop.xlane.xlu0 %730
    %v732 = vsel %vm134, %v708, 0.0
    %733 = vadd.xlane.f32.xlu0 %v732
    %v734 = vpop.xlane.xlu0 %733
    %v735 = vsel %vm134, %v709, 0.0
    %736 = vadd.xlane.f32.xlu0 %v735
    %v737 = vpop.xlane.xlu0 %736
    %v738 = vsel %vm134, %v710, 0.0
    %739 = vadd.xlane.f32.xlu0 %v738
    %v740 = vpop.xlane.xlu0 %739
    %v741 = vsel %vm134, %v711, 0.0
    %742 = vadd.xlane.f32.xlu0 %v741
    %v743 = vpop.xlane.xlu0 %742
    %v744 = vsel %vm134, %v712, 0.0
    %745 = vadd.xlane.f32.xlu0 %v744
    %v746 = vpop.xlane.xlu0 %745
    %v747 = vsel %vm134, %v713, 0.0
    %748 = vadd.xlane.f32.xlu0 %v747
    %v749 = vpop.xlane.xlu0 %748
    %v750 = vsel %vm134, %v714, 0.0
    %751 = vadd.xlane.f32.xlu0 %v750
    %v752 = vpop.xlane.xlu0 %751
    %v753 = vsel %vm134, %v715, 0.0
    %754 = vadd.xlane.f32.xlu0 %v753
    %v755 = vpop.xlane.xlu0 %754
    %v756 = vsel %vm134, %v716, 0.0
    %757 = vadd.xlane.f32.xlu0 %v756
    %v758 = vpop.xlane.xlu0 %757
    %v759 = vsel %vm134, %v717, 0.0
    %760 = vadd.xlane.f32.xlu0 %v759
    %v761 = vpop.xlane.xlu0 %760
    %v762 = vsel %vm134, %v718, 0.0
    %763 = vadd.xlane.f32.xlu0 %v762
    %v764 = vpop.xlane.xlu0 %763
    %v765 = vsel %vm134, %v719, 0.0
    %766 = vadd.xlane.f32.xlu0 %v765
    %v767 = vpop.xlane.xlu0 %766
    %v768 = vmul.f32 %v722, %v214
    %v769 = vmul.f32 %v725, %v214
    %v770 = vmul.f32 %v728, %v214
    %v771 = vmul.f32 %v731, %v214
    %v772 = vmul.f32 %v734, %v214
    %v773 = vmul.f32 %v737, %v214
    %v774 = vmul.f32 %v740, %v214
    %v775 = vmul.f32 %v743, %v214
    %v776 = vmul.f32 %v746, %v214
    %v777 = vmul.f32 %v749, %v214
    %v778 = vmul.f32 %v752, %v214
    %v779 = vmul.f32 %v755, %v214
    %v780 = vmul.f32 %v758, %v214
    %v781 = vmul.f32 %v761, %v214
    %v782 = vmul.f32 %v764, %v214
    %v783 = vmul.f32 %v767, %v214
    %v784 = vadd.f32 %v768, 1e-05
    %v785 = vadd.f32 %v769, 1e-05
    %v786 = vadd.f32 %v770, 1e-05
    %v787 = vadd.f32 %v771, 1e-05
    %v788 = vadd.f32 %v772, 1e-05
    %v789 = vadd.f32 %v773, 1e-05
    %v790 = vadd.f32 %v774, 1e-05
    %v791 = vadd.f32 %v775, 1e-05
    %v792 = vadd.f32 %v776, 1e-05
    %v793 = vadd.f32 %v777, 1e-05
    %v794 = vadd.f32 %v778, 1e-05
    %v795 = vadd.f32 %v779, 1e-05
    %v796 = vadd.f32 %v780, 1e-05
    %v797 = vadd.f32 %v781, 1e-05
    %v798 = vadd.f32 %v782, 1e-05
    %v799 = vadd.f32 %v783, 1e-05
    %v800 = vrsqrt.pop %v784
    %v801 = vmul.f32 %v800, %v784
    %v802 = vmul.f32 %v801, %v800
    %v803 = vmul.f32 0.5, %v802
    %v804 = vsub.f32 1.5, %v803
    %v805 = vmul.f32 %v800, %v804
    %vm806 = vweird.f32 %v784
    %vm807 = vweird.f32 %v800
    %vm808 = vmor %vm806, %vm807
    %v809 = vsel %vm808, %v800, %v805
    %v810 = vrsqrt.pop %v785
    %v811 = vmul.f32 %v810, %v785
    %v812 = vmul.f32 %v811, %v810
    %v813 = vmul.f32 0.5, %v812
    %v814 = vsub.f32 1.5, %v813
    %v815 = vmul.f32 %v810, %v814
    %vm816 = vweird.f32 %v785
    %vm817 = vweird.f32 %v810
    %vm818 = vmor %vm816, %vm817
    %v819 = vsel %vm818, %v810, %v815
    %v820 = vrsqrt.pop %v786
    %v821 = vmul.f32 %v820, %v786
    %v822 = vmul.f32 %v821, %v820
    %v823 = vmul.f32 0.5, %v822
    %v824 = vsub.f32 1.5, %v823
    %v825 = vmul.f32 %v820, %v824
    %vm826 = vweird.f32 %v786
    %vm827 = vweird.f32 %v820
    %vm828 = vmor %vm826, %vm827
    %v829 = vsel %vm828, %v820, %v825
    %v830 = vrsqrt.pop %v787
    %v831 = vmul.f32 %v830, %v787
    %v832 = vmul.f32 %v831, %v830
    %v833 = vmul.f32 0.5, %v832
    %v834 = vsub.f32 1.5, %v833
    %v835 = vmul.f32 %v830, %v834
    %vm836 = vweird.f32 %v787
    %vm837 = vweird.f32 %v830
    %vm838 = vmor %vm836, %vm837
    %v839 = vsel %vm838, %v830, %v835
    %v840 = vrsqrt.pop %v788
    %v841 = vmul.f32 %v840, %v788
    %v842 = vmul.f32 %v841, %v840
    %v843 = vmul.f32 0.5, %v842
    %v844 = vsub.f32 1.5, %v843
    %v845 = vmul.f32 %v840, %v844
    %vm846 = vweird.f32 %v788
    %vm847 = vweird.f32 %v840
    %vm848 = vmor %vm846, %vm847
    %v849 = vsel %vm848, %v840, %v845
    %v850 = vrsqrt.pop %v789
    %v851 = vmul.f32 %v850, %v789
    %v852 = vmul.f32 %v851, %v850
    %v853 = vmul.f32 0.5, %v852
    %v854 = vsub.f32 1.5, %v853
    %v855 = vmul.f32 %v850, %v854
    %vm856 = vweird.f32 %v789
    %vm857 = vweird.f32 %v850
    %vm858 = vmor %vm856, %vm857
    %v859 = vsel %vm858, %v850, %v855
    %v860 = vrsqrt.pop %v790
    %v861 = vmul.f32 %v860, %v790
    %v862 = vmul.f32 %v861, %v860
    %v863 = vmul.f32 0.5, %v862
    %v864 = vsub.f32 1.5, %v863
    %v865 = vmul.f32 %v860, %v864
    %vm866 = vweird.f32 %v790
    %vm867 = vweird.f32 %v860
    %vm868 = vmor %vm866, %vm867
    %v869 = vsel %vm868, %v860, %v865
    %v870 = vrsqrt.pop %v791
    %v871 = vmul.f32 %v870, %v791
    %v872 = vmul.f32 %v871, %v870
    %v873 = vmul.f32 0.5, %v872
    %v874 = vsub.f32 1.5, %v873
    %v875 = vmul.f32 %v870, %v874
    %vm876 = vweird.f32 %v791
    %vm877 = vweird.f32 %v870
    %vm878 = vmor %vm876, %vm877
    %v879 = vsel %vm878, %v870, %v875
    %v880 = vrsqrt.pop %v792
    %v881 = vmul.f32 %v880, %v792
    %v882 = vmul.f32 %v881, %v880
    %v883 = vmul.f32 0.5, %v882
    %v884 = vsub.f32 1.5, %v883
    %v885 = vmul.f32 %v880, %v884
    %vm886 = vweird.f32 %v792
    %vm887 = vweird.f32 %v880
    %vm888 = vmor %vm886, %vm887
    %v889 = vsel %vm888, %v880, %v885
    %v890 = vrsqrt.pop %v793
    %v891 = vmul.f32 %v890, %v793
    %v892 = vmul.f32 %v891, %v890
    %v893 = vmul.f32 0.5, %v892
    %v894 = vsub.f32 1.5, %v893
    %v895 = vmul.f32 %v890, %v894
    %vm896 = vweird.f32 %v793
    %vm897 = vweird.f32 %v890
    %vm898 = vmor %vm896, %vm897
    %v899 = vsel %vm898, %v890, %v895
    %v900 = vrsqrt.pop %v794
    %v901 = vmul.f32 %v900, %v794
    %v902 = vmul.f32 %v901, %v900
    %v903 = vmul.f32 0.5, %v902
    %v904 = vsub.f32 1.5, %v903
    %v905 = vmul.f32 %v900, %v904
    %vm906 = vweird.f32 %v794
    %vm907 = vweird.f32 %v900
    %vm908 = vmor %vm906, %vm907
    %v909 = vsel %vm908, %v900, %v905
    %v910 = vrsqrt.pop %v795
    %v911 = vmul.f32 %v910, %v795
    %v912 = vmul.f32 %v911, %v910
    %v913 = vmul.f32 0.5, %v912
    %v914 = vsub.f32 1.5, %v913
    %v915 = vmul.f32 %v910, %v914
    %vm916 = vweird.f32 %v795
    %vm917 = vweird.f32 %v910
    %vm918 = vmor %vm916, %vm917
    %v919 = vsel %vm918, %v910, %v915
    %v920 = vrsqrt.pop %v796
    %v921 = vmul.f32 %v920, %v796
    %v922 = vmul.f32 %v921, %v920
    %v923 = vmul.f32 0.5, %v922
    %v924 = vsub.f32 1.5, %v923
    %v925 = vmul.f32 %v920, %v924
    %vm926 = vweird.f32 %v796
    %vm927 = vweird.f32 %v920
    %vm928 = vmor %vm926, %vm927
    %v929 = vsel %vm928, %v920, %v925
    %v930 = vrsqrt.pop %v797
    %v931 = vmul.f32 %v930, %v797
    %v932 = vmul.f32 %v931, %v930
    %v933 = vmul.f32 0.5, %v932
    %v934 = vsub.f32 1.5, %v933
    %v935 = vmul.f32 %v930, %v934
    %vm936 = vweird.f32 %v797
    %vm937 = vweird.f32 %v930
    %vm938 = vmor %vm936, %vm937
    %v939 = vsel %vm938, %v930, %v935
    %v940 = vrsqrt.pop %v798
    %v941 = vmul.f32 %v940, %v798
    %v942 = vmul.f32 %v941, %v940
    %v943 = vmul.f32 0.5, %v942
    %v944 = vsub.f32 1.5, %v943
    %v945 = vmul.f32 %v940, %v944
    %vm946 = vweird.f32 %v798
    %vm947 = vweird.f32 %v940
    %vm948 = vmor %vm946, %vm947
    %v949 = vsel %vm948, %v940, %v945
    %v950 = vrsqrt.pop %v799
    %v951 = vmul.f32 %v950, %v799
    %v952 = vmul.f32 %v951, %v950
    %v953 = vmul.f32 0.5, %v952
    %v954 = vsub.f32 1.5, %v953
    %v955 = vmul.f32 %v950, %v954
    %vm956 = vweird.f32 %v799
    %vm957 = vweird.f32 %v950
    %vm958 = vmor %vm956, %vm957
    %v959 = vsel %vm958, %v950, %v955
    %v960 = vmul.f32 %v688, %v809
    %v961 = vmul.f32 %v689, %v819
    %v962 = vmul.f32 %v690, %v829
    %v963 = vmul.f32 %v691, %v839
    %v964 = vmul.f32 %v692, %v849
    %v965 = vmul.f32 %v693, %v859
    %v966 = vmul.f32 %v694, %v869
    %v967 = vmul.f32 %v695, %v879
    %v968 = vmul.f32 %v696, %v889
    %v969 = vmul.f32 %v697, %v899
    %v970 = vmul.f32 %v698, %v909
    %v971 = vmul.f32 %v699, %v919
    %v972 = vmul.f32 %v700, %v929
    %v973 = vmul.f32 %v701, %v939
    %v974 = vmul.f32 %v702, %v949
    %v975 = vmul.f32 %v703, %v959
    %v976 = vperm.slane %v386, 2
    %v977 = vmul.f32 %v960, %v976
    %v978 = vmul.f32 %v961, %v976
    %v979 = vmul.f32 %v962, %v976
    %v980 = vmul.f32 %v963, %v976
    %v981 = vmul.f32 %v964, %v976
    %v982 = vmul.f32 %v965, %v976
    %v983 = vmul.f32 %v966, %v976
    %v984 = vmul.f32 %v967, %v976
    %v985 = vmul.f32 %v968, %v976
    %v986 = vmul.f32 %v969, %v976
    %v987 = vmul.f32 %v970, %v976
    %v988 = vmul.f32 %v971, %v976
    %v989 = vmul.f32 %v972, %v976
    %v990 = vmul.f32 %v973, %v976
    %v991 = vmul.f32 %v974, %v976
    %v992 = vmul.f32 %v975, %v976
    %v993 = vperm.slane %v386, 3
    %v994 = vadd.f32 %v977, %v993
    %v995 = vadd.f32 %v978, %v993
    %v996 = vadd.f32 %v979, %v993
    %v997 = vadd.f32 %v980, %v993
    %v998 = vadd.f32 %v981, %v993
    %v999 = vadd.f32 %v982, %v993
    %v1000 = vadd.f32 %v983, %v993
    %v1001 = vadd.f32 %v984, %v993
    %v1002 = vadd.f32 %v985, %v993
    %v1003 = vadd.f32 %v986, %v993
    %v1004 = vadd.f32 %v987, %v993
    %v1005 = vadd.f32 %v988, %v993
    %v1006 = vadd.f32 %v989, %v993
    %v1007 = vadd.f32 %v990, %v993
    %v1008 = vadd.f32 %v991, %v993
    %v1009 = vadd.f32 %v992, %v993
    %v1010 = vld [vmem:[%s3] sm:$0xf]
    %v1011 = vld [vmem:[%s3 + $0x4] sm:$0xf]
    %v1012 = vld [vmem:[%s3 + $0x8] sm:$0xf]
    %v1013 = vld [vmem:[%s3 + $0xc] sm:$0xf]
    %v1014 = vpack.c.bf16 %v378, %v377
    %v1015 = vpack.c.bf16 %v380, %v379
    %v1016 = vpack.c.bf16 %v382, %v381
    %v1017 = vpack.c.bf16 %v384, %v383
    %v1022 = vunpack.c.l.b16 %v1010
    %v1023 = vunpack.c.l.b16 %v1011
    %v1024 = vunpack.c.l.b16 %v1012
    %v1025 = vunpack.c.l.b16 %v1013
    %v1026 = vpack.c.b16 %v1023, %v1022
    %v1027 = vpack.c.b16 %v1025, %v1024
    %v1031 = vsel %vm134, %v1014, 0
    %v1034 = vsel %vm134, %v1015, 0
    %v1037 = vsel %vm134, %v1016, 0
    %v1040 = vsel %vm134, %v1017, 0
    %1042 = vmatpush.bf16.msra.mxu0 0
    %1043 = vmatpush.bf16.msra.mxu0 0
    %1044 = vmatpush.bf16.msra.mxu0 0
    %1045 = vmatpush.bf16.msra.mxu0 0
    %1046 = vmatpush.bf16.msra.mxu0 0
    %1047 = vmatpush.bf16.msra.mxu0 0
    %1048 = vmatpush.bf16.msra.mxu0 %v1027
    %1049 = vmatpush.bf16.msra.mxu0 %v1026
    %1050 = vmatmul.bf16.gmra.mxu0 %v1031
    %v1051 = vpop.f32.mrf.mxu0
    %v1052 = vadd.f32 0.0, %v1051
    %v1053 = vpop.f32.mrf.mxu0
    %v1054 = vadd.f32 0.0, %v1053
    %1055 = vmatmul.bf16.gmra.mxu0 %v1034
    %v1056 = vpop.f32.mrf.mxu0
    %v1057 = vadd.f32 0.0, %v1056
    %v1058 = vpop.f32.mrf.mxu0
    %v1059 = vadd.f32 0.0, %v1058
    %1060 = vmatmul.bf16.gmra.mxu0 %v1037
    %v1061 = vpop.f32.mrf.mxu0
    %v1062 = vadd.f32 0.0, %v1061
    %v1063 = vpop.f32.mrf.mxu0
    %v1064 = vadd.f32 0.0, %v1063
    %1065 = vmatmul.bf16.gmra.mxu0 %v1040
    %v1066 = vpop.f32.mrf.mxu0
    %v1067 = vadd.f32 0.0, %v1066
    %v1068 = vpop.f32.mrf.mxu0
    %v1069 = vadd.f32 0.0, %v1068
    %1070 = vdwg.mxu0
    %s1071 = scalar_lea.vmem %s3, 16
    %v1072 = vld [vmem:[%s1071] sm:$0xf]
    %v1073 = vld [vmem:[%s1071 + $0x4] sm:$0xf]
    %v1074 = vld [vmem:[%s1071 + $0x8] sm:$0xf]
    %v1075 = vld [vmem:[%s1071 + $0xc] sm:$0xf]
    %v1080 = vunpack.c.l.b16 %v1072
    %v1081 = vunpack.c.l.b16 %v1073
    %v1082 = vunpack.c.l.b16 %v1074
    %v1083 = vunpack.c.l.b16 %v1075
    %v1084 = vpack.c.b16 %v1081, %v1080
    %v1085 = vpack.c.b16 %v1083, %v1082
    %1088 = vmatpush.bf16.msra.mxu0 0
    %1089 = vmatpush.bf16.msra.mxu0 0
    %1090 = vmatpush.bf16.msra.mxu0 0
    %1091 = vmatpush.bf16.msra.mxu0 0
    %1092 = vmatpush.bf16.msra.mxu0 0
    %1093 = vmatpush.bf16.msra.mxu0 0
    %1094 = vmatpush.bf16.msra.mxu0 %v1085
    %1095 = vmatpush.bf16.msra.mxu0 %v1084
    %1096 = vmatmul.bf16.gmra.mxu0 %v1031
    %v1097 = vpop.f32.mrf.mxu0
    %v1098 = vadd.f32 0.0, %v1097
    %v1099 = vpop.f32.mrf.mxu0
    %v1100 = vadd.f32 0.0, %v1099
    %1101 = vmatmul.bf16.gmra.mxu0 %v1034
    %v1102 = vpop.f32.mrf.mxu0
    %v1103 = vadd.f32 0.0, %v1102
    %v1104 = vpop.f32.mrf.mxu0
    %v1105 = vadd.f32 0.0, %v1104
    %1106 = vmatmul.bf16.gmra.mxu0 %v1037
    %v1107 = vpop.f32.mrf.mxu0
    %v1108 = vadd.f32 0.0, %v1107
    %v1109 = vpop.f32.mrf.mxu0
    %v1110 = vadd.f32 0.0, %v1109
    %1111 = vmatmul.bf16.gmra.mxu0 %v1040
    %v1112 = vpop.f32.mrf.mxu0
    %v1113 = vadd.f32 0.0, %v1112
    %v1114 = vpop.f32.mrf.mxu0
    %v1115 = vadd.f32 0.0, %v1114
    %1116 = vdwg.mxu0
    %v1117 = vld [vmem:[#allocation2] sm:$0xf]
    %v1118 = vld [vmem:[#allocation2 + $0x4] sm:$0xf]
    %v1119 = vld [vmem:[#allocation2 + $0x8] sm:$0xf]
    %v1120 = vld [vmem:[#allocation2 + $0xc] sm:$0xf]
    %v1121 = vld [vmem:[#allocation2 + $0x10] sm:$0xf]
    %v1122 = vld [vmem:[#allocation2 + $0x14] sm:$0xf]
    %v1123 = vld [vmem:[#allocation2 + $0x18] sm:$0xf]
    %v1124 = vld [vmem:[#allocation2 + $0x1c] sm:$0xf]
    %v1125 = vld [vmem:[#allocation2 + $0x20] sm:$0xf]
    %v1126 = vld [vmem:[#allocation2 + $0x24] sm:$0xf]
    %v1127 = vld [vmem:[#allocation2 + $0x28] sm:$0xf]
    %v1128 = vld [vmem:[#allocation2 + $0x2c] sm:$0xf]
    %v1129 = vld [vmem:[#allocation2 + $0x30] sm:$0xf]
    %v1130 = vld [vmem:[#allocation2 + $0x34] sm:$0xf]
    %v1131 = vld [vmem:[#allocation2 + $0x38] sm:$0xf]
    %v1132 = vld [vmem:[#allocation2 + $0x3c] sm:$0xf]
    %v1133 = vpack.c.bf16 %v1054, %v1052
    %v1134 = vpack.c.bf16 %v1059, %v1057
    %v1135 = vpack.c.bf16 %v1064, %v1062
    %v1136 = vpack.c.bf16 %v1069, %v1067
    %v1137 = vpack.c.bf16 %v1100, %v1098
    %v1138 = vpack.c.bf16 %v1105, %v1103
    %v1139 = vpack.c.bf16 %v1110, %v1108
    %v1140 = vpack.c.bf16 %v1115, %v1113
    %s1141 = scalar_lea.vmem %s4, 8
    %v1142 = vld [vmem:[%s1141] sm:$0xf]
    %s1143 = scalar_lea.vmem %s2, 48
    %v1144 = vld [vmem:[%s1143] sm:$0xf]
    %v1145 = vld [vmem:[%s1143 + $0x4] sm:$0xf]
    %v1146 = vld [vmem:[%s1143 + $0x8] sm:$0xf]
    %v1147 = vld [vmem:[%s1143 + $0xc] sm:$0xf]
    %v1148 = vpack.c.bf16 %v995, %v994
    %v1149 = vpack.c.bf16 %v997, %v996
    %v1150 = vpack.c.bf16 %v999, %v998
    %v1151 = vpack.c.bf16 %v1001, %v1000
    %v1152 = vpack.c.bf16 %v1003, %v1002
    %v1153 = vpack.c.bf16 %v1005, %v1004
    %v1154 = vpack.c.bf16 %v1007, %v1006
    %v1155 = vpack.c.bf16 %v1009, %v1008
    %v1160 = vunpack.c.l.b16 %v1144
    %v1161 = vunpack.c.l.b16 %v1145
    %v1162 = vunpack.c.l.b16 %v1146
    %v1163 = vunpack.c.l.b16 %v1147
    %v1164 = vpack.c.b16 %v1161, %v1160
    %v1165 = vpack.c.b16 %v1163, %v1162
    %v1169 = vsel %vm134, %v1148, 0
    %v1172 = vsel %vm134, %v1149, 0
    %v1175 = vsel %vm134, %v1150, 0
    %v1178 = vsel %vm134, %v1151, 0
    %v1181 = vsel %vm134, %v1152, 0
    %v1184 = vsel %vm134, %v1153, 0
    %v1187 = vsel %vm134, %v1154, 0
    %v1190 = vsel %vm134, %v1155, 0
    %1192 = vmatpush.bf16.msra.mxu0 0
    %1193 = vmatpush.bf16.msra.mxu0 0
    %1194 = vmatpush.bf16.msra.mxu0 0
    %1195 = vmatpush.bf16.msra.mxu0 0
    %1196 = vmatpush.bf16.msra.mxu0 0
    %1197 = vmatpush.bf16.msra.mxu0 0
    %1198 = vmatpush.bf16.msra.mxu0 %v1165
    %1199 = vmatpush.bf16.msra.mxu0 %v1164
    %1200 = vmatmul.bf16.gmra.mxu0 %v1169
    %v1201 = vpop.f32.mrf.mxu0
    %v1202 = vadd.f32 0.0, %v1201
    %v1203 = vpop.f32.mrf.mxu0
    %v1204 = vadd.f32 0.0, %v1203
    %1205 = vmatmul.bf16.gmra.mxu0 %v1172
    %v1206 = vpop.f32.mrf.mxu0
    %v1207 = vadd.f32 0.0, %v1206
    %v1208 = vpop.f32.mrf.mxu0
    %v1209 = vadd.f32 0.0, %v1208
    %1210 = vmatmul.bf16.gmra.mxu0 %v1175
    %v1211 = vpop.f32.mrf.mxu0
    %v1212 = vadd.f32 0.0, %v1211
    %v1213 = vpop.f32.mrf.mxu0
    %v1214 = vadd.f32 0.0, %v1213
    %1215 = vmatmul.bf16.gmra.mxu0 %v1178
    %v1216 = vpop.f32.mrf.mxu0
    %v1217 = vadd.f32 0.0, %v1216
    %v1218 = vpop.f32.mrf.mxu0
    %v1219 = vadd.f32 0.0, %v1218
    %1220 = vmatmul.bf16.gmra.mxu0 %v1181
    %v1221 = vpop.f32.mrf.mxu0
    %v1222 = vadd.f32 0.0, %v1221
    %v1223 = vpop.f32.mrf.mxu0
    %v1224 = vadd.f32 0.0, %v1223
    %1225 = vmatmul.bf16.gmra.mxu0 %v1184
    %v1226 = vpop.f32.mrf.mxu0
    %v1227 = vadd.f32 0.0, %v1226
    %v1228 = vpop.f32.mrf.mxu0
    %v1229 = vadd.f32 0.0, %v1228
    %1230 = vmatmul.bf16.gmra.mxu0 %v1187
    %v1231 = vpop.f32.mrf.mxu0
    %v1232 = vadd.f32 0.0, %v1231
    %v1233 = vpop.f32.mrf.mxu0
    %v1234 = vadd.f32 0.0, %v1233
    %1235 = vmatmul.bf16.gmra.mxu0 %v1190
    %v1236 = vpop.f32.mrf.mxu0
    %v1237 = vadd.f32 0.0, %v1236
    %v1238 = vpop.f32.mrf.mxu0
    %v1239 = vadd.f32 0.0, %v1238
    %1240 = vdwg.mxu0
    %v1257 = vunpack.c.l.b16 %v1117
    %v1258 = vunpack.c.l.b16 %v1118
    %v1259 = vunpack.c.l.b16 %v1119
    %v1260 = vunpack.c.l.b16 %v1120
    %v1261 = vunpack.c.l.b16 %v1121
    %v1262 = vunpack.c.l.b16 %v1122
    %v1263 = vunpack.c.l.b16 %v1123
    %v1264 = vunpack.c.l.b16 %v1124
    %v1265 = vunpack.c.l.b16 %v1125
    %v1266 = vunpack.c.l.b16 %v1126
    %v1267 = vunpack.c.l.b16 %v1127
    %v1268 = vunpack.c.l.b16 %v1128
    %v1269 = vunpack.c.l.b16 %v1129
    %v1270 = vunpack.c.l.b16 %v1130
    %v1271 = vunpack.c.l.b16 %v1131
    %v1272 = vunpack.c.l.b16 %v1132
    %v1273 = vpack.c.b16 %v1258, %v1257
    %v1274 = vpack.c.b16 %v1260, %v1259
    %v1275 = vpack.c.b16 %v1262, %v1261
    %v1276 = vpack.c.b16 %v1264, %v1263
    %v1277 = vpack.c.b16 %v1266, %v1265
    %v1278 = vpack.c.b16 %v1268, %v1267
    %v1279 = vpack.c.b16 %v1270, %v1269
    %v1280 = vpack.c.b16 %v1272, %v1271
    %1289 = vmatpush.bf16.msra.mxu0 %v1140
    %1290 = vmatpush.bf16.msra.mxu0 %v1139
    %1291 = vmatpush.bf16.msra.mxu0 %v1138
    %1292 = vmatpush.bf16.msra.mxu0 %v1137
    %1293 = vmatpush.bf16.msra.mxu0 %v1136
    %1294 = vmatpush.bf16.msra.mxu0 %v1135
    %1295 = vmatpush.bf16.msra.mxu0 %v1134
    %1296 = vmatpush.bf16.msra.mxu0 %v1133
    %1297 = vmatmul.bf16.gmra.mxu0 %v1273
    %v1298 = vpop.f32.mrf.mxu0
    %v1299 = vadd.f32 %v1202, %v1298
    %v1300 = vpop.f32.mrf.mxu0
    %v1301 = vadd.f32 %v1204, %v1300
    %1302 = vmatmul.bf16.gmra.mxu0 %v1274
    %v1303 = vpop.f32.mrf.mxu0
    %v1304 = vadd.f32 %v1207, %v1303
    %v1305 = vpop.f32.mrf.mxu0
    %v1306 = vadd.f32 %v1209, %v1305
    %1307 = vmatmul.bf16.gmra.mxu0 %v1275
    %v1308 = vpop.f32.mrf.mxu0
    %v1309 = vadd.f32 %v1212, %v1308
    %v1310 = vpop.f32.mrf.mxu0
    %v1311 = vadd.f32 %v1214, %v1310
    %1312 = vmatmul.bf16.gmra.mxu0 %v1276
    %v1313 = vpop.f32.mrf.mxu0
    %v1314 = vadd.f32 %v1217, %v1313
    %v1315 = vpop.f32.mrf.mxu0
    %v1316 = vadd.f32 %v1219, %v1315
    %1317 = vmatmul.bf16.gmra.mxu0 %v1277
    %v1318 = vpop.f32.mrf.mxu0
    %v1319 = vadd.f32 %v1222, %v1318
    %v1320 = vpop.f32.mrf.mxu0
    %v1321 = vadd.f32 %v1224, %v1320
    %1322 = vmatmul.bf16.gmra.mxu0 %v1278
    %v1323 = vpop.f32.mrf.mxu0
    %v1324 = vadd.f32 %v1227, %v1323
    %v1325 = vpop.f32.mrf.mxu0
    %v1326 = vadd.f32 %v1229, %v1325
    %1327 = vmatmul.bf16.gmra.mxu0 %v1279
    %v1328 = vpop.f32.mrf.mxu0
    %v1329 = vadd.f32 %v1232, %v1328
    %v1330 = vpop.f32.mrf.mxu0
    %v1331 = vadd.f32 %v1234, %v1330
    %1332 = vmatmul.bf16.gmra.mxu0 %v1280
    %v1333 = vpop.f32.mrf.mxu0
    %v1334 = vadd.f32 %v1237, %v1333
    %v1335 = vpop.f32.mrf.mxu0
    %v1336 = vadd.f32 %v1239, %v1335
    %1337 = vdwg.mxu0
    %v1338 = vperm.slane %v1142, 0
    %v1339 = vadd.f32 %v1299, %v1338
    %v1340 = vadd.f32 %v1301, %v1338
    %v1341 = vadd.f32 %v1304, %v1338
    %v1342 = vadd.f32 %v1306, %v1338
    %v1343 = vadd.f32 %v1309, %v1338
    %v1344 = vadd.f32 %v1311, %v1338
    %v1345 = vadd.f32 %v1314, %v1338
    %v1346 = vadd.f32 %v1316, %v1338
    %v1347 = vadd.f32 %v1319, %v1338
    %v1348 = vadd.f32 %v1321, %v1338
    %v1349 = vadd.f32 %v1324, %v1338
    %v1350 = vadd.f32 %v1326, %v1338
    %v1351 = vadd.f32 %v1329, %v1338
    %v1352 = vadd.f32 %v1331, %v1338
    %v1353 = vadd.f32 %v1334, %v1338
    %v1354 = vadd.f32 %v1336, %v1338
    %s1355 = scalar_lea.vmem %s2, 64
    %v1356 = vld [vmem:[%s1355] sm:$0xf]
    %v1357 = vld [vmem:[%s1355 + $0x4] sm:$0xf]
    %v1358 = vld [vmem:[%s1355 + $0x8] sm:$0xf]
    %v1359 = vld [vmem:[%s1355 + $0xc] sm:$0xf]
    %v1360 = vmax.f32 %v1339, 0.0
    %v1361 = vmax.f32 %v1340, 0.0
    %v1362 = vmax.f32 %v1341, 0.0
    %v1363 = vmax.f32 %v1342, 0.0
    %v1364 = vmax.f32 %v1343, 0.0
    %v1365 = vmax.f32 %v1344, 0.0
    %v1366 = vmax.f32 %v1345, 0.0
    %v1367 = vmax.f32 %v1346, 0.0
    %v1368 = vmax.f32 %v1347, 0.0
    %v1369 = vmax.f32 %v1348, 0.0
    %v1370 = vmax.f32 %v1349, 0.0
    %v1371 = vmax.f32 %v1350, 0.0
    %v1372 = vmax.f32 %v1351, 0.0
    %v1373 = vmax.f32 %v1352, 0.0
    %v1374 = vmax.f32 %v1353, 0.0
    %v1375 = vmax.f32 %v1354, 0.0
    %v1376 = vpack.c.bf16 %v1361, %v1360
    %v1377 = vpack.c.bf16 %v1363, %v1362
    %v1378 = vpack.c.bf16 %v1365, %v1364
    %v1379 = vpack.c.bf16 %v1367, %v1366
    %v1380 = vpack.c.bf16 %v1369, %v1368
    %v1381 = vpack.c.bf16 %v1371, %v1370
    %v1382 = vpack.c.bf16 %v1373, %v1372
    %v1383 = vpack.c.bf16 %v1375, %v1374
    %v1384 = vperm.slane %v1142, 1
    %v1389 = vunpack.c.l.b16 %v1356
    %v1390 = vunpack.c.l.b16 %v1357
    %v1391 = vunpack.c.l.b16 %v1358
    %v1392 = vunpack.c.l.b16 %v1359
    %v1393 = vpack.c.b16 %v1390, %v1389
    %v1394 = vpack.c.b16 %v1392, %v1391
    %v1398 = vsel %vm134, %v1376, 0
    %v1401 = vsel %vm134, %v1377, 0
    %v1404 = vsel %vm134, %v1378, 0
    %v1407 = vsel %vm134, %v1379, 0
    %v1410 = vsel %vm134, %v1380, 0
    %v1413 = vsel %vm134, %v1381, 0
    %v1416 = vsel %vm134, %v1382, 0
    %v1419 = vsel %vm134, %v1383, 0
    %1421 = vmatpush.bf16.msra.mxu0 0
    %1422 = vmatpush.bf16.msra.mxu0 0
    %1423 = vmatpush.bf16.msra.mxu0 0
    %1424 = vmatpush.bf16.msra.mxu0 0
    %1425 = vmatpush.bf16.msra.mxu0 0
    %1426 = vmatpush.bf16.msra.mxu0 0
    %1427 = vmatpush.bf16.msra.mxu0 %v1394
    %1428 = vmatpush.bf16.msra.mxu0 %v1393
    %1429 = vmatmul.bf16.gmra.mxu0 %v1398
    %v1430 = vpop.f32.mrf.mxu0
    %v1431 = vadd.f32 %v1384, %v1430
    %v1432 = vpop.f32.mrf.mxu0
    %v1433 = vadd.f32 %v1384, %v1432
    %1434 = vmatmul.bf16.gmra.mxu0 %v1401
    %v1435 = vpop.f32.mrf.mxu0
    %v1436 = vadd.f32 %v1384, %v1435
    %v1437 = vpop.f32.mrf.mxu0
    %v1438 = vadd.f32 %v1384, %v1437
    %1439 = vmatmul.bf16.gmra.mxu0 %v1404
    %v1440 = vpop.f32.mrf.mxu0
    %v1441 = vadd.f32 %v1384, %v1440
    %v1442 = vpop.f32.mrf.mxu0
    %v1443 = vadd.f32 %v1384, %v1442
    %1444 = vmatmul.bf16.gmra.mxu0 %v1407
    %v1445 = vpop.f32.mrf.mxu0
    %v1446 = vadd.f32 %v1384, %v1445
    %v1447 = vpop.f32.mrf.mxu0
    %v1448 = vadd.f32 %v1384, %v1447
    %1449 = vmatmul.bf16.gmra.mxu0 %v1410
    %v1450 = vpop.f32.mrf.mxu0
    %v1451 = vadd.f32 %v1384, %v1450
    %v1452 = vpop.f32.mrf.mxu0
    %v1453 = vadd.f32 %v1384, %v1452
    %1454 = vmatmul.bf16.gmra.mxu0 %v1413
    %v1455 = vpop.f32.mrf.mxu0
    %v1456 = vadd.f32 %v1384, %v1455
    %v1457 = vpop.f32.mrf.mxu0
    %v1458 = vadd.f32 %v1384, %v1457
    %1459 = vmatmul.bf16.gmra.mxu0 %v1416
    %v1460 = vpop.f32.mrf.mxu0
    %v1461 = vadd.f32 %v1384, %v1460
    %v1462 = vpop.f32.mrf.mxu0
    %v1463 = vadd.f32 %v1384, %v1462
    %1464 = vmatmul.bf16.gmra.mxu0 %v1419
    %v1465 = vpop.f32.mrf.mxu0
    %v1466 = vadd.f32 %v1384, %v1465
    %v1467 = vpop.f32.mrf.mxu0
    %v1468 = vadd.f32 %v1384, %v1467
    %1469 = vdwg.mxu0
    %v1470 = vmax.f32 %v1431, 0.0
    %v1471 = vmax.f32 %v1433, 0.0
    %v1472 = vmax.f32 %v1436, 0.0
    %v1473 = vmax.f32 %v1438, 0.0
    %v1474 = vmax.f32 %v1441, 0.0
    %v1475 = vmax.f32 %v1443, 0.0
    %v1476 = vmax.f32 %v1446, 0.0
    %v1477 = vmax.f32 %v1448, 0.0
    %v1478 = vmax.f32 %v1451, 0.0
    %v1479 = vmax.f32 %v1453, 0.0
    %v1480 = vmax.f32 %v1456, 0.0
    %v1481 = vmax.f32 %v1458, 0.0
    %v1482 = vmax.f32 %v1461, 0.0
    %v1483 = vmax.f32 %v1463, 0.0
    %v1484 = vmax.f32 %v1466, 0.0
    %v1485 = vmax.f32 %v1468, 0.0
    %v1486 = vsel %vm134, %v1470, 0.0
    %1487 = vadd.xlane.f32.xlu0 %v1486
    %v1488 = vpop.xlane.xlu0 %1487
    %v1489 = vsel %vm134, %v1471, 0.0
    %1490 = vadd.xlane.f32.xlu0 %v1489
    %v1491 = vpop.xlane.xlu0 %1490
    %v1492 = vsel %vm134, %v1472, 0.0
    %1493 = vadd.xlane.f32.xlu0 %v1492
    %v1494 = vpop.xlane.xlu0 %1493
    %v1495 = vsel %vm134, %v1473, 0.0
    %1496 = vadd.xlane.f32.xlu0 %v1495
    %v1497 = vpop.xlane.xlu0 %1496
    %v1498 = vsel %vm134, %v1474, 0.0
    %1499 = vadd.xlane.f32.xlu0 %v1498
    %v1500 = vpop.xlane.xlu0 %1499
    %v1501 = vsel %vm134, %v1475, 0.0
    %1502 = vadd.xlane.f32.xlu0 %v1501
    %v1503 = vpop.xlane.xlu0 %1502
    %v1504 = vsel %vm134, %v1476, 0.0
    %1505 = vadd.xlane.f32.xlu0 %v1504
    %v1506 = vpop.xlane.xlu0 %1505
    %v1507 = vsel %vm134, %v1477, 0.0
    %1508 = vadd.xlane.f32.xlu0 %v1507
    %v1509 = vpop.xlane.xlu0 %1508
    %v1510 = vsel %vm134, %v1478, 0.0
    %1511 = vadd.xlane.f32.xlu0 %v1510
    %v1512 = vpop.xlane.xlu0 %1511
    %v1513 = vsel %vm134, %v1479, 0.0
    %1514 = vadd.xlane.f32.xlu0 %v1513
    %v1515 = vpop.xlane.xlu0 %1514
    %v1516 = vsel %vm134, %v1480, 0.0
    %1517 = vadd.xlane.f32.xlu0 %v1516
    %v1518 = vpop.xlane.xlu0 %1517
    %v1519 = vsel %vm134, %v1481, 0.0
    %1520 = vadd.xlane.f32.xlu0 %v1519
    %v1521 = vpop.xlane.xlu0 %1520
    %v1522 = vsel %vm134, %v1482, 0.0
    %1523 = vadd.xlane.f32.xlu0 %v1522
    %v1524 = vpop.xlane.xlu0 %1523
    %v1525 = vsel %vm134, %v1483, 0.0
    %1526 = vadd.xlane.f32.xlu0 %v1525
    %v1527 = vpop.xlane.xlu0 %1526
    %v1528 = vsel %vm134, %v1484, 0.0
    %1529 = vadd.xlane.f32.xlu0 %v1528
    %v1530 = vpop.xlane.xlu0 %1529
    %v1531 = vsel %vm134, %v1485, 0.0
    %1532 = vadd.xlane.f32.xlu0 %v1531
    %v1533 = vpop.xlane.xlu0 %1532
    %v1534 = vmul.f32 %v1488, %v214
    %v1535 = vmul.f32 %v1491, %v214
    %v1536 = vmul.f32 %v1494, %v214
    %v1537 = vmul.f32 %v1497, %v214
    %v1538 = vmul.f32 %v1500, %v214
    %v1539 = vmul.f32 %v1503, %v214
    %v1540 = vmul.f32 %v1506, %v214
    %v1541 = vmul.f32 %v1509, %v214
    %v1542 = vmul.f32 %v1512, %v214
    %v1543 = vmul.f32 %v1515, %v214
    %v1544 = vmul.f32 %v1518, %v214
    %v1545 = vmul.f32 %v1521, %v214
    %v1546 = vmul.f32 %v1524, %v214
    %v1547 = vmul.f32 %v1527, %v214
    %v1548 = vmul.f32 %v1530, %v214
    %v1549 = vmul.f32 %v1533, %v214
    %v1550 = vsub.f32 %v1470, %v1534
    %v1551 = vsub.f32 %v1471, %v1535
    %v1552 = vsub.f32 %v1472, %v1536
    %v1553 = vsub.f32 %v1473, %v1537
    %v1554 = vsub.f32 %v1474, %v1538
    %v1555 = vsub.f32 %v1475, %v1539
    %v1556 = vsub.f32 %v1476, %v1540
    %v1557 = vsub.f32 %v1477, %v1541
    %v1558 = vsub.f32 %v1478, %v1542
    %v1559 = vsub.f32 %v1479, %v1543
    %v1560 = vsub.f32 %v1480, %v1544
    %v1561 = vsub.f32 %v1481, %v1545
    %v1562 = vsub.f32 %v1482, %v1546
    %v1563 = vsub.f32 %v1483, %v1547
    %v1564 = vsub.f32 %v1484, %v1548
    %v1565 = vsub.f32 %v1485, %v1549
    %v1566 = vmul.f32 %v1550, %v1550
    %v1567 = vmul.f32 %v1551, %v1551
    %v1568 = vmul.f32 %v1552, %v1552
    %v1569 = vmul.f32 %v1553, %v1553
    %v1570 = vmul.f32 %v1554, %v1554
    %v1571 = vmul.f32 %v1555, %v1555
    %v1572 = vmul.f32 %v1556, %v1556
    %v1573 = vmul.f32 %v1557, %v1557
    %v1574 = vmul.f32 %v1558, %v1558
    %v1575 = vmul.f32 %v1559, %v1559
    %v1576 = vmul.f32 %v1560, %v1560
    %v1577 = vmul.f32 %v1561, %v1561
    %v1578 = vmul.f32 %v1562, %v1562
    %v1579 = vmul.f32 %v1563, %v1563
    %v1580 = vmul.f32 %v1564, %v1564
    %v1581 = vmul.f32 %v1565, %v1565
    %v1582 = vsel %vm134, %v1566, 0.0
    %1583 = vadd.xlane.f32.xlu0 %v1582
    %v1584 = vpop.xlane.xlu0 %1583
    %v1585 = vsel %vm134, %v1567, 0.0
    %1586 = vadd.xlane.f32.xlu0 %v1585
    %v1587 = vpop.xlane.xlu0 %1586
    %v1588 = vsel %vm134, %v1568, 0.0
    %1589 = vadd.xlane.f32.xlu0 %v1588
    %v1590 = vpop.xlane.xlu0 %1589
    %v1591 = vsel %vm134, %v1569, 0.0
    %1592 = vadd.xlane.f32.xlu0 %v1591
    %v1593 = vpop.xlane.xlu0 %1592
    %v1594 = vsel %vm134, %v1570, 0.0
    %1595 = vadd.xlane.f32.xlu0 %v1594
    %v1596 = vpop.xlane.xlu0 %1595
    %v1597 = vsel %vm134, %v1571, 0.0
    %1598 = vadd.xlane.f32.xlu0 %v1597
    %v1599 = vpop.xlane.xlu0 %1598
    %v1600 = vsel %vm134, %v1572, 0.0
    %1601 = vadd.xlane.f32.xlu0 %v1600
    %v1602 = vpop.xlane.xlu0 %1601
    %v1603 = vsel %vm134, %v1573, 0.0
    %1604 = vadd.xlane.f32.xlu0 %v1603
    %v1605 = vpop.xlane.xlu0 %1604
    %v1606 = vsel %vm134, %v1574, 0.0
    %1607 = vadd.xlane.f32.xlu0 %v1606
    %v1608 = vpop.xlane.xlu0 %1607
    %v1609 = vsel %vm134, %v1575, 0.0
    %1610 = vadd.xlane.f32.xlu0 %v1609
    %v1611 = vpop.xlane.xlu0 %1610
    %v1612 = vsel %vm134, %v1576, 0.0
    %1613 = vadd.xlane.f32.xlu0 %v1612
    %v1614 = vpop.xlane.xlu0 %1613
    %v1615 = vsel %vm134, %v1577, 0.0
    %1616 = vadd.xlane.f32.xlu0 %v1615
    %v1617 = vpop.xlane.xlu0 %1616
    %v1618 = vsel %vm134, %v1578, 0.0
    %1619 = vadd.xlane.f32.xlu0 %v1618
    %v1620 = vpop.xlane.xlu0 %1619
    %v1621 = vsel %vm134, %v1579, 0.0
    %1622 = vadd.xlane.f32.xlu0 %v1621
    %v1623 = vpop.xlane.xlu0 %1622
    %v1624 = vsel %vm134, %v1580, 0.0
    %1625 = vadd.xlane.f32.xlu0 %v1624
    %v1626 = vpop.xlane.xlu0 %1625
    %v1627 = vsel %vm134, %v1581, 0.0
    %1628 = vadd.xlane.f32.xlu0 %v1627
    %v1629 = vpop.xlane.xlu0 %1628
    %v1630 = vmul.f32 %v1584, %v214
    %v1631 = vmul.f32 %v1587, %v214
    %v1632 = vmul.f32 %v1590, %v214
    %v1633 = vmul.f32 %v1593, %v214
    %v1634 = vmul.f32 %v1596, %v214
    %v1635 = vmul.f32 %v1599, %v214
    %v1636 = vmul.f32 %v1602, %v214
    %v1637 = vmul.f32 %v1605, %v214
    %v1638 = vmul.f32 %v1608, %v214
    %v1639 = vmul.f32 %v1611, %v214
    %v1640 = vmul.f32 %v1614, %v214
    %v1641 = vmul.f32 %v1617, %v214
    %v1642 = vmul.f32 %v1620, %v214
    %v1643 = vmul.f32 %v1623, %v214
    %v1644 = vmul.f32 %v1626, %v214
    %v1645 = vmul.f32 %v1629, %v214
    %v1646 = vadd.f32 %v1630, 1e-05
    %v1647 = vadd.f32 %v1631, 1e-05
    %v1648 = vadd.f32 %v1632, 1e-05
    %v1649 = vadd.f32 %v1633, 1e-05
    %v1650 = vadd.f32 %v1634, 1e-05
    %v1651 = vadd.f32 %v1635, 1e-05
    %v1652 = vadd.f32 %v1636, 1e-05
    %v1653 = vadd.f32 %v1637, 1e-05
    %v1654 = vadd.f32 %v1638, 1e-05
    %v1655 = vadd.f32 %v1639, 1e-05
    %v1656 = vadd.f32 %v1640, 1e-05
    %v1657 = vadd.f32 %v1641, 1e-05
    %v1658 = vadd.f32 %v1642, 1e-05
    %v1659 = vadd.f32 %v1643, 1e-05
    %v1660 = vadd.f32 %v1644, 1e-05
    %v1661 = vadd.f32 %v1645, 1e-05
    %v1662 = vrsqrt.pop %v1646
    %v1663 = vmul.f32 %v1662, %v1646
    %v1664 = vmul.f32 %v1663, %v1662
    %v1665 = vmul.f32 0.5, %v1664
    %v1666 = vsub.f32 1.5, %v1665
    %v1667 = vmul.f32 %v1662, %v1666
    %vm1668 = vweird.f32 %v1646
    %vm1669 = vweird.f32 %v1662
    %vm1670 = vmor %vm1668, %vm1669
    %v1671 = vsel %vm1670, %v1662, %v1667
    %v1672 = vrsqrt.pop %v1647
    %v1673 = vmul.f32 %v1672, %v1647
    %v1674 = vmul.f32 %v1673, %v1672
    %v1675 = vmul.f32 0.5, %v1674
    %v1676 = vsub.f32 1.5, %v1675
    %v1677 = vmul.f32 %v1672, %v1676
    %vm1678 = vweird.f32 %v1647
    %vm1679 = vweird.f32 %v1672
    %vm1680 = vmor %vm1678, %vm1679
    %v1681 = vsel %vm1680, %v1672, %v1677
    %v1682 = vrsqrt.pop %v1648
    %v1683 = vmul.f32 %v1682, %v1648
    %v1684 = vmul.f32 %v1683, %v1682
    %v1685 = vmul.f32 0.5, %v1684
    %v1686 = vsub.f32 1.5, %v1685
    %v1687 = vmul.f32 %v1682, %v1686
    %vm1688 = vweird.f32 %v1648
    %vm1689 = vweird.f32 %v1682
    %vm1690 = vmor %vm1688, %vm1689
    %v1691 = vsel %vm1690, %v1682, %v1687
    %v1692 = vrsqrt.pop %v1649
    %v1693 = vmul.f32 %v1692, %v1649
    %v1694 = vmul.f32 %v1693, %v1692
    %v1695 = vmul.f32 0.5, %v1694
    %v1696 = vsub.f32 1.5, %v1695
    %v1697 = vmul.f32 %v1692, %v1696
    %vm1698 = vweird.f32 %v1649
    %vm1699 = vweird.f32 %v1692
    %vm1700 = vmor %vm1698, %vm1699
    %v1701 = vsel %vm1700, %v1692, %v1697
    %v1702 = vrsqrt.pop %v1650
    %v1703 = vmul.f32 %v1702, %v1650
    %v1704 = vmul.f32 %v1703, %v1702
    %v1705 = vmul.f32 0.5, %v1704
    %v1706 = vsub.f32 1.5, %v1705
    %v1707 = vmul.f32 %v1702, %v1706
    %vm1708 = vweird.f32 %v1650
    %vm1709 = vweird.f32 %v1702
    %vm1710 = vmor %vm1708, %vm1709
    %v1711 = vsel %vm1710, %v1702, %v1707
    %v1712 = vrsqrt.pop %v1651
    %v1713 = vmul.f32 %v1712, %v1651
    %v1714 = vmul.f32 %v1713, %v1712
    %v1715 = vmul.f32 0.5, %v1714
    %v1716 = vsub.f32 1.5, %v1715
    %v1717 = vmul.f32 %v1712, %v1716
    %vm1718 = vweird.f32 %v1651
    %vm1719 = vweird.f32 %v1712
    %vm1720 = vmor %vm1718, %vm1719
    %v1721 = vsel %vm1720, %v1712, %v1717
    %v1722 = vrsqrt.pop %v1652
    %v1723 = vmul.f32 %v1722, %v1652
    %v1724 = vmul.f32 %v1723, %v1722
    %v1725 = vmul.f32 0.5, %v1724
    %v1726 = vsub.f32 1.5, %v1725
    %v1727 = vmul.f32 %v1722, %v1726
    %vm1728 = vweird.f32 %v1652
    %vm1729 = vweird.f32 %v1722
    %vm1730 = vmor %vm1728, %vm1729
    %v1731 = vsel %vm1730, %v1722, %v1727
    %v1732 = vrsqrt.pop %v1653
    %v1733 = vmul.f32 %v1732, %v1653
    %v1734 = vmul.f32 %v1733, %v1732
    %v1735 = vmul.f32 0.5, %v1734
    %v1736 = vsub.f32 1.5, %v1735
    %v1737 = vmul.f32 %v1732, %v1736
    %vm1738 = vweird.f32 %v1653
    %vm1739 = vweird.f32 %v1732
    %vm1740 = vmor %vm1738, %vm1739
    %v1741 = vsel %vm1740, %v1732, %v1737
    %v1742 = vrsqrt.pop %v1654
    %v1743 = vmul.f32 %v1742, %v1654
    %v1744 = vmul.f32 %v1743, %v1742
    %v1745 = vmul.f32 0.5, %v1744
    %v1746 = vsub.f32 1.5, %v1745
    %v1747 = vmul.f32 %v1742, %v1746
    %vm1748 = vweird.f32 %v1654
    %vm1749 = vweird.f32 %v1742
    %vm1750 = vmor %vm1748, %vm1749
    %v1751 = vsel %vm1750, %v1742, %v1747
    %v1752 = vrsqrt.pop %v1655
    %v1753 = vmul.f32 %v1752, %v1655
    %v1754 = vmul.f32 %v1753, %v1752
    %v1755 = vmul.f32 0.5, %v1754
    %v1756 = vsub.f32 1.5, %v1755
    %v1757 = vmul.f32 %v1752, %v1756
    %vm1758 = vweird.f32 %v1655
    %vm1759 = vweird.f32 %v1752
    %vm1760 = vmor %vm1758, %vm1759
    %v1761 = vsel %vm1760, %v1752, %v1757
    %v1762 = vrsqrt.pop %v1656
    %v1763 = vmul.f32 %v1762, %v1656
    %v1764 = vmul.f32 %v1763, %v1762
    %v1765 = vmul.f32 0.5, %v1764
    %v1766 = vsub.f32 1.5, %v1765
    %v1767 = vmul.f32 %v1762, %v1766
    %vm1768 = vweird.f32 %v1656
    %vm1769 = vweird.f32 %v1762
    %vm1770 = vmor %vm1768, %vm1769
    %v1771 = vsel %vm1770, %v1762, %v1767
    %v1772 = vrsqrt.pop %v1657
    %v1773 = vmul.f32 %v1772, %v1657
    %v1774 = vmul.f32 %v1773, %v1772
    %v1775 = vmul.f32 0.5, %v1774
    %v1776 = vsub.f32 1.5, %v1775
    %v1777 = vmul.f32 %v1772, %v1776
    %vm1778 = vweird.f32 %v1657
    %vm1779 = vweird.f32 %v1772
    %vm1780 = vmor %vm1778, %vm1779
    %v1781 = vsel %vm1780, %v1772, %v1777
    %v1782 = vrsqrt.pop %v1658
    %v1783 = vmul.f32 %v1782, %v1658
    %v1784 = vmul.f32 %v1783, %v1782
    %v1785 = vmul.f32 0.5, %v1784
    %v1786 = vsub.f32 1.5, %v1785
    %v1787 = vmul.f32 %v1782, %v1786
    %vm1788 = vweird.f32 %v1658
    %vm1789 = vweird.f32 %v1782
    %vm1790 = vmor %vm1788, %vm1789
    %v1791 = vsel %vm1790, %v1782, %v1787
    %v1792 = vrsqrt.pop %v1659
    %v1793 = vmul.f32 %v1792, %v1659
    %v1794 = vmul.f32 %v1793, %v1792
    %v1795 = vmul.f32 0.5, %v1794
    %v1796 = vsub.f32 1.5, %v1795
    %v1797 = vmul.f32 %v1792, %v1796
    %vm1798 = vweird.f32 %v1659
    %vm1799 = vweird.f32 %v1792
    %vm1800 = vmor %vm1798, %vm1799
    %v1801 = vsel %vm1800, %v1792, %v1797
    %v1802 = vrsqrt.pop %v1660
    %v1803 = vmul.f32 %v1802, %v1660
    %v1804 = vmul.f32 %v1803, %v1802
    %v1805 = vmul.f32 0.5, %v1804
    %v1806 = vsub.f32 1.5, %v1805
    %v1807 = vmul.f32 %v1802, %v1806
    %vm1808 = vweird.f32 %v1660
    %vm1809 = vweird.f32 %v1802
    %vm1810 = vmor %vm1808, %vm1809
    %v1811 = vsel %vm1810, %v1802, %v1807
    %v1812 = vrsqrt.pop %v1661
    %v1813 = vmul.f32 %v1812, %v1661
    %v1814 = vmul.f32 %v1813, %v1812
    %v1815 = vmul.f32 0.5, %v1814
    %v1816 = vsub.f32 1.5, %v1815
    %v1817 = vmul.f32 %v1812, %v1816
    %vm1818 = vweird.f32 %v1661
    %vm1819 = vweird.f32 %v1812
    %vm1820 = vmor %vm1818, %vm1819
    %v1821 = vsel %vm1820, %v1812, %v1817
    %v1822 = vmul.f32 %v1550, %v1671
    %v1823 = vmul.f32 %v1551, %v1681
    %v1824 = vmul.f32 %v1552, %v1691
    %v1825 = vmul.f32 %v1553, %v1701
    %v1826 = vmul.f32 %v1554, %v1711
    %v1827 = vmul.f32 %v1555, %v1721
    %v1828 = vmul.f32 %v1556, %v1731
    %v1829 = vmul.f32 %v1557, %v1741
    %v1830 = vmul.f32 %v1558, %v1751
    %v1831 = vmul.f32 %v1559, %v1761
    %v1832 = vmul.f32 %v1560, %v1771
    %v1833 = vmul.f32 %v1561, %v1781
    %v1834 = vmul.f32 %v1562, %v1791
    %v1835 = vmul.f32 %v1563, %v1801
    %v1836 = vmul.f32 %v1564, %v1811
    %v1837 = vmul.f32 %v1565, %v1821
    %v1838 = vperm.slane %v1142, 2
    %v1839 = vmul.f32 %v1822, %v1838
    %v1840 = vmul.f32 %v1823, %v1838
    %v1841 = vmul.f32 %v1824, %v1838
    %v1842 = vmul.f32 %v1825, %v1838
    %v1843 = vmul.f32 %v1826, %v1838
    %v1844 = vmul.f32 %v1827, %v1838
    %v1845 = vmul.f32 %v1828, %v1838
    %v1846 = vmul.f32 %v1829, %v1838
    %v1847 = vmul.f32 %v1830, %v1838
    %v1848 = vmul.f32 %v1831, %v1838
    %v1849 = vmul.f32 %v1832, %v1838
    %v1850 = vmul.f32 %v1833, %v1838
    %v1851 = vmul.f32 %v1834, %v1838
    %v1852 = vmul.f32 %v1835, %v1838
    %v1853 = vmul.f32 %v1836, %v1838
    %v1854 = vmul.f32 %v1837, %v1838
    %v1855 = vperm.slane %v1142, 3
    %v1856 = vadd.f32 %v1839, %v1855
    %v1857 = vadd.f32 %v1840, %v1855
    %v1858 = vadd.f32 %v1841, %v1855
    %v1859 = vadd.f32 %v1842, %v1855
    %v1860 = vadd.f32 %v1843, %v1855
    %v1861 = vadd.f32 %v1844, %v1855
    %v1862 = vadd.f32 %v1845, %v1855
    %v1863 = vadd.f32 %v1846, %v1855
    %v1864 = vadd.f32 %v1847, %v1855
    %v1865 = vadd.f32 %v1848, %v1855
    %v1866 = vadd.f32 %v1849, %v1855
    %v1867 = vadd.f32 %v1850, %v1855
    %v1868 = vadd.f32 %v1851, %v1855
    %v1869 = vadd.f32 %v1852, %v1855
    %v1870 = vadd.f32 %v1853, %v1855
    %v1871 = vadd.f32 %v1854, %v1855
    %v1872 = vld [vmem:[#allocation2 + $0x40] sm:$0xf]
    %v1873 = vld [vmem:[#allocation2 + $0x44] sm:$0xf]
    %v1874 = vld [vmem:[#allocation2 + $0x48] sm:$0xf]
    %v1875 = vld [vmem:[#allocation2 + $0x4c] sm:$0xf]
    %v1876 = vld [vmem:[#allocation2 + $0x50] sm:$0xf]
    %v1877 = vld [vmem:[#allocation2 + $0x54] sm:$0xf]
    %v1878 = vld [vmem:[#allocation2 + $0x58] sm:$0xf]
    %v1879 = vld [vmem:[#allocation2 + $0x5c] sm:$0xf]
    %v1880 = vpack.c.bf16 %v1857, %v1856
    %v1881 = vpack.c.bf16 %v1859, %v1858
    %v1882 = vpack.c.bf16 %v1861, %v1860
    %v1883 = vpack.c.bf16 %v1863, %v1862
    %v1884 = vpack.c.bf16 %v1865, %v1864
    %v1885 = vpack.c.bf16 %v1867, %v1866
    %v1886 = vpack.c.bf16 %v1869, %v1868
    %v1887 = vpack.c.bf16 %v1871, %v1870
    %v1896 = vunpack.c.l.b16 %v1872
    %v1897 = vunpack.c.l.b16 %v1873
    %v1898 = vunpack.c.l.b16 %v1874
    %v1899 = vunpack.c.l.b16 %v1875
    %v1900 = vunpack.c.l.b16 %v1876
    %v1901 = vunpack.c.l.b16 %v1877
    %v1902 = vunpack.c.l.b16 %v1878
    %v1903 = vunpack.c.l.b16 %v1879
    %v1904 = vpack.c.b16 %v1897, %v1896
    %v1905 = vpack.c.b16 %v1899, %v1898
    %v1906 = vpack.c.b16 %v1901, %v1900
    %v1907 = vpack.c.b16 %v1903, %v1902
    %1912 = vmatpush.bf16.msra.mxu0 %v1887
    %1913 = vmatpush.bf16.msra.mxu0 %v1886
    %1914 = vmatpush.bf16.msra.mxu0 %v1885
    %1915 = vmatpush.bf16.msra.mxu0 %v1884
    %1916 = vmatpush.bf16.msra.mxu0 %v1883
    %1917 = vmatpush.bf16.msra.mxu0 %v1882
    %1918 = vmatpush.bf16.msra.mxu0 %v1881
    %1919 = vmatpush.bf16.msra.mxu0 %v1880
    %1920 = vmatmul.bf16.gmra.mxu0 %v1904
    %v1921 = vpop.f32.mrf.mxu0
    %v1922 = vadd.f32 0.0, %v1921
    %v1923 = vpop.f32.mrf.mxu0
    %v1924 = vadd.f32 0.0, %v1923
    %1925 = vmatmul.bf16.gmra.mxu0 %v1905
    %v1926 = vpop.f32.mrf.mxu0
    %v1927 = vadd.f32 0.0, %v1926
    %v1928 = vpop.f32.mrf.mxu0
    %v1929 = vadd.f32 0.0, %v1928
    %1930 = vmatmul.bf16.gmra.mxu0 %v1906
    %v1931 = vpop.f32.mrf.mxu0
    %v1932 = vadd.f32 0.0, %v1931
    %v1933 = vpop.f32.mrf.mxu0
    %v1934 = vadd.f32 0.0, %v1933
    %1935 = vmatmul.bf16.gmra.mxu0 %v1907
    %v1936 = vpop.f32.mrf.mxu0
    %v1937 = vadd.f32 0.0, %v1936
    %v1938 = vpop.f32.mrf.mxu0
    %v1939 = vadd.f32 0.0, %v1938
    %1940 = vdwg.mxu0
    %s1941 = scalar_lea.vmem %s4, 12
    %v1942 = vld [vmem:[%s1941] sm:$0xf]
    %s1943 = scalar_lea.vmem %s2, 80
    %v1944 = vld [vmem:[%s1943] sm:$0xf]
    %v1945 = vld [vmem:[%s1943 + $0x4] sm:$0xf]
    %v1946 = vld [vmem:[%s1943 + $0x8] sm:$0xf]
    %v1947 = vld [vmem:[%s1943 + $0xc] sm:$0xf]
    %s1948 = scalar_lea.vmem %s2, 96
    %v1949 = vld [vmem:[%s1948] sm:$0xf]
    %v1950 = vld [vmem:[%s1948 + $0x4] sm:$0xf]
    %v1951 = vld [vmem:[%s1948 + $0x8] sm:$0xf]
    %v1952 = vld [vmem:[%s1948 + $0xc] sm:$0xf]
    %v1953 = vpack.c.bf16 %v1924, %v1922
    %v1954 = vpack.c.bf16 %v1929, %v1927
    %v1955 = vpack.c.bf16 %v1934, %v1932
    %v1956 = vpack.c.bf16 %v1939, %v1937
    %v1961 = vunpack.c.l.b16 %v1949
    %v1962 = vunpack.c.l.b16 %v1950
    %v1963 = vunpack.c.l.b16 %v1951
    %v1964 = vunpack.c.l.b16 %v1952
    %v1965 = vpack.c.b16 %v1962, %v1961
    %v1966 = vpack.c.b16 %v1964, %v1963
    %v1970 = vsel %vm134, %v1953, 0
    %v1973 = vsel %vm134, %v1954, 0
    %v1976 = vsel %vm134, %v1955, 0
    %v1979 = vsel %vm134, %v1956, 0
    %1981 = vmatpush.bf16.msra.mxu0 0
    %1982 = vmatpush.bf16.msra.mxu0 0
    %1983 = vmatpush.bf16.msra.mxu0 0
    %1984 = vmatpush.bf16.msra.mxu0 0
    %1985 = vmatpush.bf16.msra.mxu0 0
    %1986 = vmatpush.bf16.msra.mxu0 0
    %1987 = vmatpush.bf16.msra.mxu0 %v1966
    %1988 = vmatpush.bf16.msra.mxu0 %v1965
    %1989 = vmatmul.bf16.gmra.mxu0 %v1970
    %v1990 = vpop.f32.mrf.mxu0
    %v1991 = vadd.f32 0.0, %v1990
    %v1992 = vpop.f32.mrf.mxu0
    %v1993 = vadd.f32 0.0, %v1992
    %1994 = vmatmul.bf16.gmra.mxu0 %v1973
    %v1995 = vpop.f32.mrf.mxu0
    %v1996 = vadd.f32 0.0, %v1995
    %v1997 = vpop.f32.mrf.mxu0
    %v1998 = vadd.f32 0.0, %v1997
    %1999 = vmatmul.bf16.gmra.mxu0 %v1976
    %v2000 = vpop.f32.mrf.mxu0
    %v2001 = vadd.f32 0.0, %v2000
    %v2002 = vpop.f32.mrf.mxu0
    %v2003 = vadd.f32 0.0, %v2002
    %2004 = vmatmul.bf16.gmra.mxu0 %v1979
    %v2005 = vpop.f32.mrf.mxu0
    %v2006 = vadd.f32 0.0, %v2005
    %v2007 = vpop.f32.mrf.mxu0
    %v2008 = vadd.f32 0.0, %v2007
    %2009 = vdwg.mxu0
    %v2014 = vunpack.c.l.b16 %v1944
    %v2015 = vunpack.c.l.b16 %v1945
    %v2016 = vunpack.c.l.b16 %v1946
    %v2017 = vunpack.c.l.b16 %v1947
    %v2018 = vpack.c.b16 %v2015, %v2014
    %v2019 = vpack.c.b16 %v2017, %v2016
    %2022 = vmatpush.bf16.msra.mxu0 0
    %2023 = vmatpush.bf16.msra.mxu0 0
    %2024 = vmatpush.bf16.msra.mxu0 0
    %2025 = vmatpush.bf16.msra.mxu0 0
    %2026 = vmatpush.bf16.msra.mxu0 0
    %2027 = vmatpush.bf16.msra.mxu0 0
    %2028 = vmatpush.bf16.msra.mxu0 %v2019
    %2029 = vmatpush.bf16.msra.mxu0 %v2018
    %2030 = vmatmul.bf16.gmra.mxu0 %v1031
    %v2031 = vpop.f32.mrf.mxu0
    %v2032 = vadd.f32 %v1991, %v2031
    %v2033 = vpop.f32.mrf.mxu0
    %v2034 = vadd.f32 %v1993, %v2033
    %2035 = vmatmul.bf16.gmra.mxu0 %v1034
    %v2036 = vpop.f32.mrf.mxu0
    %v2037 = vadd.f32 %v1996, %v2036
    %v2038 = vpop.f32.mrf.mxu0
    %v2039 = vadd.f32 %v1998, %v2038
    %2040 = vmatmul.bf16.gmra.mxu0 %v1037
    %v2041 = vpop.f32.mrf.mxu0
    %v2042 = vadd.f32 %v2001, %v2041
    %v2043 = vpop.f32.mrf.mxu0
    %v2044 = vadd.f32 %v2003, %v2043
    %2045 = vmatmul.bf16.gmra.mxu0 %v1040
    %v2046 = vpop.f32.mrf.mxu0
    %v2047 = vadd.f32 %v2006, %v2046
    %v2048 = vpop.f32.mrf.mxu0
    %v2049 = vadd.f32 %v2008, %v2048
    %2050 = vdwg.mxu0
    %v2051 = vperm.slane %v1942, 0
    %v2052 = vadd.f32 %v2032, %v2051
    %v2053 = vadd.f32 %v2034, %v2051
    %v2054 = vadd.f32 %v2037, %v2051
    %v2055 = vadd.f32 %v2039, %v2051
    %v2056 = vadd.f32 %v2042, %v2051
    %v2057 = vadd.f32 %v2044, %v2051
    %v2058 = vadd.f32 %v2047, %v2051
    %v2059 = vadd.f32 %v2049, %v2051
    %s2060 = scalar_lea.vmem %s2, 112
    %v2061 = vld [vmem:[%s2060] sm:$0xf]
    %v2062 = vld [vmem:[%s2060 + $0x4] sm:$0xf]
    %v2063 = vld [vmem:[%s2060 + $0x8] sm:$0xf]
    %v2064 = vld [vmem:[%s2060 + $0xc] sm:$0xf]
    %v2065 = vmax.f32 %v2052, 0.0
    %v2066 = vmax.f32 %v2053, 0.0
    %v2067 = vmax.f32 %v2054, 0.0
    %v2068 = vmax.f32 %v2055, 0.0
    %v2069 = vmax.f32 %v2056, 0.0
    %v2070 = vmax.f32 %v2057, 0.0
    %v2071 = vmax.f32 %v2058, 0.0
    %v2072 = vmax.f32 %v2059, 0.0
    %v2073 = vpack.c.bf16 %v2066, %v2065
    %v2074 = vpack.c.bf16 %v2068, %v2067
    %v2075 = vpack.c.bf16 %v2070, %v2069
    %v2076 = vpack.c.bf16 %v2072, %v2071
    %v2077 = vperm.slane %v1942, 1
    %v2082 = vunpack.c.l.b16 %v2061
    %v2083 = vunpack.c.l.b16 %v2062
    %v2084 = vunpack.c.l.b16 %v2063
    %v2085 = vunpack.c.l.b16 %v2064
    %v2086 = vpack.c.b16 %v2083, %v2082
    %v2087 = vpack.c.b16 %v2085, %v2084
    %v2091 = vsel %vm134, %v2073, 0
    %v2094 = vsel %vm134, %v2074, 0
    %v2097 = vsel %vm134, %v2075, 0
    %v2100 = vsel %vm134, %v2076, 0
    %2102 = vmatpush.bf16.msra.mxu0 0
    %2103 = vmatpush.bf16.msra.mxu0 0
    %2104 = vmatpush.bf16.msra.mxu0 0
    %2105 = vmatpush.bf16.msra.mxu0 0
    %2106 = vmatpush.bf16.msra.mxu0 0
    %2107 = vmatpush.bf16.msra.mxu0 0
    %2108 = vmatpush.bf16.msra.mxu0 %v2087
    %2109 = vmatpush.bf16.msra.mxu0 %v2086
    %2110 = vmatmul.bf16.gmra.mxu0 %v2091
    %v2111 = vpop.f32.mrf.mxu0
    %v2112 = vadd.f32 %v2077, %v2111
    %v2113 = vpop.f32.mrf.mxu0
    %v2114 = vadd.f32 %v2077, %v2113
    %2115 = vmatmul.bf16.gmra.mxu0 %v2094
    %v2116 = vpop.f32.mrf.mxu0
    %v2117 = vadd.f32 %v2077, %v2116
    %v2118 = vpop.f32.mrf.mxu0
    %v2119 = vadd.f32 %v2077, %v2118
    %2120 = vmatmul.bf16.gmra.mxu0 %v2097
    %v2121 = vpop.f32.mrf.mxu0
    %v2122 = vadd.f32 %v2077, %v2121
    %v2123 = vpop.f32.mrf.mxu0
    %v2124 = vadd.f32 %v2077, %v2123
    %2125 = vmatmul.bf16.gmra.mxu0 %v2100
    %v2126 = vpop.f32.mrf.mxu0
    %v2127 = vadd.f32 %v2077, %v2126
    %v2128 = vpop.f32.mrf.mxu0
    %v2129 = vadd.f32 %v2077, %v2128
    %2130 = vdwg.mxu0
    %v2131 = vmax.f32 %v2112, 0.0
    %v2132 = vmax.f32 %v2114, 0.0
    %v2133 = vmax.f32 %v2117, 0.0
    %v2134 = vmax.f32 %v2119, 0.0
    %v2135 = vmax.f32 %v2122, 0.0
    %v2136 = vmax.f32 %v2124, 0.0
    %v2137 = vmax.f32 %v2127, 0.0
    %v2138 = vmax.f32 %v2129, 0.0
    %v2139 = vsel %vm134, %v2131, 0.0
    %2140 = vadd.xlane.f32.xlu0 %v2139
    %v2141 = vpop.xlane.xlu0 %2140
    %v2142 = vsel %vm134, %v2132, 0.0
    %2143 = vadd.xlane.f32.xlu0 %v2142
    %v2144 = vpop.xlane.xlu0 %2143
    %v2145 = vsel %vm134, %v2133, 0.0
    %2146 = vadd.xlane.f32.xlu0 %v2145
    %v2147 = vpop.xlane.xlu0 %2146
    %v2148 = vsel %vm134, %v2134, 0.0
    %2149 = vadd.xlane.f32.xlu0 %v2148
    %v2150 = vpop.xlane.xlu0 %2149
    %v2151 = vsel %vm134, %v2135, 0.0
    %2152 = vadd.xlane.f32.xlu0 %v2151
    %v2153 = vpop.xlane.xlu0 %2152
    %v2154 = vsel %vm134, %v2136, 0.0
    %2155 = vadd.xlane.f32.xlu0 %v2154
    %v2156 = vpop.xlane.xlu0 %2155
    %v2157 = vsel %vm134, %v2137, 0.0
    %2158 = vadd.xlane.f32.xlu0 %v2157
    %v2159 = vpop.xlane.xlu0 %2158
    %v2160 = vsel %vm134, %v2138, 0.0
    %2161 = vadd.xlane.f32.xlu0 %v2160
    %v2162 = vpop.xlane.xlu0 %2161
    %v2163 = vmul.f32 %v2141, %v214
    %v2164 = vmul.f32 %v2144, %v214
    %v2165 = vmul.f32 %v2147, %v214
    %v2166 = vmul.f32 %v2150, %v214
    %v2167 = vmul.f32 %v2153, %v214
    %v2168 = vmul.f32 %v2156, %v214
    %v2169 = vmul.f32 %v2159, %v214
    %v2170 = vmul.f32 %v2162, %v214
    %v2171 = vsub.f32 %v2131, %v2163
    %v2172 = vsub.f32 %v2132, %v2164
    %v2173 = vsub.f32 %v2133, %v2165
    %v2174 = vsub.f32 %v2134, %v2166
    %v2175 = vsub.f32 %v2135, %v2167
    %v2176 = vsub.f32 %v2136, %v2168
    %v2177 = vsub.f32 %v2137, %v2169
    %v2178 = vsub.f32 %v2138, %v2170
    %v2179 = vmul.f32 %v2171, %v2171
    %v2180 = vmul.f32 %v2172, %v2172
    %v2181 = vmul.f32 %v2173, %v2173
    %v2182 = vmul.f32 %v2174, %v2174
    %v2183 = vmul.f32 %v2175, %v2175
    %v2184 = vmul.f32 %v2176, %v2176
    %v2185 = vmul.f32 %v2177, %v2177
    %v2186 = vmul.f32 %v2178, %v2178
    %v2187 = vsel %vm134, %v2179, 0.0
    %2188 = vadd.xlane.f32.xlu0 %v2187
    %v2189 = vpop.xlane.xlu0 %2188
    %v2190 = vsel %vm134, %v2180, 0.0
    %2191 = vadd.xlane.f32.xlu0 %v2190
    %v2192 = vpop.xlane.xlu0 %2191
    %v2193 = vsel %vm134, %v2181, 0.0
    %2194 = vadd.xlane.f32.xlu0 %v2193
    %v2195 = vpop.xlane.xlu0 %2194
    %v2196 = vsel %vm134, %v2182, 0.0
    %2197 = vadd.xlane.f32.xlu0 %v2196
    %v2198 = vpop.xlane.xlu0 %2197
    %v2199 = vsel %vm134, %v2183, 0.0
    %2200 = vadd.xlane.f32.xlu0 %v2199
    %v2201 = vpop.xlane.xlu0 %2200
    %v2202 = vsel %vm134, %v2184, 0.0
    %2203 = vadd.xlane.f32.xlu0 %v2202
    %v2204 = vpop.xlane.xlu0 %2203
    %v2205 = vsel %vm134, %v2185, 0.0
    %2206 = vadd.xlane.f32.xlu0 %v2205
    %v2207 = vpop.xlane.xlu0 %2206
    %v2208 = vsel %vm134, %v2186, 0.0
    %2209 = vadd.xlane.f32.xlu0 %v2208
    %v2210 = vpop.xlane.xlu0 %2209
    %v2211 = vmul.f32 %v2189, %v214
    %v2212 = vmul.f32 %v2192, %v214
    %v2213 = vmul.f32 %v2195, %v214
    %v2214 = vmul.f32 %v2198, %v214
    %v2215 = vmul.f32 %v2201, %v214
    %v2216 = vmul.f32 %v2204, %v214
    %v2217 = vmul.f32 %v2207, %v214
    %v2218 = vmul.f32 %v2210, %v214
    %v2219 = vadd.f32 %v2211, 1e-05
    %v2220 = vadd.f32 %v2212, 1e-05
    %v2221 = vadd.f32 %v2213, 1e-05
    %v2222 = vadd.f32 %v2214, 1e-05
    %v2223 = vadd.f32 %v2215, 1e-05
    %v2224 = vadd.f32 %v2216, 1e-05
    %v2225 = vadd.f32 %v2217, 1e-05
    %v2226 = vadd.f32 %v2218, 1e-05
    %v2227 = vrsqrt.pop %v2219
    %v2228 = vmul.f32 %v2227, %v2219
    %v2229 = vmul.f32 %v2228, %v2227
    %v2230 = vmul.f32 0.5, %v2229
    %v2231 = vsub.f32 1.5, %v2230
    %v2232 = vmul.f32 %v2227, %v2231
    %vm2233 = vweird.f32 %v2219
    %vm2234 = vweird.f32 %v2227
    %vm2235 = vmor %vm2233, %vm2234
    %v2236 = vsel %vm2235, %v2227, %v2232
    %v2237 = vrsqrt.pop %v2220
    %v2238 = vmul.f32 %v2237, %v2220
    %v2239 = vmul.f32 %v2238, %v2237
    %v2240 = vmul.f32 0.5, %v2239
    %v2241 = vsub.f32 1.5, %v2240
    %v2242 = vmul.f32 %v2237, %v2241
    %vm2243 = vweird.f32 %v2220
    %vm2244 = vweird.f32 %v2237
    %vm2245 = vmor %vm2243, %vm2244
    %v2246 = vsel %vm2245, %v2237, %v2242
    %v2247 = vrsqrt.pop %v2221
    %v2248 = vmul.f32 %v2247, %v2221
    %v2249 = vmul.f32 %v2248, %v2247
    %v2250 = vmul.f32 0.5, %v2249
    %v2251 = vsub.f32 1.5, %v2250
    %v2252 = vmul.f32 %v2247, %v2251
    %vm2253 = vweird.f32 %v2221
    %vm2254 = vweird.f32 %v2247
    %vm2255 = vmor %vm2253, %vm2254
    %v2256 = vsel %vm2255, %v2247, %v2252
    %v2257 = vrsqrt.pop %v2222
    %v2258 = vmul.f32 %v2257, %v2222
    %v2259 = vmul.f32 %v2258, %v2257
    %v2260 = vmul.f32 0.5, %v2259
    %v2261 = vsub.f32 1.5, %v2260
    %v2262 = vmul.f32 %v2257, %v2261
    %vm2263 = vweird.f32 %v2222
    %vm2264 = vweird.f32 %v2257
    %vm2265 = vmor %vm2263, %vm2264
    %v2266 = vsel %vm2265, %v2257, %v2262
    %v2267 = vrsqrt.pop %v2223
    %v2268 = vmul.f32 %v2267, %v2223
    %v2269 = vmul.f32 %v2268, %v2267
    %v2270 = vmul.f32 0.5, %v2269
    %v2271 = vsub.f32 1.5, %v2270
    %v2272 = vmul.f32 %v2267, %v2271
    %vm2273 = vweird.f32 %v2223
    %vm2274 = vweird.f32 %v2267
    %vm2275 = vmor %vm2273, %vm2274
    %v2276 = vsel %vm2275, %v2267, %v2272
    %v2277 = vrsqrt.pop %v2224
    %v2278 = vmul.f32 %v2277, %v2224
    %v2279 = vmul.f32 %v2278, %v2277
    %v2280 = vmul.f32 0.5, %v2279
    %v2281 = vsub.f32 1.5, %v2280
    %v2282 = vmul.f32 %v2277, %v2281
    %vm2283 = vweird.f32 %v2224
    %vm2284 = vweird.f32 %v2277
    %vm2285 = vmor %vm2283, %vm2284
    %v2286 = vsel %vm2285, %v2277, %v2282
    %v2287 = vrsqrt.pop %v2225
    %v2288 = vmul.f32 %v2287, %v2225
    %v2289 = vmul.f32 %v2288, %v2287
    %v2290 = vmul.f32 0.5, %v2289
    %v2291 = vsub.f32 1.5, %v2290
    %v2292 = vmul.f32 %v2287, %v2291
    %vm2293 = vweird.f32 %v2225
    %vm2294 = vweird.f32 %v2287
    %vm2295 = vmor %vm2293, %vm2294
    %v2296 = vsel %vm2295, %v2287, %v2292
    %v2297 = vrsqrt.pop %v2226
    %v2298 = vmul.f32 %v2297, %v2226
    %v2299 = vmul.f32 %v2298, %v2297
    %v2300 = vmul.f32 0.5, %v2299
    %v2301 = vsub.f32 1.5, %v2300
    %v2302 = vmul.f32 %v2297, %v2301
    %vm2303 = vweird.f32 %v2226
    %vm2304 = vweird.f32 %v2297
    %vm2305 = vmor %vm2303, %vm2304
    %v2306 = vsel %vm2305, %v2297, %v2302
    %v2307 = vmul.f32 %v2171, %v2236
    %v2308 = vmul.f32 %v2172, %v2246
    %v2309 = vmul.f32 %v2173, %v2256
    %v2310 = vmul.f32 %v2174, %v2266
    %v2311 = vmul.f32 %v2175, %v2276
    %v2312 = vmul.f32 %v2176, %v2286
    %v2313 = vmul.f32 %v2177, %v2296
    %v2314 = vmul.f32 %v2178, %v2306
    %v2315 = vperm.slane %v1942, 2
    %v2316 = vmul.f32 %v2307, %v2315
    %v2317 = vmul.f32 %v2308, %v2315
    %v2318 = vmul.f32 %v2309, %v2315
    %v2319 = vmul.f32 %v2310, %v2315
    %v2320 = vmul.f32 %v2311, %v2315
    %v2321 = vmul.f32 %v2312, %v2315
    %v2322 = vmul.f32 %v2313, %v2315
    %v2323 = vmul.f32 %v2314, %v2315
    %v2324 = vperm.slane %v1942, 3
    %v2325 = vadd.f32 %v2316, %v2324
    %v2326 = vadd.f32 %v2317, %v2324
    %v2327 = vadd.f32 %v2318, %v2324
    %v2328 = vadd.f32 %v2319, %v2324
    %v2329 = vadd.f32 %v2320, %v2324
    %v2330 = vadd.f32 %v2321, %v2324
    %v2331 = vadd.f32 %v2322, %v2324
    %v2332 = vadd.f32 %v2323, %v2324
    %v2333 = vadd.f32 %v377, %v2325
    %v2334 = vadd.f32 %v378, %v2326
    %v2335 = vadd.f32 %v379, %v2327
    %v2336 = vadd.f32 %v380, %v2328
    %v2337 = vadd.f32 %v381, %v2329
    %v2338 = vadd.f32 %v382, %v2330
    %v2339 = vadd.f32 %v383, %v2331
    %v2340 = vadd.f32 %v384, %v2332
    %v2341 = vadd.f32 %v994, %v1856
    %v2342 = vadd.f32 %v995, %v1857
    %v2343 = vadd.f32 %v996, %v1858
    %v2344 = vadd.f32 %v997, %v1859
    %v2345 = vadd.f32 %v998, %v1860
    %v2346 = vadd.f32 %v999, %v1861
    %v2347 = vadd.f32 %v1000, %v1862
    %v2348 = vadd.f32 %v1001, %v1863
    %v2349 = vadd.f32 %v1002, %v1864
    %v2350 = vadd.f32 %v1003, %v1865
    %v2351 = vadd.f32 %v1004, %v1866
    %v2352 = vadd.f32 %v1005, %v1867
    %v2353 = vadd.f32 %v1006, %v1868
    %v2354 = vadd.f32 %v1007, %v1869
    %v2355 = vadd.f32 %v1008, %v1870
    %v2356 = vadd.f32 %v1009, %v1871
    %s2357 = scalar_lea.vmem %s3, 32
    %v2358 = vld [vmem:[%s2357] sm:$0xf]
    %v2359 = vld [vmem:[%s2357 + $0x4] sm:$0xf]
    %v2360 = vld [vmem:[%s2357 + $0x8] sm:$0xf]
    %v2361 = vld [vmem:[%s2357 + $0xc] sm:$0xf]
    %v2362 = vpack.c.bf16 %v2334, %v2333
    %v2363 = vpack.c.bf16 %v2336, %v2335
    %v2364 = vpack.c.bf16 %v2338, %v2337
    %v2365 = vpack.c.bf16 %v2340, %v2339
    %v2370 = vunpack.c.l.b16 %v2358
    %v2371 = vunpack.c.l.b16 %v2359
    %v2372 = vunpack.c.l.b16 %v2360
    %v2373 = vunpack.c.l.b16 %v2361
    %v2374 = vpack.c.b16 %v2371, %v2370
    %v2375 = vpack.c.b16 %v2373, %v2372
    %v2379 = vsel %vm134, %v2362, 0
    %v2382 = vsel %vm134, %v2363, 0
    %v2385 = vsel %vm134, %v2364, 0
    %v2388 = vsel %vm134, %v2365, 0
    %2390 = vmatpush.bf16.msra.mxu0 0
    %2391 = vmatpush.bf16.msra.mxu0 0
    %2392 = vmatpush.bf16.msra.mxu0 0
    %2393 = vmatpush.bf16.msra.mxu0 0
    %2394 = vmatpush.bf16.msra.mxu0 0
    %2395 = vmatpush.bf16.msra.mxu0 0
    %2396 = vmatpush.bf16.msra.mxu0 %v2375
    %2397 = vmatpush.bf16.msra.mxu0 %v2374
    %2398 = vmatmul.bf16.gmra.mxu0 %v2379
    %v2399 = vpop.f32.mrf.mxu0
    %v2400 = vadd.f32 0.0, %v2399
    %v2401 = vpop.f32.mrf.mxu0
    %v2402 = vadd.f32 0.0, %v2401
    %2403 = vmatmul.bf16.gmra.mxu0 %v2382
    %v2404 = vpop.f32.mrf.mxu0
    %v2405 = vadd.f32 0.0, %v2404
    %v2406 = vpop.f32.mrf.mxu0
    %v2407 = vadd.f32 0.0, %v2406
    %2408 = vmatmul.bf16.gmra.mxu0 %v2385
    %v2409 = vpop.f32.mrf.mxu0
    %v2410 = vadd.f32 0.0, %v2409
    %v2411 = vpop.f32.mrf.mxu0
    %v2412 = vadd.f32 0.0, %v2411
    %2413 = vmatmul.bf16.gmra.mxu0 %v2388
    %v2414 = vpop.f32.mrf.mxu0
    %v2415 = vadd.f32 0.0, %v2414
    %v2416 = vpop.f32.mrf.mxu0
    %v2417 = vadd.f32 0.0, %v2416
    %2418 = vdwg.mxu0
    %s2419 = scalar_lea.vmem %s3, 48
    %v2420 = vld [vmem:[%s2419] sm:$0xf]
    %v2421 = vld [vmem:[%s2419 + $0x4] sm:$0xf]
    %v2422 = vld [vmem:[%s2419 + $0x8] sm:$0xf]
    %v2423 = vld [vmem:[%s2419 + $0xc] sm:$0xf]
    %v2428 = vunpack.c.l.b16 %v2420
    %v2429 = vunpack.c.l.b16 %v2421
    %v2430 = vunpack.c.l.b16 %v2422
    %v2431 = vunpack.c.l.b16 %v2423
    %v2432 = vpack.c.b16 %v2429, %v2428
    %v2433 = vpack.c.b16 %v2431, %v2430
    %2436 = vmatpush.bf16.msra.mxu0 0
    %2437 = vmatpush.bf16.msra.mxu0 0
    %2438 = vmatpush.bf16.msra.mxu0 0
    %2439 = vmatpush.bf16.msra.mxu0 0
    %2440 = vmatpush.bf16.msra.mxu0 0
    %2441 = vmatpush.bf16.msra.mxu0 0
    %2442 = vmatpush.bf16.msra.mxu0 %v2433
    %2443 = vmatpush.bf16.msra.mxu0 %v2432
    %2444 = vmatmul.bf16.gmra.mxu0 %v2379
    %v2445 = vpop.f32.mrf.mxu0
    %v2446 = vadd.f32 0.0, %v2445
    %v2447 = vpop.f32.mrf.mxu0
    %v2448 = vadd.f32 0.0, %v2447
    %2449 = vmatmul.bf16.gmra.mxu0 %v2382
    %v2450 = vpop.f32.mrf.mxu0
    %v2451 = vadd.f32 0.0, %v2450
    %v2452 = vpop.f32.mrf.mxu0
    %v2453 = vadd.f32 0.0, %v2452
    %2454 = vmatmul.bf16.gmra.mxu0 %v2385
    %v2455 = vpop.f32.mrf.mxu0
    %v2456 = vadd.f32 0.0, %v2455
    %v2457 = vpop.f32.mrf.mxu0
    %v2458 = vadd.f32 0.0, %v2457
    %2459 = vmatmul.bf16.gmra.mxu0 %v2388
    %v2460 = vpop.f32.mrf.mxu0
    %v2461 = vadd.f32 0.0, %v2460
    %v2462 = vpop.f32.mrf.mxu0
    %v2463 = vadd.f32 0.0, %v2462
    %2464 = vdwg.mxu0
    %v2465 = vpack.c.bf16 %v2402, %v2400
    %v2466 = vpack.c.bf16 %v2407, %v2405
    %v2467 = vpack.c.bf16 %v2412, %v2410
    %v2468 = vpack.c.bf16 %v2417, %v2415
    %v2469 = vpack.c.bf16 %v2448, %v2446
    %v2470 = vpack.c.bf16 %v2453, %v2451
    %v2471 = vpack.c.bf16 %v2458, %v2456
    %v2472 = vpack.c.bf16 %v2463, %v2461
    %s2473 = scalar_lea.vmem %s4, 16
    %v2474 = vld [vmem:[%s2473] sm:$0xf]
    %s2475 = scalar_lea.vmem %s2, 128
    %v2476 = vld [vmem:[%s2475] sm:$0xf]
    %v2477 = vld [vmem:[%s2475 + $0x4] sm:$0xf]
    %v2478 = vld [vmem:[%s2475 + $0x8] sm:$0xf]
    %v2479 = vld [vmem:[%s2475 + $0xc] sm:$0xf]
    %v2480 = vpack.c.bf16 %v2342, %v2341
    %v2481 = vpack.c.bf16 %v2344, %v2343
    %v2482 = vpack.c.bf16 %v2346, %v2345
    %v2483 = vpack.c.bf16 %v2348, %v2347
    %v2484 = vpack.c.bf16 %v2350, %v2349
    %v2485 = vpack.c.bf16 %v2352, %v2351
    %v2486 = vpack.c.bf16 %v2354, %v2353
    %v2487 = vpack.c.bf16 %v2356, %v2355
    %v2492 = vunpack.c.l.b16 %v2476
    %v2493 = vunpack.c.l.b16 %v2477
    %v2494 = vunpack.c.l.b16 %v2478
    %v2495 = vunpack.c.l.b16 %v2479
    %v2496 = vpack.c.b16 %v2493, %v2492
    %v2497 = vpack.c.b16 %v2495, %v2494
    %v2501 = vsel %vm134, %v2480, 0
    %v2504 = vsel %vm134, %v2481, 0
    %v2507 = vsel %vm134, %v2482, 0
    %v2510 = vsel %vm134, %v2483, 0
    %v2513 = vsel %vm134, %v2484, 0
    %v2516 = vsel %vm134, %v2485, 0
    %v2519 = vsel %vm134, %v2486, 0
    %v2522 = vsel %vm134, %v2487, 0
    %2524 = vmatpush.bf16.msra.mxu0 0
    %2525 = vmatpush.bf16.msra.mxu0 0
    %2526 = vmatpush.bf16.msra.mxu0 0
    %2527 = vmatpush.bf16.msra.mxu0 0
    %2528 = vmatpush.bf16.msra.mxu0 0
    %2529 = vmatpush.bf16.msra.mxu0 0
    %2530 = vmatpush.bf16.msra.mxu0 %v2497
    %2531 = vmatpush.bf16.msra.mxu0 %v2496
    %2532 = vmatmul.bf16.gmra.mxu0 %v2501
    %v2533 = vpop.f32.mrf.mxu0
    %v2534 = vadd.f32 0.0, %v2533
    %v2535 = vpop.f32.mrf.mxu0
    %v2536 = vadd.f32 0.0, %v2535
    %2537 = vmatmul.bf16.gmra.mxu0 %v2504
    %v2538 = vpop.f32.mrf.mxu0
    %v2539 = vadd.f32 0.0, %v2538
    %v2540 = vpop.f32.mrf.mxu0
    %v2541 = vadd.f32 0.0, %v2540
    %2542 = vmatmul.bf16.gmra.mxu0 %v2507
    %v2543 = vpop.f32.mrf.mxu0
    %v2544 = vadd.f32 0.0, %v2543
    %v2545 = vpop.f32.mrf.mxu0
    %v2546 = vadd.f32 0.0, %v2545
    %2547 = vmatmul.bf16.gmra.mxu0 %v2510
    %v2548 = vpop.f32.mrf.mxu0
    %v2549 = vadd.f32 0.0, %v2548
    %v2550 = vpop.f32.mrf.mxu0
    %v2551 = vadd.f32 0.0, %v2550
    %2552 = vmatmul.bf16.gmra.mxu0 %v2513
    %v2553 = vpop.f32.mrf.mxu0
    %v2554 = vadd.f32 0.0, %v2553
    %v2555 = vpop.f32.mrf.mxu0
    %v2556 = vadd.f32 0.0, %v2555
    %2557 = vmatmul.bf16.gmra.mxu0 %v2516
    %v2558 = vpop.f32.mrf.mxu0
    %v2559 = vadd.f32 0.0, %v2558
    %v2560 = vpop.f32.mrf.mxu0
    %v2561 = vadd.f32 0.0, %v2560
    %2562 = vmatmul.bf16.gmra.mxu0 %v2519
    %v2563 = vpop.f32.mrf.mxu0
    %v2564 = vadd.f32 0.0, %v2563
    %v2565 = vpop.f32.mrf.mxu0
    %v2566 = vadd.f32 0.0, %v2565
    %2567 = vmatmul.bf16.gmra.mxu0 %v2522
    %v2568 = vpop.f32.mrf.mxu0
    %v2569 = vadd.f32 0.0, %v2568
    %v2570 = vpop.f32.mrf.mxu0
    %v2571 = vadd.f32 0.0, %v2570
    %2572 = vdwg.mxu0
    %2573 = vmatpush.bf16.msra.mxu0 %v2472
    %2574 = vmatpush.bf16.msra.mxu0 %v2471
    %2575 = vmatpush.bf16.msra.mxu0 %v2470
    %2576 = vmatpush.bf16.msra.mxu0 %v2469
    %2577 = vmatpush.bf16.msra.mxu0 %v2468
    %2578 = vmatpush.bf16.msra.mxu0 %v2467
    %2579 = vmatpush.bf16.msra.mxu0 %v2466
    %2580 = vmatpush.bf16.msra.mxu0 %v2465
    %2581 = vmatmul.bf16.gmra.mxu0 %v1273
    %v2582 = vpop.f32.mrf.mxu0
    %v2583 = vadd.f32 %v2534, %v2582
    %v2584 = vpop.f32.mrf.mxu0
    %v2585 = vadd.f32 %v2536, %v2584
    %2586 = vmatmul.bf16.gmra.mxu0 %v1274
    %v2587 = vpop.f32.mrf.mxu0
    %v2588 = vadd.f32 %v2539, %v2587
    %v2589 = vpop.f32.mrf.mxu0
    %v2590 = vadd.f32 %v2541, %v2589
    %2591 = vmatmul.bf16.gmra.mxu0 %v1275
    %v2592 = vpop.f32.mrf.mxu0
    %v2593 = vadd.f32 %v2544, %v2592
    %v2594 = vpop.f32.mrf.mxu0
    %v2595 = vadd.f32 %v2546, %v2594
    %2596 = vmatmul.bf16.gmra.mxu0 %v1276
    %v2597 = vpop.f32.mrf.mxu0
    %v2598 = vadd.f32 %v2549, %v2597
    %v2599 = vpop.f32.mrf.mxu0
    %v2600 = vadd.f32 %v2551, %v2599
    %2601 = vmatmul.bf16.gmra.mxu0 %v1277
    %v2602 = vpop.f32.mrf.mxu0
    %v2603 = vadd.f32 %v2554, %v2602
    %v2604 = vpop.f32.mrf.mxu0
    %v2605 = vadd.f32 %v2556, %v2604
    %2606 = vmatmul.bf16.gmra.mxu0 %v1278
    %v2607 = vpop.f32.mrf.mxu0
    %v2608 = vadd.f32 %v2559, %v2607
    %v2609 = vpop.f32.mrf.mxu0
    %v2610 = vadd.f32 %v2561, %v2609
    %2611 = vmatmul.bf16.gmra.mxu0 %v1279
    %v2612 = vpop.f32.mrf.mxu0
    %v2613 = vadd.f32 %v2564, %v2612
    %v2614 = vpop.f32.mrf.mxu0
    %v2615 = vadd.f32 %v2566, %v2614
    %2616 = vmatmul.bf16.gmra.mxu0 %v1280
    %v2617 = vpop.f32.mrf.mxu0
    %v2618 = vadd.f32 %v2569, %v2617
    %v2619 = vpop.f32.mrf.mxu0
    %v2620 = vadd.f32 %v2571, %v2619
    %2621 = vdwg.mxu0
    %v2622 = vperm.slane %v2474, 0
    %v2623 = vadd.f32 %v2583, %v2622
    %v2624 = vadd.f32 %v2585, %v2622
    %v2625 = vadd.f32 %v2588, %v2622
    %v2626 = vadd.f32 %v2590, %v2622
    %v2627 = vadd.f32 %v2593, %v2622
    %v2628 = vadd.f32 %v2595, %v2622
    %v2629 = vadd.f32 %v2598, %v2622
    %v2630 = vadd.f32 %v2600, %v2622
    %v2631 = vadd.f32 %v2603, %v2622
    %v2632 = vadd.f32 %v2605, %v2622
    %v2633 = vadd.f32 %v2608, %v2622
    %v2634 = vadd.f32 %v2610, %v2622
    %v2635 = vadd.f32 %v2613, %v2622
    %v2636 = vadd.f32 %v2615, %v2622
    %v2637 = vadd.f32 %v2618, %v2622
    %v2638 = vadd.f32 %v2620, %v2622
    %s2639 = scalar_lea.vmem %s2, 144
    %v2640 = vld [vmem:[%s2639] sm:$0xf]
    %v2641 = vld [vmem:[%s2639 + $0x4] sm:$0xf]
    %v2642 = vld [vmem:[%s2639 + $0x8] sm:$0xf]
    %v2643 = vld [vmem:[%s2639 + $0xc] sm:$0xf]
    %v2644 = vmax.f32 %v2623, 0.0
    %v2645 = vmax.f32 %v2624, 0.0
    %v2646 = vmax.f32 %v2625, 0.0
    %v2647 = vmax.f32 %v2626, 0.0
    %v2648 = vmax.f32 %v2627, 0.0
    %v2649 = vmax.f32 %v2628, 0.0
    %v2650 = vmax.f32 %v2629, 0.0
    %v2651 = vmax.f32 %v2630, 0.0
    %v2652 = vmax.f32 %v2631, 0.0
    %v2653 = vmax.f32 %v2632, 0.0
    %v2654 = vmax.f32 %v2633, 0.0
    %v2655 = vmax.f32 %v2634, 0.0
    %v2656 = vmax.f32 %v2635, 0.0
    %v2657 = vmax.f32 %v2636, 0.0
    %v2658 = vmax.f32 %v2637, 0.0
    %v2659 = vmax.f32 %v2638, 0.0
    %v2660 = vpack.c.bf16 %v2645, %v2644
    %v2661 = vpack.c.bf16 %v2647, %v2646
    %v2662 = vpack.c.bf16 %v2649, %v2648
    %v2663 = vpack.c.bf16 %v2651, %v2650
    %v2664 = vpack.c.bf16 %v2653, %v2652
    %v2665 = vpack.c.bf16 %v2655, %v2654
    %v2666 = vpack.c.bf16 %v2657, %v2656
    %v2667 = vpack.c.bf16 %v2659, %v2658
    %v2668 = vperm.slane %v2474, 1
    %v2673 = vunpack.c.l.b16 %v2640
    %v2674 = vunpack.c.l.b16 %v2641
    %v2675 = vunpack.c.l.b16 %v2642
    %v2676 = vunpack.c.l.b16 %v2643
    %v2677 = vpack.c.b16 %v2674, %v2673
    %v2678 = vpack.c.b16 %v2676, %v2675
    %v2682 = vsel %vm134, %v2660, 0
    %v2685 = vsel %vm134, %v2661, 0
    %v2688 = vsel %vm134, %v2662, 0
    %v2691 = vsel %vm134, %v2663, 0
    %v2694 = vsel %vm134, %v2664, 0
    %v2697 = vsel %vm134, %v2665, 0
    %v2700 = vsel %vm134, %v2666, 0
    %v2703 = vsel %vm134, %v2667, 0
    %2705 = vmatpush.bf16.msra.mxu0 0
    %2706 = vmatpush.bf16.msra.mxu0 0
    %2707 = vmatpush.bf16.msra.mxu0 0
    %2708 = vmatpush.bf16.msra.mxu0 0
    %2709 = vmatpush.bf16.msra.mxu0 0
    %2710 = vmatpush.bf16.msra.mxu0 0
    %2711 = vmatpush.bf16.msra.mxu0 %v2678
    %2712 = vmatpush.bf16.msra.mxu0 %v2677
    %2713 = vmatmul.bf16.gmra.mxu0 %v2682
    %v2714 = vpop.f32.mrf.mxu0
    %v2715 = vadd.f32 %v2668, %v2714
    %v2716 = vpop.f32.mrf.mxu0
    %v2717 = vadd.f32 %v2668, %v2716
    %2718 = vmatmul.bf16.gmra.mxu0 %v2685
    %v2719 = vpop.f32.mrf.mxu0
    %v2720 = vadd.f32 %v2668, %v2719
    %v2721 = vpop.f32.mrf.mxu0
    %v2722 = vadd.f32 %v2668, %v2721
    %2723 = vmatmul.bf16.gmra.mxu0 %v2688
    %v2724 = vpop.f32.mrf.mxu0
    %v2725 = vadd.f32 %v2668, %v2724
    %v2726 = vpop.f32.mrf.mxu0
    %v2727 = vadd.f32 %v2668, %v2726
    %2728 = vmatmul.bf16.gmra.mxu0 %v2691
    %v2729 = vpop.f32.mrf.mxu0
    %v2730 = vadd.f32 %v2668, %v2729
    %v2731 = vpop.f32.mrf.mxu0
    %v2732 = vadd.f32 %v2668, %v2731
    %2733 = vmatmul.bf16.gmra.mxu0 %v2694
    %v2734 = vpop.f32.mrf.mxu0
    %v2735 = vadd.f32 %v2668, %v2734
    %v2736 = vpop.f32.mrf.mxu0
    %v2737 = vadd.f32 %v2668, %v2736
    %2738 = vmatmul.bf16.gmra.mxu0 %v2697
    %v2739 = vpop.f32.mrf.mxu0
    %v2740 = vadd.f32 %v2668, %v2739
    %v2741 = vpop.f32.mrf.mxu0
    %v2742 = vadd.f32 %v2668, %v2741
    %2743 = vmatmul.bf16.gmra.mxu0 %v2700
    %v2744 = vpop.f32.mrf.mxu0
    %v2745 = vadd.f32 %v2668, %v2744
    %v2746 = vpop.f32.mrf.mxu0
    %v2747 = vadd.f32 %v2668, %v2746
    %2748 = vmatmul.bf16.gmra.mxu0 %v2703
    %v2749 = vpop.f32.mrf.mxu0
    %v2750 = vadd.f32 %v2668, %v2749
    %v2751 = vpop.f32.mrf.mxu0
    %v2752 = vadd.f32 %v2668, %v2751
    %2753 = vdwg.mxu0
    %v2754 = vmax.f32 %v2715, 0.0
    %v2755 = vmax.f32 %v2717, 0.0
    %v2756 = vmax.f32 %v2720, 0.0
    %v2757 = vmax.f32 %v2722, 0.0
    %v2758 = vmax.f32 %v2725, 0.0
    %v2759 = vmax.f32 %v2727, 0.0
    %v2760 = vmax.f32 %v2730, 0.0
    %v2761 = vmax.f32 %v2732, 0.0
    %v2762 = vmax.f32 %v2735, 0.0
    %v2763 = vmax.f32 %v2737, 0.0
    %v2764 = vmax.f32 %v2740, 0.0
    %v2765 = vmax.f32 %v2742, 0.0
    %v2766 = vmax.f32 %v2745, 0.0
    %v2767 = vmax.f32 %v2747, 0.0
    %v2768 = vmax.f32 %v2750, 0.0
    %v2769 = vmax.f32 %v2752, 0.0
    %v2770 = vsel %vm134, %v2754, 0.0
    %2771 = vadd.xlane.f32.xlu0 %v2770
    %v2772 = vpop.xlane.xlu0 %2771
    %v2773 = vsel %vm134, %v2755, 0.0
    %2774 = vadd.xlane.f32.xlu0 %v2773
    %v2775 = vpop.xlane.xlu0 %2774
    %v2776 = vsel %vm134, %v2756, 0.0
    %2777 = vadd.xlane.f32.xlu0 %v2776
    %v2778 = vpop.xlane.xlu0 %2777
    %v2779 = vsel %vm134, %v2757, 0.0
    %2780 = vadd.xlane.f32.xlu0 %v2779
    %v2781 = vpop.xlane.xlu0 %2780
    %v2782 = vsel %vm134, %v2758, 0.0
    %2783 = vadd.xlane.f32.xlu0 %v2782
    %v2784 = vpop.xlane.xlu0 %2783
    %v2785 = vsel %vm134, %v2759, 0.0
    %2786 = vadd.xlane.f32.xlu0 %v2785
    %v2787 = vpop.xlane.xlu0 %2786
    %v2788 = vsel %vm134, %v2760, 0.0
    %2789 = vadd.xlane.f32.xlu0 %v2788
    %v2790 = vpop.xlane.xlu0 %2789
    %v2791 = vsel %vm134, %v2761, 0.0
    %2792 = vadd.xlane.f32.xlu0 %v2791
    %v2793 = vpop.xlane.xlu0 %2792
    %v2794 = vsel %vm134, %v2762, 0.0
    %2795 = vadd.xlane.f32.xlu0 %v2794
    %v2796 = vpop.xlane.xlu0 %2795
    %v2797 = vsel %vm134, %v2763, 0.0
    %2798 = vadd.xlane.f32.xlu0 %v2797
    %v2799 = vpop.xlane.xlu0 %2798
    %v2800 = vsel %vm134, %v2764, 0.0
    %2801 = vadd.xlane.f32.xlu0 %v2800
    %v2802 = vpop.xlane.xlu0 %2801
    %v2803 = vsel %vm134, %v2765, 0.0
    %2804 = vadd.xlane.f32.xlu0 %v2803
    %v2805 = vpop.xlane.xlu0 %2804
    %v2806 = vsel %vm134, %v2766, 0.0
    %2807 = vadd.xlane.f32.xlu0 %v2806
    %v2808 = vpop.xlane.xlu0 %2807
    %v2809 = vsel %vm134, %v2767, 0.0
    %2810 = vadd.xlane.f32.xlu0 %v2809
    %v2811 = vpop.xlane.xlu0 %2810
    %v2812 = vsel %vm134, %v2768, 0.0
    %2813 = vadd.xlane.f32.xlu0 %v2812
    %v2814 = vpop.xlane.xlu0 %2813
    %v2815 = vsel %vm134, %v2769, 0.0
    %2816 = vadd.xlane.f32.xlu0 %v2815
    %v2817 = vpop.xlane.xlu0 %2816
    %v2818 = vmul.f32 %v2772, %v214
    %v2819 = vmul.f32 %v2775, %v214
    %v2820 = vmul.f32 %v2778, %v214
    %v2821 = vmul.f32 %v2781, %v214
    %v2822 = vmul.f32 %v2784, %v214
    %v2823 = vmul.f32 %v2787, %v214
    %v2824 = vmul.f32 %v2790, %v214
    %v2825 = vmul.f32 %v2793, %v214
    %v2826 = vmul.f32 %v2796, %v214
    %v2827 = vmul.f32 %v2799, %v214
    %v2828 = vmul.f32 %v2802, %v214
    %v2829 = vmul.f32 %v2805, %v214
    %v2830 = vmul.f32 %v2808, %v214
    %v2831 = vmul.f32 %v2811, %v214
    %v2832 = vmul.f32 %v2814, %v214
    %v2833 = vmul.f32 %v2817, %v214
    %v2834 = vsub.f32 %v2754, %v2818
    %v2835 = vsub.f32 %v2755, %v2819
    %v2836 = vsub.f32 %v2756, %v2820
    %v2837 = vsub.f32 %v2757, %v2821
    %v2838 = vsub.f32 %v2758, %v2822
    %v2839 = vsub.f32 %v2759, %v2823
    %v2840 = vsub.f32 %v2760, %v2824
    %v2841 = vsub.f32 %v2761, %v2825
    %v2842 = vsub.f32 %v2762, %v2826
    %v2843 = vsub.f32 %v2763, %v2827
    %v2844 = vsub.f32 %v2764, %v2828
    %v2845 = vsub.f32 %v2765, %v2829
    %v2846 = vsub.f32 %v2766, %v2830
    %v2847 = vsub.f32 %v2767, %v2831
    %v2848 = vsub.f32 %v2768, %v2832
    %v2849 = vsub.f32 %v2769, %v2833
    %v2850 = vmul.f32 %v2834, %v2834
    %v2851 = vmul.f32 %v2835, %v2835
    %v2852 = vmul.f32 %v2836, %v2836
    %v2853 = vmul.f32 %v2837, %v2837
    %v2854 = vmul.f32 %v2838, %v2838
    %v2855 = vmul.f32 %v2839, %v2839
    %v2856 = vmul.f32 %v2840, %v2840
    %v2857 = vmul.f32 %v2841, %v2841
    %v2858 = vmul.f32 %v2842, %v2842
    %v2859 = vmul.f32 %v2843, %v2843
    %v2860 = vmul.f32 %v2844, %v2844
    %v2861 = vmul.f32 %v2845, %v2845
    %v2862 = vmul.f32 %v2846, %v2846
    %v2863 = vmul.f32 %v2847, %v2847
    %v2864 = vmul.f32 %v2848, %v2848
    %v2865 = vmul.f32 %v2849, %v2849
    %v2866 = vsel %vm134, %v2850, 0.0
    %2867 = vadd.xlane.f32.xlu0 %v2866
    %v2868 = vpop.xlane.xlu0 %2867
    %v2869 = vsel %vm134, %v2851, 0.0
    %2870 = vadd.xlane.f32.xlu0 %v2869
    %v2871 = vpop.xlane.xlu0 %2870
    %v2872 = vsel %vm134, %v2852, 0.0
    %2873 = vadd.xlane.f32.xlu0 %v2872
    %v2874 = vpop.xlane.xlu0 %2873
    %v2875 = vsel %vm134, %v2853, 0.0
    %2876 = vadd.xlane.f32.xlu0 %v2875
    %v2877 = vpop.xlane.xlu0 %2876
    %v2878 = vsel %vm134, %v2854, 0.0
    %2879 = vadd.xlane.f32.xlu0 %v2878
    %v2880 = vpop.xlane.xlu0 %2879
    %v2881 = vsel %vm134, %v2855, 0.0
    %2882 = vadd.xlane.f32.xlu0 %v2881
    %v2883 = vpop.xlane.xlu0 %2882
    %v2884 = vsel %vm134, %v2856, 0.0
    %2885 = vadd.xlane.f32.xlu0 %v2884
    %v2886 = vpop.xlane.xlu0 %2885
    %v2887 = vsel %vm134, %v2857, 0.0
    %2888 = vadd.xlane.f32.xlu0 %v2887
    %v2889 = vpop.xlane.xlu0 %2888
    %v2890 = vsel %vm134, %v2858, 0.0
    %2891 = vadd.xlane.f32.xlu0 %v2890
    %v2892 = vpop.xlane.xlu0 %2891
    %v2893 = vsel %vm134, %v2859, 0.0
    %2894 = vadd.xlane.f32.xlu0 %v2893
    %v2895 = vpop.xlane.xlu0 %2894
    %v2896 = vsel %vm134, %v2860, 0.0
    %2897 = vadd.xlane.f32.xlu0 %v2896
    %v2898 = vpop.xlane.xlu0 %2897
    %v2899 = vsel %vm134, %v2861, 0.0
    %2900 = vadd.xlane.f32.xlu0 %v2899
    %v2901 = vpop.xlane.xlu0 %2900
    %v2902 = vsel %vm134, %v2862, 0.0
    %2903 = vadd.xlane.f32.xlu0 %v2902
    %v2904 = vpop.xlane.xlu0 %2903
    %v2905 = vsel %vm134, %v2863, 0.0
    %2906 = vadd.xlane.f32.xlu0 %v2905
    %v2907 = vpop.xlane.xlu0 %2906
    %v2908 = vsel %vm134, %v2864, 0.0
    %2909 = vadd.xlane.f32.xlu0 %v2908
    %v2910 = vpop.xlane.xlu0 %2909
    %v2911 = vsel %vm134, %v2865, 0.0
    %2912 = vadd.xlane.f32.xlu0 %v2911
    %v2913 = vpop.xlane.xlu0 %2912
    %v2914 = vmul.f32 %v2868, %v214
    %v2915 = vmul.f32 %v2871, %v214
    %v2916 = vmul.f32 %v2874, %v214
    %v2917 = vmul.f32 %v2877, %v214
    %v2918 = vmul.f32 %v2880, %v214
    %v2919 = vmul.f32 %v2883, %v214
    %v2920 = vmul.f32 %v2886, %v214
    %v2921 = vmul.f32 %v2889, %v214
    %v2922 = vmul.f32 %v2892, %v214
    %v2923 = vmul.f32 %v2895, %v214
    %v2924 = vmul.f32 %v2898, %v214
    %v2925 = vmul.f32 %v2901, %v214
    %v2926 = vmul.f32 %v2904, %v214
    %v2927 = vmul.f32 %v2907, %v214
    %v2928 = vmul.f32 %v2910, %v214
    %v2929 = vmul.f32 %v2913, %v214
    %v2930 = vadd.f32 %v2914, 1e-05
    %v2931 = vadd.f32 %v2915, 1e-05
    %v2932 = vadd.f32 %v2916, 1e-05
    %v2933 = vadd.f32 %v2917, 1e-05
    %v2934 = vadd.f32 %v2918, 1e-05
    %v2935 = vadd.f32 %v2919, 1e-05
    %v2936 = vadd.f32 %v2920, 1e-05
    %v2937 = vadd.f32 %v2921, 1e-05
    %v2938 = vadd.f32 %v2922, 1e-05
    %v2939 = vadd.f32 %v2923, 1e-05
    %v2940 = vadd.f32 %v2924, 1e-05
    %v2941 = vadd.f32 %v2925, 1e-05
    %v2942 = vadd.f32 %v2926, 1e-05
    %v2943 = vadd.f32 %v2927, 1e-05
    %v2944 = vadd.f32 %v2928, 1e-05
    %v2945 = vadd.f32 %v2929, 1e-05
    %v2946 = vrsqrt.pop %v2930
    %v2947 = vmul.f32 %v2946, %v2930
    %v2948 = vmul.f32 %v2947, %v2946
    %v2949 = vmul.f32 0.5, %v2948
    %v2950 = vsub.f32 1.5, %v2949
    %v2951 = vmul.f32 %v2946, %v2950
    %vm2952 = vweird.f32 %v2930
    %vm2953 = vweird.f32 %v2946
    %vm2954 = vmor %vm2952, %vm2953
    %v2955 = vsel %vm2954, %v2946, %v2951
    %v2956 = vrsqrt.pop %v2931
    %v2957 = vmul.f32 %v2956, %v2931
    %v2958 = vmul.f32 %v2957, %v2956
    %v2959 = vmul.f32 0.5, %v2958
    %v2960 = vsub.f32 1.5, %v2959
    %v2961 = vmul.f32 %v2956, %v2960
    %vm2962 = vweird.f32 %v2931
    %vm2963 = vweird.f32 %v2956
    %vm2964 = vmor %vm2962, %vm2963
    %v2965 = vsel %vm2964, %v2956, %v2961
    %v2966 = vrsqrt.pop %v2932
    %v2967 = vmul.f32 %v2966, %v2932
    %v2968 = vmul.f32 %v2967, %v2966
    %v2969 = vmul.f32 0.5, %v2968
    %v2970 = vsub.f32 1.5, %v2969
    %v2971 = vmul.f32 %v2966, %v2970
    %vm2972 = vweird.f32 %v2932
    %vm2973 = vweird.f32 %v2966
    %vm2974 = vmor %vm2972, %vm2973
    %v2975 = vsel %vm2974, %v2966, %v2971
    %v2976 = vrsqrt.pop %v2933
    %v2977 = vmul.f32 %v2976, %v2933
    %v2978 = vmul.f32 %v2977, %v2976
    %v2979 = vmul.f32 0.5, %v2978
    %v2980 = vsub.f32 1.5, %v2979
    %v2981 = vmul.f32 %v2976, %v2980
    %vm2982 = vweird.f32 %v2933
    %vm2983 = vweird.f32 %v2976
    %vm2984 = vmor %vm2982, %vm2983
    %v2985 = vsel %vm2984, %v2976, %v2981
    %v2986 = vrsqrt.pop %v2934
    %v2987 = vmul.f32 %v2986, %v2934
    %v2988 = vmul.f32 %v2987, %v2986
    %v2989 = vmul.f32 0.5, %v2988
    %v2990 = vsub.f32 1.5, %v2989
    %v2991 = vmul.f32 %v2986, %v2990
    %vm2992 = vweird.f32 %v2934
    %vm2993 = vweird.f32 %v2986
    %vm2994 = vmor %vm2992, %vm2993
    %v2995 = vsel %vm2994, %v2986, %v2991
    %v2996 = vrsqrt.pop %v2935
    %v2997 = vmul.f32 %v2996, %v2935
    %v2998 = vmul.f32 %v2997, %v2996
    %v2999 = vmul.f32 0.5, %v2998
    %v3000 = vsub.f32 1.5, %v2999
    %v3001 = vmul.f32 %v2996, %v3000
    %vm3002 = vweird.f32 %v2935
    %vm3003 = vweird.f32 %v2996
    %vm3004 = vmor %vm3002, %vm3003
    %v3005 = vsel %vm3004, %v2996, %v3001
    %v3006 = vrsqrt.pop %v2936
    %v3007 = vmul.f32 %v3006, %v2936
    %v3008 = vmul.f32 %v3007, %v3006
    %v3009 = vmul.f32 0.5, %v3008
    %v3010 = vsub.f32 1.5, %v3009
    %v3011 = vmul.f32 %v3006, %v3010
    %vm3012 = vweird.f32 %v2936
    %vm3013 = vweird.f32 %v3006
    %vm3014 = vmor %vm3012, %vm3013
    %v3015 = vsel %vm3014, %v3006, %v3011
    %v3016 = vrsqrt.pop %v2937
    %v3017 = vmul.f32 %v3016, %v2937
    %v3018 = vmul.f32 %v3017, %v3016
    %v3019 = vmul.f32 0.5, %v3018
    %v3020 = vsub.f32 1.5, %v3019
    %v3021 = vmul.f32 %v3016, %v3020
    %vm3022 = vweird.f32 %v2937
    %vm3023 = vweird.f32 %v3016
    %vm3024 = vmor %vm3022, %vm3023
    %v3025 = vsel %vm3024, %v3016, %v3021
    %v3026 = vrsqrt.pop %v2938
    %v3027 = vmul.f32 %v3026, %v2938
    %v3028 = vmul.f32 %v3027, %v3026
    %v3029 = vmul.f32 0.5, %v3028
    %v3030 = vsub.f32 1.5, %v3029
    %v3031 = vmul.f32 %v3026, %v3030
    %vm3032 = vweird.f32 %v2938
    %vm3033 = vweird.f32 %v3026
    %vm3034 = vmor %vm3032, %vm3033
    %v3035 = vsel %vm3034, %v3026, %v3031
    %v3036 = vrsqrt.pop %v2939
    %v3037 = vmul.f32 %v3036, %v2939
    %v3038 = vmul.f32 %v3037, %v3036
    %v3039 = vmul.f32 0.5, %v3038
    %v3040 = vsub.f32 1.5, %v3039
    %v3041 = vmul.f32 %v3036, %v3040
    %vm3042 = vweird.f32 %v2939
    %vm3043 = vweird.f32 %v3036
    %vm3044 = vmor %vm3042, %vm3043
    %v3045 = vsel %vm3044, %v3036, %v3041
    %v3046 = vrsqrt.pop %v2940
    %v3047 = vmul.f32 %v3046, %v2940
    %v3048 = vmul.f32 %v3047, %v3046
    %v3049 = vmul.f32 0.5, %v3048
    %v3050 = vsub.f32 1.5, %v3049
    %v3051 = vmul.f32 %v3046, %v3050
    %vm3052 = vweird.f32 %v2940
    %vm3053 = vweird.f32 %v3046
    %vm3054 = vmor %vm3052, %vm3053
    %v3055 = vsel %vm3054, %v3046, %v3051
    %v3056 = vrsqrt.pop %v2941
    %v3057 = vmul.f32 %v3056, %v2941
    %v3058 = vmul.f32 %v3057, %v3056
    %v3059 = vmul.f32 0.5, %v3058
    %v3060 = vsub.f32 1.5, %v3059
    %v3061 = vmul.f32 %v3056, %v3060
    %vm3062 = vweird.f32 %v2941
    %vm3063 = vweird.f32 %v3056
    %vm3064 = vmor %vm3062, %vm3063
    %v3065 = vsel %vm3064, %v3056, %v3061
    %v3066 = vrsqrt.pop %v2942
    %v3067 = vmul.f32 %v3066, %v2942
    %v3068 = vmul.f32 %v3067, %v3066
    %v3069 = vmul.f32 0.5, %v3068
    %v3070 = vsub.f32 1.5, %v3069
    %v3071 = vmul.f32 %v3066, %v3070
    %vm3072 = vweird.f32 %v2942
    %vm3073 = vweird.f32 %v3066
    %vm3074 = vmor %vm3072, %vm3073
    %v3075 = vsel %vm3074, %v3066, %v3071
    %v3076 = vrsqrt.pop %v2943
    %v3077 = vmul.f32 %v3076, %v2943
    %v3078 = vmul.f32 %v3077, %v3076
    %v3079 = vmul.f32 0.5, %v3078
    %v3080 = vsub.f32 1.5, %v3079
    %v3081 = vmul.f32 %v3076, %v3080
    %vm3082 = vweird.f32 %v2943
    %vm3083 = vweird.f32 %v3076
    %vm3084 = vmor %vm3082, %vm3083
    %v3085 = vsel %vm3084, %v3076, %v3081
    %v3086 = vrsqrt.pop %v2944
    %v3087 = vmul.f32 %v3086, %v2944
    %v3088 = vmul.f32 %v3087, %v3086
    %v3089 = vmul.f32 0.5, %v3088
    %v3090 = vsub.f32 1.5, %v3089
    %v3091 = vmul.f32 %v3086, %v3090
    %vm3092 = vweird.f32 %v2944
    %vm3093 = vweird.f32 %v3086
    %vm3094 = vmor %vm3092, %vm3093
    %v3095 = vsel %vm3094, %v3086, %v3091
    %v3096 = vrsqrt.pop %v2945
    %v3097 = vmul.f32 %v3096, %v2945
    %v3098 = vmul.f32 %v3097, %v3096
    %v3099 = vmul.f32 0.5, %v3098
    %v3100 = vsub.f32 1.5, %v3099
    %v3101 = vmul.f32 %v3096, %v3100
    %vm3102 = vweird.f32 %v2945
    %vm3103 = vweird.f32 %v3096
    %vm3104 = vmor %vm3102, %vm3103
    %v3105 = vsel %vm3104, %v3096, %v3101
    %v3106 = vmul.f32 %v2834, %v2955
    %v3107 = vmul.f32 %v2835, %v2965
    %v3108 = vmul.f32 %v2836, %v2975
    %v3109 = vmul.f32 %v2837, %v2985
    %v3110 = vmul.f32 %v2838, %v2995
    %v3111 = vmul.f32 %v2839, %v3005
    %v3112 = vmul.f32 %v2840, %v3015
    %v3113 = vmul.f32 %v2841, %v3025
    %v3114 = vmul.f32 %v2842, %v3035
    %v3115 = vmul.f32 %v2843, %v3045
    %v3116 = vmul.f32 %v2844, %v3055
    %v3117 = vmul.f32 %v2845, %v3065
    %v3118 = vmul.f32 %v2846, %v3075
    %v3119 = vmul.f32 %v2847, %v3085
    %v3120 = vmul.f32 %v2848, %v3095
    %v3121 = vmul.f32 %v2849, %v3105
    %v3122 = vperm.slane %v2474, 2
    %v3123 = vmul.f32 %v3106, %v3122
    %v3124 = vmul.f32 %v3107, %v3122
    %v3125 = vmul.f32 %v3108, %v3122
    %v3126 = vmul.f32 %v3109, %v3122
    %v3127 = vmul.f32 %v3110, %v3122
    %v3128 = vmul.f32 %v3111, %v3122
    %v3129 = vmul.f32 %v3112, %v3122
    %v3130 = vmul.f32 %v3113, %v3122
    %v3131 = vmul.f32 %v3114, %v3122
    %v3132 = vmul.f32 %v3115, %v3122
    %v3133 = vmul.f32 %v3116, %v3122
    %v3134 = vmul.f32 %v3117, %v3122
    %v3135 = vmul.f32 %v3118, %v3122
    %v3136 = vmul.f32 %v3119, %v3122
    %v3137 = vmul.f32 %v3120, %v3122
    %v3138 = vmul.f32 %v3121, %v3122
    %v3139 = vperm.slane %v2474, 3
    %v3140 = vadd.f32 %v3123, %v3139
    %v3141 = vadd.f32 %v3124, %v3139
    %v3142 = vadd.f32 %v3125, %v3139
    %v3143 = vadd.f32 %v3126, %v3139
    %v3144 = vadd.f32 %v3127, %v3139
    %v3145 = vadd.f32 %v3128, %v3139
    %v3146 = vadd.f32 %v3129, %v3139
    %v3147 = vadd.f32 %v3130, %v3139
    %v3148 = vadd.f32 %v3131, %v3139
    %v3149 = vadd.f32 %v3132, %v3139
    %v3150 = vadd.f32 %v3133, %v3139
    %v3151 = vadd.f32 %v3134, %v3139
    %v3152 = vadd.f32 %v3135, %v3139
    %v3153 = vadd.f32 %v3136, %v3139
    %v3154 = vadd.f32 %v3137, %v3139
    %v3155 = vadd.f32 %v3138, %v3139
    %v3156 = vpack.c.bf16 %v3141, %v3140
    %v3157 = vpack.c.bf16 %v3143, %v3142
    %v3158 = vpack.c.bf16 %v3145, %v3144
    %v3159 = vpack.c.bf16 %v3147, %v3146
    %v3160 = vpack.c.bf16 %v3149, %v3148
    %v3161 = vpack.c.bf16 %v3151, %v3150
    %v3162 = vpack.c.bf16 %v3153, %v3152
    %v3163 = vpack.c.bf16 %v3155, %v3154
    %3164 = vmatpush.bf16.msra.mxu0 %v3163
    %3165 = vmatpush.bf16.msra.mxu0 %v3162
    %3166 = vmatpush.bf16.msra.mxu0 %v3161
    %3167 = vmatpush.bf16.msra.mxu0 %v3160
    %3168 = vmatpush.bf16.msra.mxu0 %v3159
    %3169 = vmatpush.bf16.msra.mxu0 %v3158
    %3170 = vmatpush.bf16.msra.mxu0 %v3157
    %3171 = vmatpush.bf16.msra.mxu0 %v3156
    %3172 = vmatmul.bf16.gmra.mxu0 %v1904
    %v3173 = vpop.f32.mrf.mxu0
    %v3174 = vadd.f32 0.0, %v3173
    %v3175 = vpop.f32.mrf.mxu0
    %v3176 = vadd.f32 0.0, %v3175
    %3177 = vmatmul.bf16.gmra.mxu0 %v1905
    %v3178 = vpop.f32.mrf.mxu0
    %v3179 = vadd.f32 0.0, %v3178
    %v3180 = vpop.f32.mrf.mxu0
    %v3181 = vadd.f32 0.0, %v3180
    %3182 = vmatmul.bf16.gmra.mxu0 %v1906
    %v3183 = vpop.f32.mrf.mxu0
    %v3184 = vadd.f32 0.0, %v3183
    %v3185 = vpop.f32.mrf.mxu0
    %v3186 = vadd.f32 0.0, %v3185
    %3187 = vmatmul.bf16.gmra.mxu0 %v1907
    %v3188 = vpop.f32.mrf.mxu0
    %v3189 = vadd.f32 0.0, %v3188
    %v3190 = vpop.f32.mrf.mxu0
    %v3191 = vadd.f32 0.0, %v3190
    %3192 = vdwg.mxu0
    %s3193 = scalar_lea.vmem %s4, 20
    %v3194 = vld [vmem:[%s3193] sm:$0xf]
    %s3195 = scalar_lea.vmem %s2, 160
    %v3196 = vld [vmem:[%s3195] sm:$0xf]
    %v3197 = vld [vmem:[%s3195 + $0x4] sm:$0xf]
    %v3198 = vld [vmem:[%s3195 + $0x8] sm:$0xf]
    %v3199 = vld [vmem:[%s3195 + $0xc] sm:$0xf]
    %s3200 = scalar_lea.vmem %s2, 176
    %v3201 = vld [vmem:[%s3200] sm:$0xf]
    %v3202 = vld [vmem:[%s3200 + $0x4] sm:$0xf]
    %v3203 = vld [vmem:[%s3200 + $0x8] sm:$0xf]
    %v3204 = vld [vmem:[%s3200 + $0xc] sm:$0xf]
    %v3205 = vpack.c.bf16 %v3176, %v3174
    %v3206 = vpack.c.bf16 %v3181, %v3179
    %v3207 = vpack.c.bf16 %v3186, %v3184
    %v3208 = vpack.c.bf16 %v3191, %v3189
    %v3213 = vunpack.c.l.b16 %v3201
    %v3214 = vunpack.c.l.b16 %v3202
    %v3215 = vunpack.c.l.b16 %v3203
    %v3216 = vunpack.c.l.b16 %v3204
    %v3217 = vpack.c.b16 %v3214, %v3213
    %v3218 = vpack.c.b16 %v3216, %v3215
    %v3222 = vsel %vm134, %v3205, 0
    %v3225 = vsel %vm134, %v3206, 0
    %v3228 = vsel %vm134, %v3207, 0
    %v3231 = vsel %vm134, %v3208, 0
    %3233 = vmatpush.bf16.msra.mxu0 0
    %3234 = vmatpush.bf16.msra.mxu0 0
    %3235 = vmatpush.bf16.msra.mxu0 0
    %3236 = vmatpush.bf16.msra.mxu0 0
    %3237 = vmatpush.bf16.msra.mxu0 0
    %3238 = vmatpush.bf16.msra.mxu0 0
    %3239 = vmatpush.bf16.msra.mxu0 %v3218
    %3240 = vmatpush.bf16.msra.mxu0 %v3217
    %3241 = vmatmul.bf16.gmra.mxu0 %v3222
    %v3242 = vpop.f32.mrf.mxu0
    %v3243 = vadd.f32 0.0, %v3242
    %v3244 = vpop.f32.mrf.mxu0
    %v3245 = vadd.f32 0.0, %v3244
    %3246 = vmatmul.bf16.gmra.mxu0 %v3225
    %v3247 = vpop.f32.mrf.mxu0
    %v3248 = vadd.f32 0.0, %v3247
    %v3249 = vpop.f32.mrf.mxu0
    %v3250 = vadd.f32 0.0, %v3249
    %3251 = vmatmul.bf16.gmra.mxu0 %v3228
    %v3252 = vpop.f32.mrf.mxu0
    %v3253 = vadd.f32 0.0, %v3252
    %v3254 = vpop.f32.mrf.mxu0
    %v3255 = vadd.f32 0.0, %v3254
    %3256 = vmatmul.bf16.gmra.mxu0 %v3231
    %v3257 = vpop.f32.mrf.mxu0
    %v3258 = vadd.f32 0.0, %v3257
    %v3259 = vpop.f32.mrf.mxu0
    %v3260 = vadd.f32 0.0, %v3259
    %3261 = vdwg.mxu0
    %v3266 = vunpack.c.l.b16 %v3196
    %v3267 = vunpack.c.l.b16 %v3197
    %v3268 = vunpack.c.l.b16 %v3198
    %v3269 = vunpack.c.l.b16 %v3199
    %v3270 = vpack.c.b16 %v3267, %v3266
    %v3271 = vpack.c.b16 %v3269, %v3268
    %3274 = vmatpush.bf16.msra.mxu0 0
    %3275 = vmatpush.bf16.msra.mxu0 0
    %3276 = vmatpush.bf16.msra.mxu0 0
    %3277 = vmatpush.bf16.msra.mxu0 0
    %3278 = vmatpush.bf16.msra.mxu0 0
    %3279 = vmatpush.bf16.msra.mxu0 0
    %3280 = vmatpush.bf16.msra.mxu0 %v3271
    %3281 = vmatpush.bf16.msra.mxu0 %v3270
    %3282 = vmatmul.bf16.gmra.mxu0 %v2379
    %v3283 = vpop.f32.mrf.mxu0
    %v3284 = vadd.f32 %v3243, %v3283
    %v3285 = vpop.f32.mrf.mxu0
    %v3286 = vadd.f32 %v3245, %v3285
    %3287 = vmatmul.bf16.gmra.mxu0 %v2382
    %v3288 = vpop.f32.mrf.mxu0
    %v3289 = vadd.f32 %v3248, %v3288
    %v3290 = vpop.f32.mrf.mxu0
    %v3291 = vadd.f32 %v3250, %v3290
    %3292 = vmatmul.bf16.gmra.mxu0 %v2385
    %v3293 = vpop.f32.mrf.mxu0
    %v3294 = vadd.f32 %v3253, %v3293
    %v3295 = vpop.f32.mrf.mxu0
    %v3296 = vadd.f32 %v3255, %v3295
    %3297 = vmatmul.bf16.gmra.mxu0 %v2388
    %v3298 = vpop.f32.mrf.mxu0
    %v3299 = vadd.f32 %v3258, %v3298
    %v3300 = vpop.f32.mrf.mxu0
    %v3301 = vadd.f32 %v3260, %v3300
    %3302 = vdwg.mxu0
    %v3303 = vperm.slane %v3194, 0
    %v3304 = vadd.f32 %v3284, %v3303
    %v3305 = vadd.f32 %v3286, %v3303
    %v3306 = vadd.f32 %v3289, %v3303
    %v3307 = vadd.f32 %v3291, %v3303
    %v3308 = vadd.f32 %v3294, %v3303
    %v3309 = vadd.f32 %v3296, %v3303
    %v3310 = vadd.f32 %v3299, %v3303
    %v3311 = vadd.f32 %v3301, %v3303
    %s3312 = scalar_lea.vmem %s2, 192
    %v3313 = vld [vmem:[%s3312] sm:$0xf]
    %v3314 = vld [vmem:[%s3312 + $0x4] sm:$0xf]
    %v3315 = vld [vmem:[%s3312 + $0x8] sm:$0xf]
    %v3316 = vld [vmem:[%s3312 + $0xc] sm:$0xf]
    %v3317 = vmax.f32 %v3304, 0.0
    %v3318 = vmax.f32 %v3305, 0.0
    %v3319 = vmax.f32 %v3306, 0.0
    %v3320 = vmax.f32 %v3307, 0.0
    %v3321 = vmax.f32 %v3308, 0.0
    %v3322 = vmax.f32 %v3309, 0.0
    %v3323 = vmax.f32 %v3310, 0.0
    %v3324 = vmax.f32 %v3311, 0.0
    %v3325 = vpack.c.bf16 %v3318, %v3317
    %v3326 = vpack.c.bf16 %v3320, %v3319
    %v3327 = vpack.c.bf16 %v3322, %v3321
    %v3328 = vpack.c.bf16 %v3324, %v3323
    %v3329 = vperm.slane %v3194, 1
    %v3334 = vunpack.c.l.b16 %v3313
    %v3335 = vunpack.c.l.b16 %v3314
    %v3336 = vunpack.c.l.b16 %v3315
    %v3337 = vunpack.c.l.b16 %v3316
    %v3338 = vpack.c.b16 %v3335, %v3334
    %v3339 = vpack.c.b16 %v3337, %v3336
    %v3343 = vsel %vm134, %v3325, 0
    %v3346 = vsel %vm134, %v3326, 0
    %v3349 = vsel %vm134, %v3327, 0
    %v3352 = vsel %vm134, %v3328, 0
    %3354 = vmatpush.bf16.msra.mxu0 0
    %3355 = vmatpush.bf16.msra.mxu0 0
    %3356 = vmatpush.bf16.msra.mxu0 0
    %3357 = vmatpush.bf16.msra.mxu0 0
    %3358 = vmatpush.bf16.msra.mxu0 0
    %3359 = vmatpush.bf16.msra.mxu0 0
    %3360 = vmatpush.bf16.msra.mxu0 %v3339
    %3361 = vmatpush.bf16.msra.mxu0 %v3338
    %3362 = vmatmul.bf16.gmra.mxu0 %v3343
    %v3363 = vpop.f32.mrf.mxu0
    %v3364 = vadd.f32 %v3329, %v3363
    %v3365 = vpop.f32.mrf.mxu0
    %v3366 = vadd.f32 %v3329, %v3365
    %3367 = vmatmul.bf16.gmra.mxu0 %v3346
    %v3368 = vpop.f32.mrf.mxu0
    %v3369 = vadd.f32 %v3329, %v3368
    %v3370 = vpop.f32.mrf.mxu0
    %v3371 = vadd.f32 %v3329, %v3370
    %3372 = vmatmul.bf16.gmra.mxu0 %v3349
    %v3373 = vpop.f32.mrf.mxu0
    %v3374 = vadd.f32 %v3329, %v3373
    %v3375 = vpop.f32.mrf.mxu0
    %v3376 = vadd.f32 %v3329, %v3375
    %3377 = vmatmul.bf16.gmra.mxu0 %v3352
    %v3378 = vpop.f32.mrf.mxu0
    %v3379 = vadd.f32 %v3329, %v3378
    %v3380 = vpop.f32.mrf.mxu0
    %v3381 = vadd.f32 %v3329, %v3380
    %3382 = vdwg.mxu0
    %v3383 = vmax.f32 %v3364, 0.0
    %v3384 = vmax.f32 %v3366, 0.0
    %v3385 = vmax.f32 %v3369, 0.0
    %v3386 = vmax.f32 %v3371, 0.0
    %v3387 = vmax.f32 %v3374, 0.0
    %v3388 = vmax.f32 %v3376, 0.0
    %v3389 = vmax.f32 %v3379, 0.0
    %v3390 = vmax.f32 %v3381, 0.0
    %v3391 = vsel %vm134, %v3383, 0.0
    %3392 = vadd.xlane.f32.xlu0 %v3391
    %v3393 = vpop.xlane.xlu0 %3392
    %v3394 = vsel %vm134, %v3384, 0.0
    %3395 = vadd.xlane.f32.xlu0 %v3394
    %v3396 = vpop.xlane.xlu0 %3395
    %v3397 = vsel %vm134, %v3385, 0.0
    %3398 = vadd.xlane.f32.xlu0 %v3397
    %v3399 = vpop.xlane.xlu0 %3398
    %v3400 = vsel %vm134, %v3386, 0.0
    %3401 = vadd.xlane.f32.xlu0 %v3400
    %v3402 = vpop.xlane.xlu0 %3401
    %v3403 = vsel %vm134, %v3387, 0.0
    %3404 = vadd.xlane.f32.xlu0 %v3403
    %v3405 = vpop.xlane.xlu0 %3404
    %v3406 = vsel %vm134, %v3388, 0.0
    %3407 = vadd.xlane.f32.xlu0 %v3406
    %v3408 = vpop.xlane.xlu0 %3407
    %v3409 = vsel %vm134, %v3389, 0.0
    %3410 = vadd.xlane.f32.xlu0 %v3409
    %v3411 = vpop.xlane.xlu0 %3410
    %v3412 = vsel %vm134, %v3390, 0.0
    %3413 = vadd.xlane.f32.xlu0 %v3412
    %v3414 = vpop.xlane.xlu0 %3413
    %v3415 = vmul.f32 %v3393, %v214
    %v3416 = vmul.f32 %v3396, %v214
    %v3417 = vmul.f32 %v3399, %v214
    %v3418 = vmul.f32 %v3402, %v214
    %v3419 = vmul.f32 %v3405, %v214
    %v3420 = vmul.f32 %v3408, %v214
    %v3421 = vmul.f32 %v3411, %v214
    %v3422 = vmul.f32 %v3414, %v214
    %v3423 = vsub.f32 %v3383, %v3415
    %v3424 = vsub.f32 %v3384, %v3416
    %v3425 = vsub.f32 %v3385, %v3417
    %v3426 = vsub.f32 %v3386, %v3418
    %v3427 = vsub.f32 %v3387, %v3419
    %v3428 = vsub.f32 %v3388, %v3420
    %v3429 = vsub.f32 %v3389, %v3421
    %v3430 = vsub.f32 %v3390, %v3422
    %v3431 = vmul.f32 %v3423, %v3423
    %v3432 = vmul.f32 %v3424, %v3424
    %v3433 = vmul.f32 %v3425, %v3425
    %v3434 = vmul.f32 %v3426, %v3426
    %v3435 = vmul.f32 %v3427, %v3427
    %v3436 = vmul.f32 %v3428, %v3428
    %v3437 = vmul.f32 %v3429, %v3429
    %v3438 = vmul.f32 %v3430, %v3430
    %v3439 = vsel %vm134, %v3431, 0.0
    %3440 = vadd.xlane.f32.xlu0 %v3439
    %v3441 = vpop.xlane.xlu0 %3440
    %v3442 = vsel %vm134, %v3432, 0.0
    %3443 = vadd.xlane.f32.xlu0 %v3442
    %v3444 = vpop.xlane.xlu0 %3443
    %v3445 = vsel %vm134, %v3433, 0.0
    %3446 = vadd.xlane.f32.xlu0 %v3445
    %v3447 = vpop.xlane.xlu0 %3446
    %v3448 = vsel %vm134, %v3434, 0.0
    %3449 = vadd.xlane.f32.xlu0 %v3448
    %v3450 = vpop.xlane.xlu0 %3449
    %v3451 = vsel %vm134, %v3435, 0.0
    %3452 = vadd.xlane.f32.xlu0 %v3451
    %v3453 = vpop.xlane.xlu0 %3452
    %v3454 = vsel %vm134, %v3436, 0.0
    %3455 = vadd.xlane.f32.xlu0 %v3454
    %v3456 = vpop.xlane.xlu0 %3455
    %v3457 = vsel %vm134, %v3437, 0.0
    %3458 = vadd.xlane.f32.xlu0 %v3457
    %v3459 = vpop.xlane.xlu0 %3458
    %v3460 = vsel %vm134, %v3438, 0.0
    %3461 = vadd.xlane.f32.xlu0 %v3460
    %v3462 = vpop.xlane.xlu0 %3461
    %v3463 = vmul.f32 %v3441, %v214
    %v3464 = vmul.f32 %v3444, %v214
    %v3465 = vmul.f32 %v3447, %v214
    %v3466 = vmul.f32 %v3450, %v214
    %v3467 = vmul.f32 %v3453, %v214
    %v3468 = vmul.f32 %v3456, %v214
    %v3469 = vmul.f32 %v3459, %v214
    %v3470 = vmul.f32 %v3462, %v214
    %v3471 = vadd.f32 %v3463, 1e-05
    %v3472 = vadd.f32 %v3464, 1e-05
    %v3473 = vadd.f32 %v3465, 1e-05
    %v3474 = vadd.f32 %v3466, 1e-05
    %v3475 = vadd.f32 %v3467, 1e-05
    %v3476 = vadd.f32 %v3468, 1e-05
    %v3477 = vadd.f32 %v3469, 1e-05
    %v3478 = vadd.f32 %v3470, 1e-05
    %v3479 = vrsqrt.pop %v3471
    %v3480 = vmul.f32 %v3479, %v3471
    %v3481 = vmul.f32 %v3480, %v3479
    %v3482 = vmul.f32 0.5, %v3481
    %v3483 = vsub.f32 1.5, %v3482
    %v3484 = vmul.f32 %v3479, %v3483
    %vm3485 = vweird.f32 %v3471
    %vm3486 = vweird.f32 %v3479
    %vm3487 = vmor %vm3485, %vm3486
    %v3488 = vsel %vm3487, %v3479, %v3484
    %v3489 = vrsqrt.pop %v3472
    %v3490 = vmul.f32 %v3489, %v3472
    %v3491 = vmul.f32 %v3490, %v3489
    %v3492 = vmul.f32 0.5, %v3491
    %v3493 = vsub.f32 1.5, %v3492
    %v3494 = vmul.f32 %v3489, %v3493
    %vm3495 = vweird.f32 %v3472
    %vm3496 = vweird.f32 %v3489
    %vm3497 = vmor %vm3495, %vm3496
    %v3498 = vsel %vm3497, %v3489, %v3494
    %v3499 = vrsqrt.pop %v3473
    %v3500 = vmul.f32 %v3499, %v3473
    %v3501 = vmul.f32 %v3500, %v3499
    %v3502 = vmul.f32 0.5, %v3501
    %v3503 = vsub.f32 1.5, %v3502
    %v3504 = vmul.f32 %v3499, %v3503
    %vm3505 = vweird.f32 %v3473
    %vm3506 = vweird.f32 %v3499
    %vm3507 = vmor %vm3505, %vm3506
    %v3508 = vsel %vm3507, %v3499, %v3504
    %v3509 = vrsqrt.pop %v3474
    %v3510 = vmul.f32 %v3509, %v3474
    %v3511 = vmul.f32 %v3510, %v3509
    %v3512 = vmul.f32 0.5, %v3511
    %v3513 = vsub.f32 1.5, %v3512
    %v3514 = vmul.f32 %v3509, %v3513
    %vm3515 = vweird.f32 %v3474
    %vm3516 = vweird.f32 %v3509
    %vm3517 = vmor %vm3515, %vm3516
    %v3518 = vsel %vm3517, %v3509, %v3514
    %v3519 = vrsqrt.pop %v3475
    %v3520 = vmul.f32 %v3519, %v3475
    %v3521 = vmul.f32 %v3520, %v3519
    %v3522 = vmul.f32 0.5, %v3521
    %v3523 = vsub.f32 1.5, %v3522
    %v3524 = vmul.f32 %v3519, %v3523
    %vm3525 = vweird.f32 %v3475
    %vm3526 = vweird.f32 %v3519
    %vm3527 = vmor %vm3525, %vm3526
    %v3528 = vsel %vm3527, %v3519, %v3524
    %v3529 = vrsqrt.pop %v3476
    %v3530 = vmul.f32 %v3529, %v3476
    %v3531 = vmul.f32 %v3530, %v3529
    %v3532 = vmul.f32 0.5, %v3531
    %v3533 = vsub.f32 1.5, %v3532
    %v3534 = vmul.f32 %v3529, %v3533
    %vm3535 = vweird.f32 %v3476
    %vm3536 = vweird.f32 %v3529
    %vm3537 = vmor %vm3535, %vm3536
    %v3538 = vsel %vm3537, %v3529, %v3534
    %v3539 = vrsqrt.pop %v3477
    %v3540 = vmul.f32 %v3539, %v3477
    %v3541 = vmul.f32 %v3540, %v3539
    %v3542 = vmul.f32 0.5, %v3541
    %v3543 = vsub.f32 1.5, %v3542
    %v3544 = vmul.f32 %v3539, %v3543
    %vm3545 = vweird.f32 %v3477
    %vm3546 = vweird.f32 %v3539
    %vm3547 = vmor %vm3545, %vm3546
    %v3548 = vsel %vm3547, %v3539, %v3544
    %v3549 = vrsqrt.pop %v3478
    %v3550 = vmul.f32 %v3549, %v3478
    %v3551 = vmul.f32 %v3550, %v3549
    %v3552 = vmul.f32 0.5, %v3551
    %v3553 = vsub.f32 1.5, %v3552
    %v3554 = vmul.f32 %v3549, %v3553
    %vm3555 = vweird.f32 %v3478
    %vm3556 = vweird.f32 %v3549
    %vm3557 = vmor %vm3555, %vm3556
    %v3558 = vsel %vm3557, %v3549, %v3554
    %v3559 = vmul.f32 %v3423, %v3488
    %v3560 = vmul.f32 %v3424, %v3498
    %v3561 = vmul.f32 %v3425, %v3508
    %v3562 = vmul.f32 %v3426, %v3518
    %v3563 = vmul.f32 %v3427, %v3528
    %v3564 = vmul.f32 %v3428, %v3538
    %v3565 = vmul.f32 %v3429, %v3548
    %v3566 = vmul.f32 %v3430, %v3558
    %v3567 = vperm.slane %v3194, 2
    %v3568 = vmul.f32 %v3559, %v3567
    %v3569 = vmul.f32 %v3560, %v3567
    %v3570 = vmul.f32 %v3561, %v3567
    %v3571 = vmul.f32 %v3562, %v3567
    %v3572 = vmul.f32 %v3563, %v3567
    %v3573 = vmul.f32 %v3564, %v3567
    %v3574 = vmul.f32 %v3565, %v3567
    %v3575 = vmul.f32 %v3566, %v3567
    %v3576 = vperm.slane %v3194, 3
    %v3577 = vadd.f32 %v3568, %v3576
    %v3578 = vadd.f32 %v3569, %v3576
    %v3579 = vadd.f32 %v3570, %v3576
    %v3580 = vadd.f32 %v3571, %v3576
    %v3581 = vadd.f32 %v3572, %v3576
    %v3582 = vadd.f32 %v3573, %v3576
    %v3583 = vadd.f32 %v3574, %v3576
    %v3584 = vadd.f32 %v3575, %v3576
    %v3585 = vadd.f32 %v2333, %v3577
    %v3586 = vadd.f32 %v2334, %v3578
    %v3587 = vadd.f32 %v2335, %v3579
    %v3588 = vadd.f32 %v2336, %v3580
    %v3589 = vadd.f32 %v2337, %v3581
    %v3590 = vadd.f32 %v2338, %v3582
    %v3591 = vadd.f32 %v2339, %v3583
    %v3592 = vadd.f32 %v2340, %v3584
    %v3593 = vld [vmem:[%s5] sm:$0xff]
    %v3594 = vld [vmem:[%s5 + $0x8] sm:$0xff]
    %v3595 = vld [vmem:[%s5 + $0x10] sm:$0xff]
    %v3596 = vld [vmem:[%s5 + $0x18] sm:$0xff]
    %v3597 = vpack.c.bf16 %v3586, %v3585
    %v3598 = vpack.c.bf16 %v3588, %v3587
    %v3599 = vpack.c.bf16 %v3590, %v3589
    %v3600 = vpack.c.bf16 %v3592, %v3591
    %v3601 = vpack.c.bf16 %v3594, %v3593
    %v3602 = vpack.c.bf16 %v3596, %v3595
    %v3603 = vld [vmem:[%s5 + $0x40] sm:$0x1]
    %v3604 = vperm.slane %v3603, 0
    %v3606 = vsel %vm134, %v3597, 0
    %v3609 = vsel %vm134, %v3598, 0
    %v3612 = vsel %vm134, %v3599, 0
    %v3615 = vsel %vm134, %v3600, 0
    %3617 = vmatpush.bf16.msra.mxu0 0
    %3618 = vmatpush.bf16.msra.mxu0 0
    %3619 = vmatpush.bf16.msra.mxu0 0
    %3620 = vmatpush.bf16.msra.mxu0 0
    %3621 = vmatpush.bf16.msra.mxu0 0
    %3622 = vmatpush.bf16.msra.mxu0 0
    %3623 = vmatpush.bf16.msra.mxu0 %v3602
    %3624 = vmatpush.bf16.msra.mxu0 %v3601
    %3625 = vmatmul.bf16.gmra.mxu0 %v3606
    %v3626 = vpop.f32.mrf.mxu0
    %v3627 = vadd.f32 %v3604, %v3626
    %v3628 = vpop.f32.mrf.mxu0
    %v3629 = vadd.f32 %v3604, %v3628
    %3630 = vmatmul.bf16.gmra.mxu0 %v3609
    %v3631 = vpop.f32.mrf.mxu0
    %v3632 = vadd.f32 %v3604, %v3631
    %v3633 = vpop.f32.mrf.mxu0
    %v3634 = vadd.f32 %v3604, %v3633
    %3635 = vmatmul.bf16.gmra.mxu0 %v3612
    %v3636 = vpop.f32.mrf.mxu0
    %v3637 = vadd.f32 %v3604, %v3636
    %v3638 = vpop.f32.mrf.mxu0
    %v3639 = vadd.f32 %v3604, %v3638
    %3640 = vmatmul.bf16.gmra.mxu0 %v3615
    %v3641 = vpop.f32.mrf.mxu0
    %v3642 = vadd.f32 %v3604, %v3641
    %v3643 = vpop.f32.mrf.mxu0
    %v3644 = vadd.f32 %v3604, %v3643
    %3645 = vdwg.mxu0
    %v3646 = vxor.u32 %v3627, 2147483648
    %v3647 = vxor.u32 %v3629, 2147483648
    %v3648 = vxor.u32 %v3632, 2147483648
    %v3649 = vxor.u32 %v3634, 2147483648
    %v3650 = vxor.u32 %v3637, 2147483648
    %v3651 = vxor.u32 %v3639, 2147483648
    %v3652 = vxor.u32 %v3642, 2147483648
    %v3653 = vxor.u32 %v3644, 2147483648
    %v3654 = vmul.f32 %v3646, 1.442695
    %v3655 = vpow.pop %v3654
    %v3656 = vmul.f32 %v3647, 1.442695
    %v3657 = vpow.pop %v3656
    %v3658 = vmul.f32 %v3648, 1.442695
    %v3659 = vpow.pop %v3658
    %v3660 = vmul.f32 %v3649, 1.442695
    %v3661 = vpow.pop %v3660
    %v3662 = vmul.f32 %v3650, 1.442695
    %v3663 = vpow.pop %v3662
    %v3664 = vmul.f32 %v3651, 1.442695
    %v3665 = vpow.pop %v3664
    %v3666 = vmul.f32 %v3652, 1.442695
    %v3667 = vpow.pop %v3666
    %v3668 = vmul.f32 %v3653, 1.442695
    %v3669 = vpow.pop %v3668
    %v3670 = vadd.f32 %v3655, 1.0
    %v3671 = vadd.f32 %v3657, 1.0
    %v3672 = vadd.f32 %v3659, 1.0
    %v3673 = vadd.f32 %v3661, 1.0
    %v3674 = vadd.f32 %v3663, 1.0
    %v3675 = vadd.f32 %v3665, 1.0
    %v3676 = vadd.f32 %v3667, 1.0
    %v3677 = vadd.f32 %v3669, 1.0
    %v3678 = vrcp.pop %v3670
    %v3679 = vmul.f32 %v3670, %v3678
    %v3680 = vsub.f32 1.0, %v3679
    %v3681 = vmul.f32 %v3678, %v3680
    %v3682 = vadd.f32 %v3678, %v3681
    %vm3683 = vweird.f32 %v3670
    %vm3684 = vweird.f32 %v3678
    %vm3685 = vmor %vm3683, %vm3684
    %v3686 = vsel %vm3685, %v3678, %v3682
    %v3687 = vand.u32 2147483647, %v3670
    %vm3688 = vcmp.eq.f32.partialorder %v3687, 8.507059e+37
    %v3689 = vand.u32 %v3670, 2147483648
    %v3690 = vor.u32 1.1754944e-38, %v3689
    %v3691 = vsel %vm3688, %v3690, %v3686
    %v3692 = vmul.f32 1.0, %v3691
    %v3693 = vrcp.pop %v3671
    %v3694 = vmul.f32 %v3671, %v3693
    %v3695 = vsub.f32 1.0, %v3694
    %v3696 = vmul.f32 %v3693, %v3695
    %v3697 = vadd.f32 %v3693, %v3696
    %vm3698 = vweird.f32 %v3671
    %vm3699 = vweird.f32 %v3693
    %vm3700 = vmor %vm3698, %vm3699
    %v3701 = vsel %vm3700, %v3693, %v3697
    %v3702 = vand.u32 2147483647, %v3671
    %vm3703 = vcmp.eq.f32.partialorder %v3702, 8.507059e+37
    %v3704 = vand.u32 %v3671, 2147483648
    %v3705 = vor.u32 1.1754944e-38, %v3704
    %v3706 = vsel %vm3703, %v3705, %v3701
    %v3707 = vmul.f32 1.0, %v3706
    %v3708 = vrcp.pop %v3672
    %v3709 = vmul.f32 %v3672, %v3708
    %v3710 = vsub.f32 1.0, %v3709
    %v3711 = vmul.f32 %v3708, %v3710
    %v3712 = vadd.f32 %v3708, %v3711
    %vm3713 = vweird.f32 %v3672
    %vm3714 = vweird.f32 %v3708
    %vm3715 = vmor %vm3713, %vm3714
    %v3716 = vsel %vm3715, %v3708, %v3712
    %v3717 = vand.u32 2147483647, %v3672
    %vm3718 = vcmp.eq.f32.partialorder %v3717, 8.507059e+37
    %v3719 = vand.u32 %v3672, 2147483648
    %v3720 = vor.u32 1.1754944e-38, %v3719
    %v3721 = vsel %vm3718, %v3720, %v3716
    %v3722 = vmul.f32 1.0, %v3721
    %v3723 = vrcp.pop %v3673
    %v3724 = vmul.f32 %v3673, %v3723
    %v3725 = vsub.f32 1.0, %v3724
    %v3726 = vmul.f32 %v3723, %v3725
    %v3727 = vadd.f32 %v3723, %v3726
    %vm3728 = vweird.f32 %v3673
    %vm3729 = vweird.f32 %v3723
    %vm3730 = vmor %vm3728, %vm3729
    %v3731 = vsel %vm3730, %v3723, %v3727
    %v3732 = vand.u32 2147483647, %v3673
    %vm3733 = vcmp.eq.f32.partialorder %v3732, 8.507059e+37
    %v3734 = vand.u32 %v3673, 2147483648
    %v3735 = vor.u32 1.1754944e-38, %v3734
    %v3736 = vsel %vm3733, %v3735, %v3731
    %v3737 = vmul.f32 1.0, %v3736
    %v3738 = vrcp.pop %v3674
    %v3739 = vmul.f32 %v3674, %v3738
    %v3740 = vsub.f32 1.0, %v3739
    %v3741 = vmul.f32 %v3738, %v3740
    %v3742 = vadd.f32 %v3738, %v3741
    %vm3743 = vweird.f32 %v3674
    %vm3744 = vweird.f32 %v3738
    %vm3745 = vmor %vm3743, %vm3744
    %v3746 = vsel %vm3745, %v3738, %v3742
    %v3747 = vand.u32 2147483647, %v3674
    %vm3748 = vcmp.eq.f32.partialorder %v3747, 8.507059e+37
    %v3749 = vand.u32 %v3674, 2147483648
    %v3750 = vor.u32 1.1754944e-38, %v3749
    %v3751 = vsel %vm3748, %v3750, %v3746
    %v3752 = vmul.f32 1.0, %v3751
    %v3753 = vrcp.pop %v3675
    %v3754 = vmul.f32 %v3675, %v3753
    %v3755 = vsub.f32 1.0, %v3754
    %v3756 = vmul.f32 %v3753, %v3755
    %v3757 = vadd.f32 %v3753, %v3756
    %vm3758 = vweird.f32 %v3675
    %vm3759 = vweird.f32 %v3753
    %vm3760 = vmor %vm3758, %vm3759
    %v3761 = vsel %vm3760, %v3753, %v3757
    %v3762 = vand.u32 2147483647, %v3675
    %vm3763 = vcmp.eq.f32.partialorder %v3762, 8.507059e+37
    %v3764 = vand.u32 %v3675, 2147483648
    %v3765 = vor.u32 1.1754944e-38, %v3764
    %v3766 = vsel %vm3763, %v3765, %v3761
    %v3767 = vmul.f32 1.0, %v3766
    %v3768 = vrcp.pop %v3676
    %v3769 = vmul.f32 %v3676, %v3768
    %v3770 = vsub.f32 1.0, %v3769
    %v3771 = vmul.f32 %v3768, %v3770
    %v3772 = vadd.f32 %v3768, %v3771
    %vm3773 = vweird.f32 %v3676
    %vm3774 = vweird.f32 %v3768
    %vm3775 = vmor %vm3773, %vm3774
    %v3776 = vsel %vm3775, %v3768, %v3772
    %v3777 = vand.u32 2147483647, %v3676
    %vm3778 = vcmp.eq.f32.partialorder %v3777, 8.507059e+37
    %v3779 = vand.u32 %v3676, 2147483648
    %v3780 = vor.u32 1.1754944e-38, %v3779
    %v3781 = vsel %vm3778, %v3780, %v3776
    %v3782 = vmul.f32 1.0, %v3781
    %v3783 = vrcp.pop %v3677
    %v3784 = vmul.f32 %v3677, %v3783
    %v3785 = vsub.f32 1.0, %v3784
    %v3786 = vmul.f32 %v3783, %v3785
    %v3787 = vadd.f32 %v3783, %v3786
    %vm3788 = vweird.f32 %v3677
    %vm3789 = vweird.f32 %v3783
    %vm3790 = vmor %vm3788, %vm3789
    %v3791 = vsel %vm3790, %v3783, %v3787
    %v3792 = vand.u32 2147483647, %v3677
    %vm3793 = vcmp.eq.f32.partialorder %v3792, 8.507059e+37
    %v3794 = vand.u32 %v3677, 2147483648
    %v3795 = vor.u32 1.1754944e-38, %v3794
    %v3796 = vsel %vm3793, %v3795, %v3791
    %v3797 = vmul.f32 1.0, %v3796
    %v3798 = vmul.f32 %v3627, %v3692
    %v3799 = vmul.f32 %v3629, %v3707
    %v3800 = vmul.f32 %v3632, %v3722
    %v3801 = vmul.f32 %v3634, %v3737
    %v3802 = vmul.f32 %v3637, %v3752
    %v3803 = vmul.f32 %v3639, %v3767
    %v3804 = vmul.f32 %v3642, %v3782
    %v3805 = vmul.f32 %v3644, %v3797
    %v3806 = vld [vmem:[%s5 + $0x20] sm:$0xff]
    %v3807 = vld [vmem:[%s5 + $0x28] sm:$0xff]
    %v3808 = vld [vmem:[%s5 + $0x30] sm:$0xff]
    %v3809 = vld [vmem:[%s5 + $0x38] sm:$0xff]
    %v3810 = vpack.c.bf16 %v3799, %v3798
    %v3811 = vpack.c.bf16 %v3801, %v3800
    %v3812 = vpack.c.bf16 %v3803, %v3802
    %v3813 = vpack.c.bf16 %v3805, %v3804
    %v3814 = vpack.c.bf16 %v3807, %v3806
    %v3815 = vpack.c.bf16 %v3809, %v3808
    %v3816 = vld [vmem:[%s5 + $0x41] sm:$0x1]
    %v3817 = vperm.slane %v3816, 0
    %v3819 = vsel %vm134, %v3810, 0
    %v3822 = vsel %vm134, %v3811, 0
    %v3825 = vsel %vm134, %v3812, 0
    %v3828 = vsel %vm134, %v3813, 0
    %3830 = vmatpush.bf16.msra.mxu0 0
    %3831 = vmatpush.bf16.msra.mxu0 0
    %3832 = vmatpush.bf16.msra.mxu0 0
    %3833 = vmatpush.bf16.msra.mxu0 0
    %3834 = vmatpush.bf16.msra.mxu0 0
    %3835 = vmatpush.bf16.msra.mxu0 0
    %3836 = vmatpush.bf16.msra.mxu0 %v3815
    %3837 = vmatpush.bf16.msra.mxu0 %v3814
    %3838 = vmatmul.bf16.gmra.mxu0 %v3819
    %v3839 = vpop.f32.mrf.mxu0
    %v3840 = vadd.f32 %v3817, %v3839
    %v3841 = vpop.f32.mrf.mxu0
    %v3842 = vadd.f32 %v3817, %v3841
    %3843 = vmatmul.bf16.gmra.mxu0 %v3822
    %v3844 = vpop.f32.mrf.mxu0
    %v3845 = vadd.f32 %v3817, %v3844
    %v3846 = vpop.f32.mrf.mxu0
    %v3847 = vadd.f32 %v3817, %v3846
    %3848 = vmatmul.bf16.gmra.mxu0 %v3825
    %v3849 = vpop.f32.mrf.mxu0
    %v3850 = vadd.f32 %v3817, %v3849
    %v3851 = vpop.f32.mrf.mxu0
    %v3852 = vadd.f32 %v3817, %v3851
    %3853 = vmatmul.bf16.gmra.mxu0 %v3828
    %v3854 = vpop.f32.mrf.mxu0
    %v3855 = vadd.f32 %v3817, %v3854
    %v3856 = vpop.f32.mrf.mxu0
    %v3857 = vadd.f32 %v3817, %v3856
    %3858 = vdwg.mxu0
    %vm3859 = vcmask 80896
    %3860 = vst.msk [vmem:[%s6] sm:$0xff] %vm3859, %v3840
    %3861 = vst.msk [vmem:[%s6 + $0x8] sm:$0xff] %vm3859, %v3842
    %3862 = vst.msk [vmem:[%s6 + $0x10] sm:$0xff] %vm3859, %v3845
    %3863 = vst.msk [vmem:[%s6 + $0x18] sm:$0xff] %vm3859, %v3847
    %3864 = vst.msk [vmem:[%s6 + $0x20] sm:$0xff] %vm3859, %v3850
    %3865 = vst.msk [vmem:[%s6 + $0x28] sm:$0xff] %vm3859, %v3852
    %3866 = vst.msk [vmem:[%s6 + $0x30] sm:$0xff] %vm3859, %v3855
    %3867 = vst.msk [vmem:[%s6 + $0x38] sm:$0xff] %vm3859, %v3857
    // Predicated region
    $region30: #{tpu_custom_call.1} parent=1 // pred_check
      _
    $region31: #{tpu_custom_call.1} parent=1 // pred_check_branch
      %3869 = sbr.rel (0) target = $region33
    $region32: #{tpu_custom_call.1} parent=1 // pred_region
      _
    $region33: #{tpu_custom_call.1} parent=1 // pred_fallthru
      _
    // Predicated region
    $region34: #{tpu_custom_call.1} parent=1 // pred_check
      _
    $region35: #{tpu_custom_call.1} parent=1 // pred_check_branch
      %3871 = sbr.rel (0) target = $region37
    $region36: #{tpu_custom_call.1} parent=1 // pred_region
      _
    $region37: #{tpu_custom_call.1} parent=1 // pred_fallthru
      _
    %3872 = vsyncpa [#allocation3], 1

</llo_original>
